<compile_context>
chip_gen: v7x
topology: tpu7x:2x2x1
jax: 0.10.0
libtpu: 0.0.40
codegen_flags: <defaults>
</compile_context>

<pallas_src>
import jax
import jax.numpy as jnp
from jax import lax
from jax.experimental import pallas as pl
from jax.experimental.pallas import tpu as pltpu

D_IN = 30
D_H1 = 1000
D_H2 = 3000
D_OUT = 2

# Padded hidden sizes (multiples of 128 so every block obeys the (8,128) rule).
D_H1P = 1024                 # 1000 -> 1024
D_H2P = 3072                 # 3000 -> 3072


def _detect_n_half():
    """Column-half split of W2/W3: 2 on two-TensorCore chips, else 1."""
    try:
        kind = jax.devices()[0].device_kind.lower()
    except Exception:
        return 2
    # Single-TensorCore chips (v5e / v6e "lite" parts): the split buys no
    # parallelism and only doubles grid steps + layer-1 recompute.
    if "lite" in kind or "v5e" in kind or "v6e" in kind:
        return 1
    # Two TensorCores (v7x) / megacore (v4, v5p): split so both cores get
    # equal work even for small or odd ensemble sizes.
    return 2


N_HALF = _detect_n_half()
D_H2_HALF = D_H2P // N_HALF   # 3072 (single-TC) or 1536 (two-TC)


def _smallnet_kernel(x_ref, w1_ref, b1_ref, w2_ref, b2_ref, w3_ref, o_ref):
    # Layer 1 (tiny: (B,30) @ (30,1024)).
    w1 = w1_ref[0]
    h1 = jax.nn.sigmoid(
        jnp.dot(x_ref[...].astype(w1.dtype), w1,
                preferred_element_type=jnp.float32) + b1_ref[0])

    # Layer 2: one full-contraction matmul against this column half of W2.
    w2 = w2_ref[0]                                   # (D_H1P, D_H2_HALF)
    h2 = jax.nn.sigmoid(
        jnp.dot(h1.astype(w2.dtype), w2,
                preferred_element_type=jnp.float32) + b2_ref[0])

    # Layer 3: W3 stored lane-dense as (D_OUT, D_H2_HALF); contract last dims.
    w3 = w3_ref[0]
    o_ref[0, 0] = lax.dot_general(
        h2.astype(w3.dtype), w3,
        dimension_numbers=(((1,), (1,)), ((), ())),
        preferred_element_type=jnp.float32).astype(o_ref.dtype)


def prepare_params(params, weights_dtype=jnp.bfloat16):
    """One-time (load-time) padding + cast of the stacked parameters.

    Padding is numerically exact (padded activations multiply zero-padded
    downstream weight rows).  Default bf16 weights halve the HBM-bound W2
    traffic; pass weights_dtype=jnp.float32 for full precision.  Biases stay
    f32 (negligible bytes, added to f32 accumulators).
    """
    w1, b1, w2, b2, w3, b3 = params
    m = w1.shape[0]
    w1p = jnp.zeros((m, D_IN, D_H1P), w1.dtype).at[:, :, :D_H1].set(w1)
    b1p = jnp.zeros((m, 1, D_H1P), b1.dtype).at[:, :, :D_H1].set(b1)
    w2p = jnp.zeros((m, D_H1P, D_H2P), w2.dtype).at[:, :D_H1, :D_H2].set(w2)
    b2p = jnp.zeros((m, 1, D_H2P), b2.dtype).at[:, :, :D_H2].set(b2)
    # W3 stored transposed / lane-dense: (m, D_OUT, D_H2P).
    w3p = jnp.zeros((m, D_OUT, D_H2P), w3.dtype).at[:, :, :D_H2].set(
        jnp.swapaxes(w3, 1, 2))
    w1p = w1p.astype(weights_dtype)
    w2p = w2p.astype(weights_dtype)
    w3p = w3p.astype(weights_dtype)
    return w1p, b1p, w2p, b2p, w3p, b3


@jax.jit
def ensemble_forward_stacked(x, w1p, b1p, w2p, b2p, w3p, b3):
    """x: (B, 30); padded params stacked along leading ensemble axis m.

    Returns stacked outputs of shape (m, B, 2).
    """
    m = w1p.shape[0]
    B = x.shape[0]

    grid_spec = pltpu.PrefetchScalarGridSpec(
        num_scalar_prefetch=0,
        grid=(m, N_HALF),
        in_specs=[
            pl.BlockSpec((B, D_IN), lambda i, h: (0, 0)),                    # x
            pl.BlockSpec((1, D_IN, D_H1P), lambda i, h: (i, 0, 0)),          # W1
            pl.BlockSpec((1, 1, D_H1P), lambda i, h: (i, 0, 0)),             # b1
            pl.BlockSpec((1, D_H1P, D_H2_HALF), lambda i, h: (i, 0, h)),     # W2
            pl.BlockSpec((1, 1, D_H2_HALF), lambda i, h: (i, 0, h)),         # b2
            pl.BlockSpec((1, D_OUT, D_H2_HALF), lambda i, h: (i, 0, h)),     # W3
        ],
        out_specs=pl.BlockSpec((1, 1, B, D_OUT), lambda i, h: (i, h, 0, 0)),
    )

    per_member_bytes = (
        N_HALF * ((w1p.size // m) * w1p.dtype.itemsize
                  + (b1p.size // m) * b1p.dtype.itemsize
                  + x.size * x.dtype.itemsize)
        + (w2p.size // m) * w2p.dtype.itemsize
        + (b2p.size // m) * b2p.dtype.itemsize
        + (w3p.size // m) * w3p.dtype.itemsize
        + N_HALF * B * D_OUT * 4)
    cost = pl.CostEstimate(
        flops=int(2 * m * B * (N_HALF * D_IN * D_H1P
                               + D_H1P * D_H2P + D_H2P * D_OUT)),
        transcendentals=int(m * B * (N_HALF * D_H1P + D_H2P)),
        bytes_accessed=int(m * per_member_bytes),
    )

    partial = pl.pallas_call(
        _smallnet_kernel,
        out_shape=jax.ShapeDtypeStruct((m, N_HALF, B, D_OUT), jnp.float32),
        grid_spec=grid_spec,
        compiler_params=pltpu.CompilerParams(
            # Both grid axes are independent (distinct output blocks); they
            # shard across TensorCores on megacore / v7x chips.
            dimension_semantics=("parallel",) * 2,
            # Covers full-width f32 W2 double-buffers (~24 MB) and bf16
            # (~12 MB); under v7x's 64 MiB physical VMEM (v5e/v6e: 128 MiB).
            vmem_limit_bytes=40 << 20,
        ),
        cost_estimate=cost,
    )(x, w1p, b1p, w2p, b2p, w3p)

    # Combine column halves (no-op sum when N_HALF == 1) and add final bias.
    return partial.sum(axis=1) + b3


def ensemble_forward(x, prepared_params):
    """Returns the stacked (m, B, 2) outputs.

    (The original module returns a Python list; index stacked[i] lazily if a
    per-member list is needed — per-member slicing for large m adds host-side
    dispatch overhead that rivals the us-scale kernel.)
    """
    return ensemble_forward_stacked(x, *prepared_params)


def init_params(key, m):
    """Deterministic synthetic init of m SmallNet parameter sets."""
    ks = jax.random.split(key, 6)

    def u(k, shape, fan_in):
        bound = 1.0 / jnp.sqrt(fan_in)
        return jax.random.uniform(k, shape, jnp.float32, -bound, bound)

    w1 = u(ks[0], (m, D_IN, D_H1), D_IN)
    b1 = u(ks[1], (m, 1, D_H1), D_IN)
    w2 = u(ks[2], (m, D_H1, D_H2), D_H1)
    b2 = u(ks[3], (m, 1, D_H2), D_H1)
    w3 = u(ks[4], (m, D_H2, D_OUT), D_H2)
    b3 = u(ks[5], (m, 1, D_OUT), D_H2)
    return w1, b1, w2, b2, w3, b3


def reference_forward(x, params):
    w1, b1, w2, b2, w3, b3 = params
    outs = []
    for i in range(w1.shape[0]):
        h1 = jax.nn.sigmoid(x @ w1[i] + b1[i])
        h2 = jax.nn.sigmoid(h1 @ w2[i] + b2[i])
        outs.append(h2 @ w3[i] + b3[i])
    return outs


if __name__ == "__main__":
    key = jax.random.PRNGKey(0)
    k_x, k_p = jax.random.split(key)

    m = 3      # ensemble size
    B = 8      # batch
    x = jax.random.normal(k_x, (B, D_IN), jnp.float32)
    params = init_params(k_p, m)

    # Load-time preparation: pad once, bf16 weights (f32 accumulation).
    prepared = prepare_params(params, weights_dtype=jnp.bfloat16)

    stacked = ensemble_forward(x, prepared)
    stacked = jax.block_until_ready(stacked)
    assert stacked.shape == (m, B, D_OUT)

    # Reference in full f32; tolerance loosened for bf16 weight/activation cast.
    refs = jnp.stack(reference_forward(x, params))
    assert jnp.allclose(stacked, refs, atol=5e-2, rtol=5e-2), \
        float(jnp.max(jnp.abs(stacked - refs)))

    print("KERNEL_OK")
</pallas_src>

<mosaic_0001>
module attributes {stable_mosaic.version = 11 : i64} {
  func.func @_smallnet_kernel(%arg0: i32, %arg1: i32, %arg2: memref<8x30xf32, #tpu.memory_space<vmem>>, %arg3: memref<1x30x1024xbf16, #tpu.memory_space<vmem>>, %arg4: memref<1x1x1024xf32, #tpu.memory_space<vmem>>, %arg5: memref<1x1024x1536xbf16, #tpu.memory_space<vmem>>, %arg6: memref<1x1x1536xf32, #tpu.memory_space<vmem>>, %arg7: memref<1x2x1536xbf16, #tpu.memory_space<vmem>>, %arg8: memref<1x1x8x2xf32, #tpu.memory_space<vmem>>) attributes {dimension_semantics = [#tpu.dimension_semantics<parallel>, #tpu.dimension_semantics<parallel>], iteration_bounds = array<i64: 3, 2>, scalar_prefetch = 0 : i64, scratch_operands = 0 : i64, tpu.core_type = #tpu.core_type<tc>, window_params = [{pipeline_mode = #tpu.pipeline_mode<synchronous>, transform_indices = @transform_0, window_bounds = array<i64: 8, 30>}, {transform_indices = @transform_1, window_bounds = array<i64: 1, 30, 1024>}, {transform_indices = @transform_2, window_bounds = array<i64: 1, 1, 1024>}, {transform_indices = @transform_3, window_bounds = array<i64: 1, 1024, 1536>}, {transform_indices = @transform_4, window_bounds = array<i64: 1, 1, 1536>}, {transform_indices = @transform_5, window_bounds = array<i64: 1, 2, 1536>}, {transform_indices = @transform_6, window_bounds = array<i64: 1, 1, 8, 2>}]} {
    %c0 = arith.constant 0 : index
    %c0_0 = arith.constant 0 : index
    %c0_1 = arith.constant 0 : index
    %0 = vector.load %arg3[%c0, %c0_0, %c0_1] : memref<1x30x1024xbf16, #tpu.memory_space<vmem>>, vector<1x30x1024xbf16>
    %1 = vector.shape_cast %0 : vector<1x30x1024xbf16> to vector<30x1024xbf16>
    %c0_2 = arith.constant 0 : index
    %c0_3 = arith.constant 0 : index
    %2 = vector.load %arg2[%c0_2, %c0_3] : memref<8x30xf32, #tpu.memory_space<vmem>>, vector<8x30xf32>
    %3 = arith.truncf %2 : vector<8x30xf32> to vector<8x30xbf16>
    %cst = arith.constant dense<0.000000e+00> : vector<8x1024xf32>
    %4 = tpu.matmul %3, %1, %cst {dimension_numbers = #tpu.dot_dimension_numbers<[1], [0], [0], [1], [0, 0, 1, 1], [], []>} : vector<8x30xbf16>, vector<30x1024xbf16>, vector<8x1024xf32> -> vector<8x1024xf32>
    %c0_4 = arith.constant 0 : index
    %c0_5 = arith.constant 0 : index
    %c0_6 = arith.constant 0 : index
    %5 = vector.load %arg4[%c0_4, %c0_5, %c0_6] : memref<1x1x1024xf32, #tpu.memory_space<vmem>>, vector<1x1x1024xf32>
    %6 = vector.shape_cast %5 : vector<1x1x1024xf32> to vector<1x1024xf32>
    %7 = vector.broadcast %6 : vector<1x1024xf32> to vector<8x1024xf32>
    %8 = arith.addf %4, %7 : vector<8x1024xf32>
    %9 = arith.negf %8 : vector<8x1024xf32>
    %10 = math.exp %9 : vector<8x1024xf32>
    %cst_7 = arith.constant 1.000000e+00 : f32
    %11 = vector.broadcast %cst_7 : f32 to vector<8x1024xf32>
    %12 = arith.addf %11, %10 : vector<8x1024xf32>
    %13 = arith.divf %11, %12 : vector<8x1024xf32>
    %c0_8 = arith.constant 0 : index
    %c0_9 = arith.constant 0 : index
    %c0_10 = arith.constant 0 : index
    %14 = vector.load %arg5[%c0_8, %c0_9, %c0_10] : memref<1x1024x1536xbf16, #tpu.memory_space<vmem>>, vector<1x1024x1536xbf16>
    %15 = vector.shape_cast %14 : vector<1x1024x1536xbf16> to vector<1024x1536xbf16>
    %16 = arith.truncf %13 : vector<8x1024xf32> to vector<8x1024xbf16>
    %cst_11 = arith.constant dense<0.000000e+00> : vector<8x1536xf32>
    %17 = tpu.matmul %16, %15, %cst_11 {dimension_numbers = #tpu.dot_dimension_numbers<[1], [0], [0], [1], [0, 0, 1, 1], [], []>} : vector<8x1024xbf16>, vector<1024x1536xbf16>, vector<8x1536xf32> -> vector<8x1536xf32>
    %c0_12 = arith.constant 0 : index
    %c0_13 = arith.constant 0 : index
    %c0_14 = arith.constant 0 : index
    %18 = vector.load %arg6[%c0_12, %c0_13, %c0_14] : memref<1x1x1536xf32, #tpu.memory_space<vmem>>, vector<1x1x1536xf32>
    %19 = vector.shape_cast %18 : vector<1x1x1536xf32> to vector<1x1536xf32>
    %20 = vector.broadcast %19 : vector<1x1536xf32> to vector<8x1536xf32>
    %21 = arith.addf %17, %20 : vector<8x1536xf32>
    %22 = arith.negf %21 : vector<8x1536xf32>
    %23 = math.exp %22 : vector<8x1536xf32>
    %cst_15 = arith.constant 1.000000e+00 : f32
    %24 = vector.broadcast %cst_15 : f32 to vector<8x1536xf32>
    %25 = arith.addf %24, %23 : vector<8x1536xf32>
    %26 = arith.divf %24, %25 : vector<8x1536xf32>
    %c0_16 = arith.constant 0 : index
    %c0_17 = arith.constant 0 : index
    %c0_18 = arith.constant 0 : index
    %27 = vector.load %arg7[%c0_16, %c0_17, %c0_18] : memref<1x2x1536xbf16, #tpu.memory_space<vmem>>, vector<1x2x1536xbf16>
    %28 = vector.shape_cast %27 : vector<1x2x1536xbf16> to vector<2x1536xbf16>
    %29 = arith.truncf %26 : vector<8x1536xf32> to vector<8x1536xbf16>
    %cst_19 = arith.constant dense<0.000000e+00> : vector<8x2xf32>
    %30 = tpu.matmul %29, %28, %cst_19 {dimension_numbers = #tpu.dot_dimension_numbers<[1], [1], [0], [0], [0, 0, 1, 0], [], []>} : vector<8x1536xbf16>, vector<2x1536xbf16>, vector<8x2xf32> -> vector<8x2xf32>
    %c0_20 = arith.constant 0 : index
    %c0_21 = arith.constant 0 : index
    %c0_22 = arith.constant 0 : index
    %c0_23 = arith.constant 0 : index
    %31 = vector.load %arg8[%c0_20, %c0_21, %c0_22, %c0_23] : memref<1x1x8x2xf32, #tpu.memory_space<vmem>>, vector<1x1x8x2xf32>
    %32 = vector.shape_cast %31 : vector<1x1x8x2xf32> to vector<8x2xf32>
    %33 = vector.shape_cast %30 : vector<8x2xf32> to vector<1x1x8x2xf32>
    tpu.vector_store %arg8[%c0_20, %c0_21, %c0_22, %c0_23], %33 {strides = array<i32>} : memref<1x1x8x2xf32, #tpu.memory_space<vmem>>, vector<1x1x8x2xf32>,
    return
  }
  func.func @transform_0(%arg0: i32, %arg1: i32) -> (i32, i32) {
    %c0_i32 = arith.constant 0 : i32
    %c0_i32_0 = arith.constant 0 : i32
    %c0_i32_1 = arith.constant 0 : i32
    return %c0_i32, %c0_i32_0 : i32, i32
  }
  func.func @transform_1(%arg0: i32, %arg1: i32) -> (i32, i32, i32) {
    %c0_i32 = arith.constant 0 : i32
    %c0_i32_0 = arith.constant 0 : i32
    %c0_i32_1 = arith.constant 0 : i32
    return %arg0, %c0_i32, %c0_i32_0 : i32, i32, i32
  }
  func.func @transform_2(%arg0: i32, %arg1: i32) -> (i32, i32, i32) {
    %c0_i32 = arith.constant 0 : i32
    %c0_i32_0 = arith.constant 0 : i32
    %c0_i32_1 = arith.constant 0 : i32
    return %arg0, %c0_i32, %c0_i32_0 : i32, i32, i32
  }
  func.func @transform_3(%arg0: i32, %arg1: i32) -> (i32, i32, i32) {
    %c0_i32 = arith.constant 0 : i32
    %c0_i32_0 = arith.constant 0 : i32
    return %arg0, %c0_i32, %arg1 : i32, i32, i32
  }
  func.func @transform_4(%arg0: i32, %arg1: i32) -> (i32, i32, i32) {
    %c0_i32 = arith.constant 0 : i32
    %c0_i32_0 = arith.constant 0 : i32
    return %arg0, %c0_i32, %arg1 : i32, i32, i32
  }
  func.func @transform_5(%arg0: i32, %arg1: i32) -> (i32, i32, i32) {
    %c0_i32 = arith.constant 0 : i32
    %c0_i32_0 = arith.constant 0 : i32
    return %arg0, %c0_i32, %arg1 : i32, i32, i32
  }
  func.func @transform_6(%arg0: i32, %arg1: i32) -> (i32, i32, i32, i32) {
    %c0_i32 = arith.constant 0 : i32
    %c0_i32_0 = arith.constant 0 : i32
    %c0_i32_1 = arith.constant 0 : i32
    return %arg0, %arg1, %c0_i32, %c0_i32_0 : i32, i32, i32, i32
  }
}

</mosaic_0001>

<llo_original>
// kernel: ensemble_forward_stacked.1
$region0: #{ensemble_forward_stacked.1}
  #allocation0 [shape = 'u32[]', space=smem, size = 0x4, offset = 0x4, fixed_abs, tag = 'smem constant byte address 0x4 - core index']
  #allocation1 [shape = 'u32[144,128]{1,0:T(1,128)}', space=vmem, size = 0x12000, scoped, tag = 'internal scratch']
  %s0 = inlined_call_operand.hbm [shape: f32[8,30], index: 0, kind: input, shape index: {}]
  %s1 = inlined_call_operand.hbm [shape: bf16[3,30,1024], index: 1, kind: input, shape index: {}]
  %s2 = inlined_call_operand.hbm [shape: f32[3,1,1024], index: 2, kind: input, shape index: {}]
  %s3 = inlined_call_operand.hbm [shape: bf16[3,1024,3072], index: 3, kind: input, shape index: {}]
  %s4 = inlined_call_operand.hbm [shape: f32[3,1,3072], index: 4, kind: input, shape index: {}]
  %s5 = inlined_call_operand.hbm [shape: bf16[3,2,3072], index: 5, kind: input, shape index: {}]
  %s6 = inlined_call_operand.vmem [shape: f32[3,2,8,2], index: 6, kind: output, shape index: {}]
  %s7 = sld [smem:[#allocation0]]
  $region81: #{ensemble_forward_stacked.1} parent=0
    _
  %s9 = ssub.s32 1, %s7
  %s10 = scalar_select 0, %s9, %s7
  $region1: #{ensemble_forward_stacked.1} parent=0
    #allocation2 [shape = 'u8[4096]{0}', space=vmem, size = 0x1000, scoped, tag = 'input window, operand 0, single buffered']
    #allocation3 [shape = 's32[2]{0}', space=sflag, size = 0x8, scoped, tag = 'scoped memory for ensemble_forward_stacked.1']
    #allocation4 [shape = 'u8[131072]{0}', space=vmem, size = 0x20000, scoped, tag = 'input window, operand 1']
    #allocation5 [shape = 's32[2]{0}', space=sflag, size = 0x8, scoped, tag = 'scoped memory for ensemble_forward_stacked.1']
    #allocation6 [shape = 'u8[8192]{0}', space=vmem, size = 0x2000, scoped, tag = 'input window, operand 2']
    #allocation7 [shape = 'u8[6291456]{0}', space=vmem, size = 0x600000, scoped, tag = 'input window, operand 3']
    #allocation8 [shape = 's32[2]{0}', space=sflag, size = 0x8, scoped, tag = 'scoped memory for ensemble_forward_stacked.1']
    #allocation9 [shape = 'u8[12288]{0}', space=vmem, size = 0x3000, scoped, tag = 'input window, operand 4']
    #allocation10 [shape = 'u8[12288]{0}', space=vmem, size = 0x3000, scoped, tag = 'input window, operand 5']
    #allocation11 [shape = 's32[2]{0}', space=sflag, size = 0x8, scoped, tag = 'scoped memory for ensemble_forward_stacked.1']
    %11 = vsyncpa [#allocation3], 0
    %12 = vsyncpa [#allocation5], 0
    %s13 = scalar_lea.sflag [#allocation5], 1
    %14 = vsyncpa %s13, 0
    %15 = vsyncpa [#allocation8], 0
    %s16 = scalar_lea.sflag [#allocation8], 1
    %17 = vsyncpa %s16, 0
    %18 = vsyncpa [#allocation11], 0
    %s19 = scalar_lea.sflag [#allocation11], 1
    %20 = vsyncpa %s19, 0
    loop: start=0, step=1, limit=8
    $region2: #{ensemble_forward_stacked.1} parent=1 // loop_pre_header
      _
    $region3: #{ensemble_forward_stacked.1} parent=1 // loop_header
      %s22 = sphi 0, %s26
      %p23 = scmp.ge.s32.totalorder %s22, 8
      %s29 = sphi 0, %s41
      %s30 = sphi 0, %s37
      %s31 = sphi 0, %s29
      %s32 = sphi 0, %s30
      %s33 = sphi 0, %s31
      %s34 = sphi 0, %s32
      %s42 = sphi 0, %s42
      %s44 = sphi 0, %s42
      %s45 = sphi 0, %s44
      %s59 = sphi 0, %s45
      %s65 = sphi 0, %s67
      %s68 = sphi 0, %s65
      %s69 = sphi 0, %s68
      %s85 = sphi 0, %s69
      %s91 = sphi 0, %s93
      %s94 = sphi 0, %s91
      %s95 = sphi 0, %s94
      %s111 = sphi 0, %s95
      %s119 = sphi 0, %s121
      %s122 = sphi 0, %s119
      %s123 = sphi 0, %s122
      %s139 = sphi 0, %s123
      %s147 = sphi 0, %s149
      %s150 = sphi 0, %s147
      %s151 = sphi 0, %s150
      %s167 = sphi 0, %s151
      %s175 = sphi 0, %s177
      %s178 = sphi 0, %s175
      %s179 = sphi 0, %s178
      %s195 = sphi 0, %s179
      %s203 = sphi 0, %s205
      %s206 = sphi 0, %s203
      %s207 = sphi 0, %s206
      %s223 = sphi 0, %s207
    $region4: #{ensemble_forward_stacked.1} parent=1 // loop_header_branch
      %25 = sbr.rel (%p23) target = $region8
    $region5: #{ensemble_forward_stacked.1} parent=1 // loop_body
      %s27 = ssub.s32 %s22, 1
      %s28 = ssub.s32 %s22, 2
      %s35 = sadd.s32 1, %s30
      %p36 = scmp.ge.s32.totalorder %s35, 2
      %s37 = scalar_select %p36, 0, %s35
      %s38 = sadd.s32 1, %s29
      %s39 = scalar_select %p36, %s38, %s29
      %p40 = scmp.ge.s32.totalorder %s39, 3
      %s41 = scalar_select %p40, 0, %s39
      %s43 = sadd.s32 %s42, 1
      %p46 = scmp.eq.s32.totalorder %s22, 5
      %p47 = scmp.ne.s32.totalorder %s42, %s44
      %p48 = scmp.eq.s32.totalorder %s22, 0
      %p49 = por %p47, %p48
      %p50 = scmp.ne.s32.totalorder %s42, %s44
      %p51 = scmp.eq.s32.totalorder %s27, 5
      %p52 = por %p50, %p51
      %p53 = scmp.ne.s32.totalorder %s44, %s45
      %p54 = scmp.eq.s32.totalorder %s27, 0
      %p55 = por %p53, %p54
      %p56 = scmp.ne.s32.totalorder %s44, %s45
      %p57 = scmp.eq.s32.totalorder %s28, 5
      %p58 = por %p56, %p57
      %p60 = scmp.ne.s32.totalorder %s45, %s59
      %p61 = scmp.eq.s32.totalorder %s28, 0
      %p62 = por %p60, %p61
      %s63 = ssub.s32 %s29, %s41
      %p64 = scmp.eq.s32.totalorder %s63, 0
      %s66 = sadd.s32 %s65, 1
      %s67 = scalar_select %p64, %s65, %s66
      %p70 = pneg %p64
      %p71 = scmp.eq.s32.totalorder %s22, 5
      %p72 = por %p70, %p71
      %p73 = scmp.ne.s32.totalorder %s65, %s68
      %p74 = scmp.eq.s32.totalorder %s22, 0
      %p75 = por %p73, %p74
      %p76 = scmp.ne.s32.totalorder %s65, %s68
      %p77 = scmp.eq.s32.totalorder %s27, 5
      %p78 = por %p76, %p77
      %p79 = scmp.ne.s32.totalorder %s68, %s69
      %p80 = scmp.eq.s32.totalorder %s27, 0
      %p81 = por %p79, %p80
      %p82 = scmp.ne.s32.totalorder %s68, %s69
      %p83 = scmp.eq.s32.totalorder %s28, 5
      %p84 = por %p82, %p83
      %p86 = scmp.ne.s32.totalorder %s69, %s85
      %p87 = scmp.eq.s32.totalorder %s28, 0
      %p88 = por %p86, %p87
      %s89 = ssub.s32 %s29, %s41
      %p90 = scmp.eq.s32.totalorder %s89, 0
      %s92 = sadd.s32 %s91, 1
      %s93 = scalar_select %p90, %s91, %s92
      %p96 = pneg %p90
      %p97 = scmp.eq.s32.totalorder %s22, 5
      %p98 = por %p96, %p97
      %p99 = scmp.ne.s32.totalorder %s91, %s94
      %p100 = scmp.eq.s32.totalorder %s22, 0
      %p101 = por %p99, %p100
      %p102 = scmp.ne.s32.totalorder %s91, %s94
      %p103 = scmp.eq.s32.totalorder %s27, 5
      %p104 = por %p102, %p103
      %p105 = scmp.ne.s32.totalorder %s94, %s95
      %p106 = scmp.eq.s32.totalorder %s27, 0
      %p107 = por %p105, %p106
      %p108 = scmp.ne.s32.totalorder %s94, %s95
      %p109 = scmp.eq.s32.totalorder %s28, 5
      %p110 = por %p108, %p109
      %p112 = scmp.ne.s32.totalorder %s95, %s111
      %p113 = scmp.eq.s32.totalorder %s28, 0
      %p114 = por %p112, %p113
      %s115 = ssub.s32 %s29, %s41
      %s116 = ssub.s32 %s30, %s37
      %s117 = sor.u32 %s115, %s116
      %p118 = scmp.eq.s32.totalorder %s117, 0
      %s120 = sadd.s32 %s119, 1
      %s121 = scalar_select %p118, %s119, %s120
      %p124 = pneg %p118
      %p125 = scmp.eq.s32.totalorder %s22, 5
      %p126 = por %p124, %p125
      %p127 = scmp.ne.s32.totalorder %s119, %s122
      %p128 = scmp.eq.s32.totalorder %s22, 0
      %p129 = por %p127, %p128
      %p130 = scmp.ne.s32.totalorder %s119, %s122
      %p131 = scmp.eq.s32.totalorder %s27, 5
      %p132 = por %p130, %p131
      %p133 = scmp.ne.s32.totalorder %s122, %s123
      %p134 = scmp.eq.s32.totalorder %s27, 0
      %p135 = por %p133, %p134
      %p136 = scmp.ne.s32.totalorder %s122, %s123
      %p137 = scmp.eq.s32.totalorder %s28, 5
      %p138 = por %p136, %p137
      %p140 = scmp.ne.s32.totalorder %s123, %s139
      %p141 = scmp.eq.s32.totalorder %s28, 0
      %p142 = por %p140, %p141
      %s143 = ssub.s32 %s29, %s41
      %s144 = ssub.s32 %s30, %s37
      %s145 = sor.u32 %s143, %s144
      %p146 = scmp.eq.s32.totalorder %s145, 0
      %s148 = sadd.s32 %s147, 1
      %s149 = scalar_select %p146, %s147, %s148
      %p152 = pneg %p146
      %p153 = scmp.eq.s32.totalorder %s22, 5
      %p154 = por %p152, %p153
      %p155 = scmp.ne.s32.totalorder %s147, %s150
      %p156 = scmp.eq.s32.totalorder %s22, 0
      %p157 = por %p155, %p156
      %p158 = scmp.ne.s32.totalorder %s147, %s150
      %p159 = scmp.eq.s32.totalorder %s27, 5
      %p160 = por %p158, %p159
      %p161 = scmp.ne.s32.totalorder %s150, %s151
      %p162 = scmp.eq.s32.totalorder %s27, 0
      %p163 = por %p161, %p162
      %p164 = scmp.ne.s32.totalorder %s150, %s151
      %p165 = scmp.eq.s32.totalorder %s28, 5
      %p166 = por %p164, %p165
      %p168 = scmp.ne.s32.totalorder %s151, %s167
      %p169 = scmp.eq.s32.totalorder %s28, 0
      %p170 = por %p168, %p169
      %s171 = ssub.s32 %s29, %s41
      %s172 = ssub.s32 %s30, %s37
      %s173 = sor.u32 %s171, %s172
      %p174 = scmp.eq.s32.totalorder %s173, 0
      %s176 = sadd.s32 %s175, 1
      %s177 = scalar_select %p174, %s175, %s176
      %p180 = pneg %p174
      %p181 = scmp.eq.s32.totalorder %s22, 5
      %p182 = por %p180, %p181
      %p183 = scmp.ne.s32.totalorder %s175, %s178
      %p184 = scmp.eq.s32.totalorder %s22, 0
      %p185 = por %p183, %p184
      %p186 = scmp.ne.s32.totalorder %s175, %s178
      %p187 = scmp.eq.s32.totalorder %s27, 5
      %p188 = por %p186, %p187
      %p189 = scmp.ne.s32.totalorder %s178, %s179
      %p190 = scmp.eq.s32.totalorder %s27, 0
      %p191 = por %p189, %p190
      %p192 = scmp.ne.s32.totalorder %s178, %s179
      %p193 = scmp.eq.s32.totalorder %s28, 5
      %p194 = por %p192, %p193
      %p196 = scmp.ne.s32.totalorder %s179, %s195
      %p197 = scmp.eq.s32.totalorder %s28, 0
      %p198 = por %p196, %p197
      %s199 = ssub.s32 %s29, %s41
      %s200 = ssub.s32 %s30, %s37
      %s201 = sor.u32 %s199, %s200
      %p202 = scmp.eq.s32.totalorder %s201, 0
      %s204 = sadd.s32 %s203, 1
      %s205 = scalar_select %p202, %s203, %s204
      %p208 = pneg %p202
      %p209 = scmp.eq.s32.totalorder %s22, 5
      %p210 = por %p208, %p209
      %p211 = scmp.ne.s32.totalorder %s203, %s206
      %p212 = scmp.eq.s32.totalorder %s22, 0
      %p213 = por %p211, %p212
      %p214 = scmp.ne.s32.totalorder %s203, %s206
      %p215 = scmp.eq.s32.totalorder %s27, 5
      %p216 = por %p214, %p215
      %p217 = scmp.ne.s32.totalorder %s206, %s207
      %p218 = scmp.eq.s32.totalorder %s27, 0
      %p219 = por %p217, %p218
      %p220 = scmp.ne.s32.totalorder %s206, %s207
      %p221 = scmp.eq.s32.totalorder %s28, 5
      %p222 = por %p220, %p221
      %p224 = scmp.ne.s32.totalorder %s207, %s223
      %p225 = scmp.eq.s32.totalorder %s28, 0
      %p226 = por %p224, %p225
      %p227 = scmp.le.s32.totalorder 1, %s22
      %p228 = scmp.lt.s32.totalorder %s22, 7
      %p229 = pnand %p227, %p228
      %p230 = pneg %p229
      // Predicated region
      $region9: #{ensemble_forward_stacked.1} parent=5 // pred_check
        _
      $region10: #{ensemble_forward_stacked.1} parent=5 // pred_check_branch
        %232 = sbr.rel (%p229) target = $region12
      $region11: #{ensemble_forward_stacked.1} parent=5 // pred_region
        %s233 = ssub.s32 %s22, 1
        // Predicated region
        $region13: #{ensemble_forward_stacked.1} parent=11 // pred_check
          %p234 = pneg %p55
        $region14: #{ensemble_forward_stacked.1} parent=11 // pred_check_branch
          %236 = sbr.rel (%p234) target = $region16
        $region15: #{ensemble_forward_stacked.1} parent=11 // pred_region
          %s238 = ssub.s32 128, 128
          %239 = vsyncadd [#allocation3], %s238
          %s241 = sshll.u32 [#allocation2], 4
          %s242 = int_to_ptr.vmem [resolvable:$true] %s241
          %244 = dma.hbm_to_vmem [thread:$0]  %s0, 128, %s242, [#allocation3]
        $region16: #{ensemble_forward_stacked.1} parent=11 // pred_fallthru
          _
      $region12: #{ensemble_forward_stacked.1} parent=5 // pred_fallthru
        _
      %p245 = scmp.lt.s32.totalorder %s22, 6
      // Predicated region
      $region17: #{ensemble_forward_stacked.1} parent=5 // pred_check
        %p246 = pneg %p245
      $region18: #{ensemble_forward_stacked.1} parent=5 // pred_check_branch
        %248 = sbr.rel (%p246) target = $region20
      $region19: #{ensemble_forward_stacked.1} parent=5 // pred_region
        // Predicated region
        $region21: #{ensemble_forward_stacked.1} parent=19 // pred_check
          %p249 = pneg %p75
        $region22: #{ensemble_forward_stacked.1} parent=19 // pred_check_branch
          %251 = sbr.rel (%p249) target = $region24
        $region23: #{ensemble_forward_stacked.1} parent=19 // pred_region
          %s252 = sand.u32 %s22, 1
          %s253 = scalar_lea.sflag [#allocation5], %s252
          %s254 = sand.u32 %s65, 1
          %s255 = smul.addr %s254, 128
          %s256 = scalar_lea.vmem [#allocation4], %s255
          %s258 = ssub.s32 2048, 2048
          %259 = vsyncadd %s253, %s258
          %s260 = smul.addr %s29, 32
          %s261 = smul.addr %s260, 64
          %s262 = scalar_lea.hbm %s1, %s261
          %s263 = sshll.u32 %s256, 4
          %s264 = int_to_ptr.vmem [resolvable:$true] %s263
          %269 = dma.hbm_to_vmem [thread:$0]  %s262, 2048, %s264, %s253, 512, 512, 32
        $region24: #{ensemble_forward_stacked.1} parent=19 // pred_fallthru
          _
        // Predicated region
        $region25: #{ensemble_forward_stacked.1} parent=19 // pred_check
          %p270 = pneg %p101
        $region26: #{ensemble_forward_stacked.1} parent=19 // pred_check_branch
          %272 = sbr.rel (%p270) target = $region28
        $region27: #{ensemble_forward_stacked.1} parent=19 // pred_region
          %s273 = sand.u32 %s22, 1
          %s274 = scalar_lea.sflag [#allocation5], %s273
          %s275 = sand.u32 %s91, 1
          %s276 = smul.addr %s275, 8
          %s277 = scalar_lea.vmem [#allocation6], %s276
          %s279 = ssub.s32 128, 128
          %280 = vsyncadd %s274, %s279
          %s281 = smul.addr %s29, 8
          %s282 = smul.addr %s281, 16
          %s283 = scalar_lea.hbm %s2, %s282
          %s285 = sshll.u32 %s277, 4
          %s286 = int_to_ptr.vmem [resolvable:$true] %s285
          %288 = dma.hbm_to_vmem [thread:$0]  %s283, 128, %s286, %s274
        $region28: #{ensemble_forward_stacked.1} parent=19 // pred_fallthru
          _
        // Predicated region
        $region29: #{ensemble_forward_stacked.1} parent=19 // pred_check
          %p289 = pneg %p129
        $region30: #{ensemble_forward_stacked.1} parent=19 // pred_check_branch
          %291 = sbr.rel (%p289) target = $region32
        $region31: #{ensemble_forward_stacked.1} parent=19 // pred_region
          %s292 = sand.u32 %s22, 1
          %s293 = scalar_lea.sflag [#allocation8], %s292
          %s294 = sand.u32 %s119, 1
          %s295 = smul.addr %s294, 6144
          %s296 = scalar_lea.vmem [#allocation7], %s295
          %s297 = smul.u32 12, %s30
          %s299 = ssub.s32 98304, 98304
          %300 = vsyncadd %s293, %s299
          %s301 = smul.addr %s29, 3072
          %s302 = sadd.s32 %s297, %s301
          %s303 = smul.addr %s302, 64
          %s304 = scalar_lea.hbm %s3, %s303
          %s305 = sshll.u32 %s296, 4
          %s306 = int_to_ptr.vmem [resolvable:$true] %s305
          %311 = dma.hbm_to_vmem [thread:$0]  %s304, 98304, %s306, %s293, 1536, 768, 48
        $region32: #{ensemble_forward_stacked.1} parent=19 // pred_fallthru
          _
        // Predicated region
        $region33: #{ensemble_forward_stacked.1} parent=19 // pred_check
          %p312 = pneg %p157
        $region34: #{ensemble_forward_stacked.1} parent=19 // pred_check_branch
          %314 = sbr.rel (%p312) target = $region36
        $region35: #{ensemble_forward_stacked.1} parent=19 // pred_region
          %s315 = sand.u32 %s22, 1
          %s316 = scalar_lea.sflag [#allocation8], %s315
          %s317 = sand.u32 %s147, 1
          %s318 = smul.addr %s317, 12
          %s319 = scalar_lea.vmem [#allocation9], %s318
          %s320 = smul.u32 12, %s30
          %s322 = ssub.s32 192, 192
          %323 = vsyncadd %s316, %s322
          %s324 = smul.addr %s29, 24
          %s325 = sadd.s32 %s320, %s324
          %s326 = smul.addr %s325, 16
          %s327 = scalar_lea.hbm %s4, %s326
          %s329 = sshll.u32 %s319, 4
          %s330 = int_to_ptr.vmem [resolvable:$true] %s329
          %332 = dma.hbm_to_vmem [thread:$0]  %s327, 192, %s330, %s316
        $region36: #{ensemble_forward_stacked.1} parent=19 // pred_fallthru
          _
        // Predicated region
        $region37: #{ensemble_forward_stacked.1} parent=19 // pred_check
          %p333 = pneg %p185
        $region38: #{ensemble_forward_stacked.1} parent=19 // pred_check_branch
          %335 = sbr.rel (%p333) target = $region40
        $region39: #{ensemble_forward_stacked.1} parent=19 // pred_region
          %s336 = sand.u32 %s175, 1
          %s337 = scalar_lea.sflag [#allocation11], %s336
          %s338 = sand.u32 %s175, 1
          %s339 = smul.addr %s338, 12
          %s340 = scalar_lea.vmem [#allocation10], %s339
          %s341 = smul.u32 12, %s30
          %s343 = ssub.s32 192, 192
          %344 = vsyncadd %s337, %s343
          %s345 = smul.addr %s29, 24
          %s346 = sadd.s32 %s341, %s345
          %s347 = smul.addr %s346, 16
          %s348 = scalar_lea.hbm %s5, %s347
          %s350 = sshll.u32 %s340, 4
          %s351 = int_to_ptr.vmem [resolvable:$true] %s350
          %353 = dma.hbm_to_vmem [thread:$0]  %s348, 192, %s351, %s337
        $region40: #{ensemble_forward_stacked.1} parent=19 // pred_fallthru
          _
      $region20: #{ensemble_forward_stacked.1} parent=5 // pred_fallthru
        _
      %p354 = scmp.le.s32.totalorder 1, %s22
      %p355 = scmp.lt.s32.totalorder %s22, 7
      %p356 = pnand %p354, %p355
      %p357 = pneg %p356
      // Predicated region
      $region41: #{ensemble_forward_stacked.1} parent=5 // pred_check
        _
      $region42: #{ensemble_forward_stacked.1} parent=5 // pred_check_branch
        %359 = sbr.rel (%p356) target = $region44
      $region43: #{ensemble_forward_stacked.1} parent=5 // pred_region
        %s360 = ssub.s32 %s22, 1
        // Predicated region
        $region45: #{ensemble_forward_stacked.1} parent=43 // pred_check
          %p361 = pneg %p55
        $region46: #{ensemble_forward_stacked.1} parent=43 // pred_check_branch
          %363 = sbr.rel (%p361) target = $region48
        $region47: #{ensemble_forward_stacked.1} parent=43 // pred_region
          %364 = dma.done [#allocation3], 128
        $region48: #{ensemble_forward_stacked.1} parent=43 // pred_fallthru
          _
        %s365 = sand.u32 %s27, 1
        %s366 = scalar_lea.sflag [#allocation5], %s365
        %s367 = sand.u32 %s68, 1
        %s368 = smul.addr %s367, 128
        %s369 = scalar_lea.vmem [#allocation4], %s368
        // Predicated region
        $region49: #{ensemble_forward_stacked.1} parent=43 // pred_check
          %p370 = pneg %p81
        $region50: #{ensemble_forward_stacked.1} parent=43 // pred_check_branch
          %372 = sbr.rel (%p370) target = $region52
        $region51: #{ensemble_forward_stacked.1} parent=43 // pred_region
          %373 = dma.done %s366, 2048
        $region52: #{ensemble_forward_stacked.1} parent=43 // pred_fallthru
          _
        %s374 = sand.u32 %s27, 1
        %s375 = scalar_lea.sflag [#allocation5], %s374
        %s376 = sand.u32 %s94, 1
        %s377 = smul.addr %s376, 8
        %s378 = scalar_lea.vmem [#allocation6], %s377
        // Predicated region
        $region53: #{ensemble_forward_stacked.1} parent=43 // pred_check
          %p379 = pneg %p107
        $region54: #{ensemble_forward_stacked.1} parent=43 // pred_check_branch
          %381 = sbr.rel (%p379) target = $region56
        $region55: #{ensemble_forward_stacked.1} parent=43 // pred_region
          %382 = dma.done %s375, 128
        $region56: #{ensemble_forward_stacked.1} parent=43 // pred_fallthru
          _
        %s383 = sand.u32 %s27, 1
        %s384 = scalar_lea.sflag [#allocation8], %s383
        %s385 = sand.u32 %s122, 1
        %s386 = smul.addr %s385, 6144
        %s387 = scalar_lea.vmem [#allocation7], %s386
        // Predicated region
        $region57: #{ensemble_forward_stacked.1} parent=43 // pred_check
          %p388 = pneg %p135
        $region58: #{ensemble_forward_stacked.1} parent=43 // pred_check_branch
          %390 = sbr.rel (%p388) target = $region60
        $region59: #{ensemble_forward_stacked.1} parent=43 // pred_region
          %391 = dma.done %s384, 98304
        $region60: #{ensemble_forward_stacked.1} parent=43 // pred_fallthru
          _
        %s392 = sand.u32 %s27, 1
        %s393 = scalar_lea.sflag [#allocation8], %s392
        %s394 = sand.u32 %s150, 1
        %s395 = smul.addr %s394, 12
        %s396 = scalar_lea.vmem [#allocation9], %s395
        // Predicated region
        $region61: #{ensemble_forward_stacked.1} parent=43 // pred_check
          %p397 = pneg %p163
        $region62: #{ensemble_forward_stacked.1} parent=43 // pred_check_branch
          %399 = sbr.rel (%p397) target = $region64
        $region63: #{ensemble_forward_stacked.1} parent=43 // pred_region
          %400 = dma.done %s393, 192
        $region64: #{ensemble_forward_stacked.1} parent=43 // pred_fallthru
          _
        %s401 = sand.u32 %s178, 1
        %s402 = scalar_lea.sflag [#allocation11], %s401
        %s403 = sand.u32 %s178, 1
        %s404 = smul.addr %s403, 12
        %s405 = scalar_lea.vmem [#allocation10], %s404
        // Predicated region
        $region65: #{ensemble_forward_stacked.1} parent=43 // pred_check
          %p406 = pneg %p191
        $region66: #{ensemble_forward_stacked.1} parent=43 // pred_check_branch
          %408 = sbr.rel (%p406) target = $region68
        $region67: #{ensemble_forward_stacked.1} parent=43 // pred_region
          %409 = dma.done %s402, 192
        $region68: #{ensemble_forward_stacked.1} parent=43 // pred_fallthru
          _
        %p410 = pneg %p55
        %p411 = pneg %p52
        %s412 = sand.u32 %s27, 1
        %s413 = scalar_lea.sflag [#allocation5], %s412
        %s414 = sand.u32 %s68, 1
        %s415 = smul.addr %s414, 128
        %s416 = scalar_lea.vmem [#allocation4], %s415
        %p417 = pneg %p81
        %p418 = pneg %p78
        %s419 = sand.u32 %s27, 1
        %s420 = scalar_lea.sflag [#allocation5], %s419
        %s421 = sand.u32 %s94, 1
        %s422 = smul.addr %s421, 8
        %s423 = scalar_lea.vmem [#allocation6], %s422
        %p424 = pneg %p107
        %p425 = pneg %p104
        %s426 = sand.u32 %s27, 1
        %s427 = scalar_lea.sflag [#allocation8], %s426
        %s428 = sand.u32 %s122, 1
        %s429 = smul.addr %s428, 6144
        %s430 = scalar_lea.vmem [#allocation7], %s429
        %p431 = pneg %p135
        %p432 = pneg %p132
        %s433 = sand.u32 %s27, 1
        %s434 = scalar_lea.sflag [#allocation8], %s433
        %s435 = sand.u32 %s150, 1
        %s436 = smul.addr %s435, 12
        %s437 = scalar_lea.vmem [#allocation9], %s436
        %p438 = pneg %p163
        %p439 = pneg %p160
        %s440 = sand.u32 %s178, 1
        %s441 = scalar_lea.sflag [#allocation11], %s440
        %s442 = sand.u32 %s178, 1
        %s443 = smul.addr %s442, 12
        %s444 = scalar_lea.vmem [#allocation10], %s443
        %p445 = pneg %p191
        %p446 = pneg %p188
        %p447 = pneg %p219
        %p448 = pneg %p216
        %p449 = scmp.lt.s32.totalorder %s31, 2
        %s450 = scalar_select %p449, %s31, 2
        %p451 = scmp.lt.s32.totalorder %s32, 1
        %s452 = scalar_select %p451, %s32, 1
        %s453 = smul.addr %s450, 2
        %s454 = sadd.s32 %s452, %s453
        %s455 = smul.addr %s454, 8
        %s456 = scalar_lea.vmem %s6, %s455
        %s457 = smul.u32 12, %s32
        %s458 = smul.u32 12, %s32
        %s459 = smul.u32 12, %s32
        %p460 = scmp.lt.s32.totalorder %s31, 2
        %s461 = scalar_select %p460, %s31, 2
        %p462 = scmp.lt.s32.totalorder %s32, 1
        %s463 = scalar_select %p462, %s32, 1
        %s464 = smul.addr %s461, 2
        %s465 = sadd.s32 %s463, %s464
        %s466 = smul.addr %s465, 8
        %s467 = scalar_lea.vmem %s6, %s466
        %v469 = vld [vmem:[%s369] sm:$0xff]
        %v470 = vld [vmem:[%s369 + $0x8] sm:$0xff]
        %v471 = vld [vmem:[%s369 + $0x10] sm:$0xff]
        %v472 = vld [vmem:[%s369 + $0x18] sm:$0xff]
        %v473 = vld [vmem:[%s369 + $0x20] sm:$0xff]
        %v474 = vld [vmem:[%s369 + $0x28] sm:$0xff]
        %v475 = vld [vmem:[%s369 + $0x30] sm:$0xff]
        %v476 = vld [vmem:[%s369 + $0x38] sm:$0xff]
        %v477 = vld [vmem:[%s369 + $0x40] sm:$0xff]
        %v478 = vld [vmem:[%s369 + $0x48] sm:$0xff]
        %v479 = vld [vmem:[%s369 + $0x50] sm:$0xff]
        %v480 = vld [vmem:[%s369 + $0x58] sm:$0xff]
        %v481 = vld [vmem:[%s369 + $0x60] sm:$0x77]
        %v482 = vld [vmem:[%s369 + $0x68] sm:$0x77]
        %v483 = vld [vmem:[%s369 + $0x70] sm:$0x77]
        %v484 = vld [vmem:[%s369 + $0x78] sm:$0x77]
        %v485 = vld [vmem:[#allocation2] sm:$0xff]
        %v486 = vpack.c.bf16 %v485, %v485
        %v487 = vld [vmem:[%s378] sm:$0xff]
        %v489 = vlaneseq
        %v490 = vshrl.u32 %v489, 7
        %v491 = vsub.s32 0, %v490
        %v492 = vrot.slane %v487, %v491
        %v493 = vlaneseq
        %v494 = vshrl.u32 %v493, 7
        %v495 = vsub.s32 1, %v494
        %v496 = vrot.slane %v487, %v495
        %v497 = vlaneseq
        %v498 = vshrl.u32 %v497, 7
        %v499 = vsub.s32 2, %v498
        %v500 = vrot.slane %v487, %v499
        %v501 = vlaneseq
        %v502 = vshrl.u32 %v501, 7
        %v503 = vsub.s32 3, %v502
        %v504 = vrot.slane %v487, %v503
        %v505 = vlaneseq
        %v506 = vshrl.u32 %v505, 7
        %v507 = vsub.s32 4, %v506
        %v508 = vrot.slane %v487, %v507
        %v509 = vlaneseq
        %v510 = vshrl.u32 %v509, 7
        %v511 = vsub.s32 5, %v510
        %v512 = vrot.slane %v487, %v511
        %v513 = vlaneseq
        %v514 = vshrl.u32 %v513, 7
        %v515 = vsub.s32 6, %v514
        %v516 = vrot.slane %v487, %v515
        %v517 = vlaneseq
        %v518 = vshrl.u32 %v517, 7
        %v519 = vsub.s32 7, %v518
        %v520 = vrot.slane %v487, %v519
        %v545 = vunpack.c.l.b16 %v469
        %v546 = vunpack.c.h.b16 %v469
        %v547 = vunpack.c.l.b16 %v470
        %v548 = vunpack.c.h.b16 %v470
        %v549 = vunpack.c.l.b16 %v471
        %v550 = vunpack.c.h.b16 %v471
        %v551 = vunpack.c.l.b16 %v472
        %v552 = vunpack.c.h.b16 %v472
        %v553 = vunpack.c.l.b16 %v473
        %v554 = vunpack.c.h.b16 %v473
        %v555 = vunpack.c.l.b16 %v474
        %v556 = vunpack.c.h.b16 %v474
        %v557 = vunpack.c.l.b16 %v475
        %v558 = vunpack.c.h.b16 %v475
        %v559 = vunpack.c.l.b16 %v476
        %v560 = vunpack.c.h.b16 %v476
        %v561 = vunpack.c.l.b16 %v477
        %v562 = vunpack.c.h.b16 %v477
        %v563 = vunpack.c.l.b16 %v478
        %v564 = vunpack.c.h.b16 %v478
        %v565 = vunpack.c.l.b16 %v479
        %v566 = vunpack.c.h.b16 %v479
        %v567 = vunpack.c.l.b16 %v480
        %v568 = vunpack.c.h.b16 %v480
        %v569 = vunpack.c.l.b16 %v481
        %v570 = vunpack.c.h.b16 %v481
        %v571 = vunpack.c.l.b16 %v482
        %v572 = vunpack.c.h.b16 %v482
        %v573 = vunpack.c.l.b16 %v483
        %v574 = vunpack.c.h.b16 %v483
        %v575 = vunpack.c.l.b16 %v484
        %v576 = vunpack.c.h.b16 %v484
        %v577 = vpack.c.b16 %v553, %v545
        %v578 = vpack.c.b16 %v554, %v546
        %v579 = vpack.c.b16 %v555, %v547
        %v580 = vpack.c.b16 %v556, %v548
        %v581 = vpack.c.b16 %v557, %v549
        %v582 = vpack.c.b16 %v558, %v550
        %v583 = vpack.c.b16 %v559, %v551
        %v584 = vpack.c.b16 %v560, %v552
        %v585 = vpack.c.b16 %v569, %v561
        %v586 = vpack.c.b16 %v570, %v562
        %v587 = vpack.c.b16 %v571, %v563
        %v588 = vpack.c.b16 %v572, %v564
        %v589 = vpack.c.b16 %v573, %v565
        %v590 = vpack.c.b16 %v574, %v566
        %v591 = vpack.c.b16 %v575, %v567
        %v592 = vpack.c.b16 %v576, %v568
        %vm601 = vcmask 244736
        %v603 = vsel %vm601, %v486, 0
        %vm605 = vcmask 1046528
        %v607 = vsel %vm605, %v585, 0
        %v610 = vsel %vm605, %v586, 0
        %v613 = vsel %vm605, %v587, 0
        %v616 = vsel %vm605, %v588, 0
        %v619 = vsel %vm605, %v589, 0
        %v622 = vsel %vm605, %v590, 0
        %v625 = vsel %vm605, %v591, 0
        %v628 = vsel %vm605, %v592, 0
        %630 = vmatprep.subr.bf16.mxu0 %v578
        %631 = vmatpush1.bf16.msra.mxu0 %v577
        %632 = vmatprep.subr.bf16.mxu0 %v610
        %633 = vmatpush1.bf16.msra.mxu0 %v607
        %634 = vmatprep.subr.bf16.mxu0 0
        %635 = vmatpush1.bf16.msra.mxu0 0
        %636 = vmatprep.subr.bf16.mxu0 0
        %637 = vmatpush1.bf16.msra.mxu0 0
        %638 = vmatprep.subr.bf16.mxu0 0
        %639 = vmatpush1.bf16.msra.mxu0 0
        %640 = vmatprep.subr.bf16.mxu0 0
        %641 = vmatpush1.bf16.msra.mxu0 0
        %642 = vmatprep.subr.bf16.mxu0 0
        %643 = vmatpush1.bf16.msra.mxu0 0
        %644 = vmatprep.subr.bf16.mxu0 0
        %645 = vmatpush1.bf16.msra.mxu0 0
        %646 = vmatprep.subr.bf16.mxu0 0
        %647 = vmatpush1.bf16.msra.mxu0 0
        %648 = vmatprep.subr.bf16.mxu0 0
        %649 = vmatpush1.bf16.msra.mxu0 0
        %650 = vmatprep.subr.bf16.mxu0 0
        %651 = vmatpush1.bf16.msra.mxu0 0
        %652 = vmatprep.subr.bf16.mxu0 0
        %653 = vmatpush1.bf16.msra.mxu0 0
        %654 = vmatprep.subr.bf16.mxu0 0
        %655 = vmatpush1.bf16.msra.mxu0 0
        %656 = vmatprep.subr.bf16.mxu0 0
        %657 = vmatpush1.bf16.msra.mxu0 0
        %658 = vmatprep.subr.bf16.mxu0 0
        %659 = vmatpush1.bf16.msra.mxu0 0
        %660 = vmatprep.subr.bf16.mxu0 0
        %661 = vmatpush1.bf16.msra.mxu0 0
        %662 = vmatprep.mubr.bf16.mxu0 0
        %663 = vmatmul.mubr.bf16.gmra.mrb[0].mxu0 %v603
        %v664 = vpop.f32.mrb[0].mxu0
        %v665 = vadd.f32 %v492, %v664
        %v666 = vpop.f32.mrb[0].mxu0
        %v667 = vadd.f32 %v496, %v666
        %v668 = vpop.f32.mrb[0].mxu0
        %v669 = vpop.f32.mrb[0].mxu0
        %670 = vdwg.mxu0
        %671 = vmatprep.subr.bf16.mxu0 %v580
        %672 = vmatpush1.bf16.msra.mxu0 %v579
        %673 = vmatprep.subr.bf16.mxu0 %v616
        %674 = vmatpush1.bf16.msra.mxu0 %v613
        %675 = vmatprep.subr.bf16.mxu0 0
        %676 = vmatpush1.bf16.msra.mxu0 0
        %677 = vmatprep.subr.bf16.mxu0 0
        %678 = vmatpush1.bf16.msra.mxu0 0
        %679 = vmatprep.subr.bf16.mxu0 0
        %680 = vmatpush1.bf16.msra.mxu0 0
        %681 = vmatprep.subr.bf16.mxu0 0
        %682 = vmatpush1.bf16.msra.mxu0 0
        %683 = vmatprep.subr.bf16.mxu0 0
        %684 = vmatpush1.bf16.msra.mxu0 0
        %685 = vmatprep.subr.bf16.mxu0 0
        %686 = vmatpush1.bf16.msra.mxu0 0
        %687 = vmatprep.subr.bf16.mxu0 0
        %688 = vmatpush1.bf16.msra.mxu0 0
        %689 = vmatprep.subr.bf16.mxu0 0
        %690 = vmatpush1.bf16.msra.mxu0 0
        %691 = vmatprep.subr.bf16.mxu0 0
        %692 = vmatpush1.bf16.msra.mxu0 0
        %693 = vmatprep.subr.bf16.mxu0 0
        %694 = vmatpush1.bf16.msra.mxu0 0
        %695 = vmatprep.subr.bf16.mxu0 0
        %696 = vmatpush1.bf16.msra.mxu0 0
        %697 = vmatprep.subr.bf16.mxu0 0
        %698 = vmatpush1.bf16.msra.mxu0 0
        %699 = vmatprep.subr.bf16.mxu0 0
        %700 = vmatpush1.bf16.msra.mxu0 0
        %701 = vmatprep.subr.bf16.mxu0 0
        %702 = vmatpush1.bf16.msra.mxu0 0
        %703 = vmatprep.mubr.bf16.mxu0 0
        %704 = vmatmul.mubr.bf16.gmra.mrb[0].mxu0 %v603
        %v705 = vpop.f32.mrb[0].mxu0
        %v706 = vadd.f32 %v500, %v705
        %v707 = vpop.f32.mrb[0].mxu0
        %v708 = vadd.f32 %v504, %v707
        %v709 = vpop.f32.mrb[0].mxu0
        %v710 = vpop.f32.mrb[0].mxu0
        %711 = vdwg.mxu0
        %712 = vmatprep.subr.bf16.mxu0 %v582
        %713 = vmatpush1.bf16.msra.mxu0 %v581
        %714 = vmatprep.subr.bf16.mxu0 %v622
        %715 = vmatpush1.bf16.msra.mxu0 %v619
        %716 = vmatprep.subr.bf16.mxu0 0
        %717 = vmatpush1.bf16.msra.mxu0 0
        %718 = vmatprep.subr.bf16.mxu0 0
        %719 = vmatpush1.bf16.msra.mxu0 0
        %720 = vmatprep.subr.bf16.mxu0 0
        %721 = vmatpush1.bf16.msra.mxu0 0
        %722 = vmatprep.subr.bf16.mxu0 0
        %723 = vmatpush1.bf16.msra.mxu0 0
        %724 = vmatprep.subr.bf16.mxu0 0
        %725 = vmatpush1.bf16.msra.mxu0 0
        %726 = vmatprep.subr.bf16.mxu0 0
        %727 = vmatpush1.bf16.msra.mxu0 0
        %728 = vmatprep.subr.bf16.mxu0 0
        %729 = vmatpush1.bf16.msra.mxu0 0
        %730 = vmatprep.subr.bf16.mxu0 0
        %731 = vmatpush1.bf16.msra.mxu0 0
        %732 = vmatprep.subr.bf16.mxu0 0
        %733 = vmatpush1.bf16.msra.mxu0 0
        %734 = vmatprep.subr.bf16.mxu0 0
        %735 = vmatpush1.bf16.msra.mxu0 0
        %736 = vmatprep.subr.bf16.mxu0 0
        %737 = vmatpush1.bf16.msra.mxu0 0
        %738 = vmatprep.subr.bf16.mxu0 0
        %739 = vmatpush1.bf16.msra.mxu0 0
        %740 = vmatprep.subr.bf16.mxu0 0
        %741 = vmatpush1.bf16.msra.mxu0 0
        %742 = vmatprep.subr.bf16.mxu0 0
        %743 = vmatpush1.bf16.msra.mxu0 0
        %744 = vmatprep.mubr.bf16.mxu0 0
        %745 = vmatmul.mubr.bf16.gmra.mrb[0].mxu0 %v603
        %v746 = vpop.f32.mrb[0].mxu0
        %v747 = vadd.f32 %v508, %v746
        %v748 = vpop.f32.mrb[0].mxu0
        %v749 = vadd.f32 %v512, %v748
        %v750 = vpop.f32.mrb[0].mxu0
        %v751 = vpop.f32.mrb[0].mxu0
        %752 = vdwg.mxu0
        %753 = vmatprep.subr.bf16.mxu0 %v584
        %754 = vmatpush1.bf16.msra.mxu0 %v583
        %755 = vmatprep.subr.bf16.mxu0 %v628
        %756 = vmatpush1.bf16.msra.mxu0 %v625
        %757 = vmatprep.subr.bf16.mxu0 0
        %758 = vmatpush1.bf16.msra.mxu0 0
        %759 = vmatprep.subr.bf16.mxu0 0
        %760 = vmatpush1.bf16.msra.mxu0 0
        %761 = vmatprep.subr.bf16.mxu0 0
        %762 = vmatpush1.bf16.msra.mxu0 0
        %763 = vmatprep.subr.bf16.mxu0 0
        %764 = vmatpush1.bf16.msra.mxu0 0
        %765 = vmatprep.subr.bf16.mxu0 0
        %766 = vmatpush1.bf16.msra.mxu0 0
        %767 = vmatprep.subr.bf16.mxu0 0
        %768 = vmatpush1.bf16.msra.mxu0 0
        %769 = vmatprep.subr.bf16.mxu0 0
        %770 = vmatpush1.bf16.msra.mxu0 0
        %771 = vmatprep.subr.bf16.mxu0 0
        %772 = vmatpush1.bf16.msra.mxu0 0
        %773 = vmatprep.subr.bf16.mxu0 0
        %774 = vmatpush1.bf16.msra.mxu0 0
        %775 = vmatprep.subr.bf16.mxu0 0
        %776 = vmatpush1.bf16.msra.mxu0 0
        %777 = vmatprep.subr.bf16.mxu0 0
        %778 = vmatpush1.bf16.msra.mxu0 0
        %779 = vmatprep.subr.bf16.mxu0 0
        %780 = vmatpush1.bf16.msra.mxu0 0
        %781 = vmatprep.subr.bf16.mxu0 0
        %782 = vmatpush1.bf16.msra.mxu0 0
        %783 = vmatprep.subr.bf16.mxu0 0
        %784 = vmatpush1.bf16.msra.mxu0 0
        %785 = vmatprep.mubr.bf16.mxu0 0
        %786 = vmatmul.mubr.bf16.gmra.mrb[0].mxu0 %v603
        %v787 = vpop.f32.mrb[0].mxu0
        %v788 = vadd.f32 %v516, %v787
        %v789 = vpop.f32.mrb[0].mxu0
        %v790 = vadd.f32 %v520, %v789
        %v791 = vpop.f32.mrb[0].mxu0
        %v792 = vpop.f32.mrb[0].mxu0
        %793 = vdwg.mxu0
        %v794 = vxor.u32 %v665, 2147483648
        %v795 = vxor.u32 %v667, 2147483648
        %v796 = vxor.u32 %v706, 2147483648
        %v797 = vxor.u32 %v708, 2147483648
        %v798 = vxor.u32 %v747, 2147483648
        %v799 = vxor.u32 %v749, 2147483648
        %v800 = vxor.u32 %v788, 2147483648
        %v801 = vxor.u32 %v790, 2147483648
        %v802 = vmul.f32 %v794, 1.442695
        %v803 = vpow.pop %v802
        %v804 = vmul.f32 %v795, 1.442695
        %v805 = vpow.pop %v804
        %v806 = vmul.f32 %v796, 1.442695
        %v807 = vpow.pop %v806
        %v808 = vmul.f32 %v797, 1.442695
        %v809 = vpow.pop %v808
        %v810 = vmul.f32 %v798, 1.442695
        %v811 = vpow.pop %v810
        %v812 = vmul.f32 %v799, 1.442695
        %v813 = vpow.pop %v812
        %v814 = vmul.f32 %v800, 1.442695
        %v815 = vpow.pop %v814
        %v816 = vmul.f32 %v801, 1.442695
        %v817 = vpow.pop %v816
        %v818 = vadd.f32 %v803, 1.0
        %v819 = vadd.f32 %v805, 1.0
        %v820 = vadd.f32 %v807, 1.0
        %v821 = vadd.f32 %v809, 1.0
        %v822 = vadd.f32 %v811, 1.0
        %v823 = vadd.f32 %v813, 1.0
        %v824 = vadd.f32 %v815, 1.0
        %v825 = vadd.f32 %v817, 1.0
        %v826 = vrcp.pop %v818
        %v827 = vmul.f32 1.0, %v826
        %v828 = vrcp.pop %v819
        %v829 = vmul.f32 1.0, %v828
        %v830 = vrcp.pop %v820
        %v831 = vmul.f32 1.0, %v830
        %v832 = vrcp.pop %v821
        %v833 = vmul.f32 1.0, %v832
        %v834 = vrcp.pop %v822
        %v835 = vmul.f32 1.0, %v834
        %v836 = vrcp.pop %v823
        %v837 = vmul.f32 1.0, %v836
        %v838 = vrcp.pop %v824
        %v839 = vmul.f32 1.0, %v838
        %v840 = vrcp.pop %v825
        %v841 = vmul.f32 1.0, %v840
        %v842 = vld [vmem:[%s387] sm:$0xff]
        %v843 = vld [vmem:[%s387 + $0x8] sm:$0xff]
        %v844 = vld [vmem:[%s387 + $0x10] sm:$0xff]
        %v845 = vld [vmem:[%s387 + $0x18] sm:$0xff]
        %v846 = vld [vmem:[%s387 + $0x20] sm:$0xff]
        %v847 = vld [vmem:[%s387 + $0x28] sm:$0xff]
        %v848 = vld [vmem:[%s387 + $0x30] sm:$0xff]
        %v849 = vld [vmem:[%s387 + $0x38] sm:$0xff]
        %v850 = vld [vmem:[%s387 + $0x40] sm:$0xff]
        %v851 = vld [vmem:[%s387 + $0x48] sm:$0xff]
        %v852 = vld [vmem:[%s387 + $0x50] sm:$0xff]
        %v853 = vld [vmem:[%s387 + $0x58] sm:$0xff]
        %v854 = vld [vmem:[%s387 + $0x60] sm:$0xff]
        %v855 = vld [vmem:[%s387 + $0x68] sm:$0xff]
        %v856 = vld [vmem:[%s387 + $0x70] sm:$0xff]
        %v857 = vld [vmem:[%s387 + $0x78] sm:$0xff]
        %v858 = vld [vmem:[%s387 + $0x80] sm:$0xff]
        %v859 = vld [vmem:[%s387 + $0x88] sm:$0xff]
        %v860 = vld [vmem:[%s387 + $0x90] sm:$0xff]
        %v861 = vld [vmem:[%s387 + $0x98] sm:$0xff]
        %v862 = vld [vmem:[%s387 + $0xa0] sm:$0xff]
        %v863 = vld [vmem:[%s387 + $0xa8] sm:$0xff]
        %v864 = vld [vmem:[%s387 + $0xb0] sm:$0xff]
        %v865 = vld [vmem:[%s387 + $0xb8] sm:$0xff]
        %v866 = vld [vmem:[%s387 + $0xc0] sm:$0xff]
        %v867 = vld [vmem:[%s387 + $0xc8] sm:$0xff]
        %v868 = vld [vmem:[%s387 + $0xd0] sm:$0xff]
        %v869 = vld [vmem:[%s387 + $0xd8] sm:$0xff]
        %v870 = vld [vmem:[%s387 + $0xe0] sm:$0xff]
        %v871 = vld [vmem:[%s387 + $0xe8] sm:$0xff]
        %v872 = vld [vmem:[%s387 + $0xf0] sm:$0xff]
        %v873 = vld [vmem:[%s387 + $0xf8] sm:$0xff]
        %v874 = vld [vmem:[%s387 + $0x100] sm:$0xff]
        %v875 = vld [vmem:[%s387 + $0x108] sm:$0xff]
        %v876 = vld [vmem:[%s387 + $0x110] sm:$0xff]
        %v877 = vld [vmem:[%s387 + $0x118] sm:$0xff]
        %v878 = vld [vmem:[%s387 + $0x120] sm:$0xff]
        %v879 = vld [vmem:[%s387 + $0x128] sm:$0xff]
        %v880 = vld [vmem:[%s387 + $0x130] sm:$0xff]
        %v881 = vld [vmem:[%s387 + $0x138] sm:$0xff]
        %v882 = vld [vmem:[%s387 + $0x140] sm:$0xff]
        %v883 = vld [vmem:[%s387 + $0x148] sm:$0xff]
        %v884 = vld [vmem:[%s387 + $0x150] sm:$0xff]
        %v885 = vld [vmem:[%s387 + $0x158] sm:$0xff]
        %v886 = vld [vmem:[%s387 + $0x160] sm:$0xff]
        %v887 = vld [vmem:[%s387 + $0x168] sm:$0xff]
        %v888 = vld [vmem:[%s387 + $0x170] sm:$0xff]
        %v889 = vld [vmem:[%s387 + $0x178] sm:$0xff]
        %v890 = vld [vmem:[%s387 + $0x180] sm:$0xff]
        %v891 = vld [vmem:[%s387 + $0x188] sm:$0xff]
        %v892 = vld [vmem:[%s387 + $0x190] sm:$0xff]
        %v893 = vld [vmem:[%s387 + $0x198] sm:$0xff]
        %v894 = vld [vmem:[%s387 + $0x1a0] sm:$0xff]
        %v895 = vld [vmem:[%s387 + $0x1a8] sm:$0xff]
        %v896 = vld [vmem:[%s387 + $0x1b0] sm:$0xff]
        %v897 = vld [vmem:[%s387 + $0x1b8] sm:$0xff]
        %v898 = vld [vmem:[%s387 + $0x1c0] sm:$0xff]
        %v899 = vld [vmem:[%s387 + $0x1c8] sm:$0xff]
        %v900 = vld [vmem:[%s387 + $0x1d0] sm:$0xff]
        %v901 = vld [vmem:[%s387 + $0x1d8] sm:$0xff]
        %v902 = vld [vmem:[%s387 + $0x1e0] sm:$0xff]
        %v903 = vld [vmem:[%s387 + $0x1e8] sm:$0xff]
        %v904 = vld [vmem:[%s387 + $0x1f0] sm:$0xff]
        %v905 = vld [vmem:[%s387 + $0x1f8] sm:$0xff]
        %v906 = vld [vmem:[%s387 + $0x200] sm:$0xff]
        %v907 = vld [vmem:[%s387 + $0x208] sm:$0xff]
        %v908 = vld [vmem:[%s387 + $0x210] sm:$0xff]
        %v909 = vld [vmem:[%s387 + $0x218] sm:$0xff]
        %v910 = vld [vmem:[%s387 + $0x220] sm:$0xff]
        %v911 = vld [vmem:[%s387 + $0x228] sm:$0xff]
        %v912 = vld [vmem:[%s387 + $0x230] sm:$0xff]
        %v913 = vld [vmem:[%s387 + $0x238] sm:$0xff]
        %v914 = vld [vmem:[%s387 + $0x240] sm:$0xff]
        %v915 = vld [vmem:[%s387 + $0x248] sm:$0xff]
        %v916 = vld [vmem:[%s387 + $0x250] sm:$0xff]
        %v917 = vld [vmem:[%s387 + $0x258] sm:$0xff]
        %v918 = vld [vmem:[%s387 + $0x260] sm:$0xff]
        %v919 = vld [vmem:[%s387 + $0x268] sm:$0xff]
        %v920 = vld [vmem:[%s387 + $0x270] sm:$0xff]
        %v921 = vld [vmem:[%s387 + $0x278] sm:$0xff]
        %v922 = vld [vmem:[%s387 + $0x280] sm:$0xff]
        %v923 = vld [vmem:[%s387 + $0x288] sm:$0xff]
        %v924 = vld [vmem:[%s387 + $0x290] sm:$0xff]
        %v925 = vld [vmem:[%s387 + $0x298] sm:$0xff]
        %v926 = vld [vmem:[%s387 + $0x2a0] sm:$0xff]
        %v927 = vld [vmem:[%s387 + $0x2a8] sm:$0xff]
        %v928 = vld [vmem:[%s387 + $0x2b0] sm:$0xff]
        %v929 = vld [vmem:[%s387 + $0x2b8] sm:$0xff]
        %v930 = vld [vmem:[%s387 + $0x2c0] sm:$0xff]
        %v931 = vld [vmem:[%s387 + $0x2c8] sm:$0xff]
        %v932 = vld [vmem:[%s387 + $0x2d0] sm:$0xff]
        %v933 = vld [vmem:[%s387 + $0x2d8] sm:$0xff]
        %v934 = vld [vmem:[%s387 + $0x2e0] sm:$0xff]
        %v935 = vld [vmem:[%s387 + $0x2e8] sm:$0xff]
        %v936 = vld [vmem:[%s387 + $0x2f0] sm:$0xff]
        %v937 = vld [vmem:[%s387 + $0x2f8] sm:$0xff]
        %v938 = vld [vmem:[%s387 + $0x300] sm:$0xff]
        %v939 = vld [vmem:[%s387 + $0x308] sm:$0xff]
        %v940 = vld [vmem:[%s387 + $0x310] sm:$0xff]
        %v941 = vld [vmem:[%s387 + $0x318] sm:$0xff]
        %v942 = vld [vmem:[%s387 + $0x320] sm:$0xff]
        %v943 = vld [vmem:[%s387 + $0x328] sm:$0xff]
        %v944 = vld [vmem:[%s387 + $0x330] sm:$0xff]
        %v945 = vld [vmem:[%s387 + $0x338] sm:$0xff]
        %v946 = vld [vmem:[%s387 + $0x340] sm:$0xff]
        %v947 = vld [vmem:[%s387 + $0x348] sm:$0xff]
        %v948 = vld [vmem:[%s387 + $0x350] sm:$0xff]
        %v949 = vld [vmem:[%s387 + $0x358] sm:$0xff]
        %v950 = vld [vmem:[%s387 + $0x360] sm:$0xff]
        %v951 = vld [vmem:[%s387 + $0x368] sm:$0xff]
        %v952 = vld [vmem:[%s387 + $0x370] sm:$0xff]
        %v953 = vld [vmem:[%s387 + $0x378] sm:$0xff]
        %v954 = vld [vmem:[%s387 + $0x380] sm:$0xff]
        %v955 = vld [vmem:[%s387 + $0x388] sm:$0xff]
        %v956 = vld [vmem:[%s387 + $0x390] sm:$0xff]
        %v957 = vld [vmem:[%s387 + $0x398] sm:$0xff]
        %v958 = vld [vmem:[%s387 + $0x3a0] sm:$0xff]
        %v959 = vld [vmem:[%s387 + $0x3a8] sm:$0xff]
        %v960 = vld [vmem:[%s387 + $0x3b0] sm:$0xff]
        %v961 = vld [vmem:[%s387 + $0x3b8] sm:$0xff]
        %v962 = vld [vmem:[%s387 + $0x3c0] sm:$0xff]
        %v963 = vld [vmem:[%s387 + $0x3c8] sm:$0xff]
        %v964 = vld [vmem:[%s387 + $0x3d0] sm:$0xff]
        %v965 = vld [vmem:[%s387 + $0x3d8] sm:$0xff]
        %v966 = vld [vmem:[%s387 + $0x3e0] sm:$0xff]
        %v967 = vld [vmem:[%s387 + $0x3e8] sm:$0xff]
        %v968 = vld [vmem:[%s387 + $0x3f0] sm:$0xff]
        %v969 = vld [vmem:[%s387 + $0x3f8] sm:$0xff]
        %v970 = vld [vmem:[%s387 + $0x400] sm:$0xff]
        %v971 = vld [vmem:[%s387 + $0x408] sm:$0xff]
        %v972 = vld [vmem:[%s387 + $0x410] sm:$0xff]
        %v973 = vld [vmem:[%s387 + $0x418] sm:$0xff]
        %v974 = vld [vmem:[%s387 + $0x420] sm:$0xff]
        %v975 = vld [vmem:[%s387 + $0x428] sm:$0xff]
        %v976 = vld [vmem:[%s387 + $0x430] sm:$0xff]
        %v977 = vld [vmem:[%s387 + $0x438] sm:$0xff]
        %v978 = vld [vmem:[%s387 + $0x440] sm:$0xff]
        %v979 = vld [vmem:[%s387 + $0x448] sm:$0xff]
        %v980 = vld [vmem:[%s387 + $0x450] sm:$0xff]
        %v981 = vld [vmem:[%s387 + $0x458] sm:$0xff]
        %v982 = vld [vmem:[%s387 + $0x460] sm:$0xff]
        %v983 = vld [vmem:[%s387 + $0x468] sm:$0xff]
        %v984 = vld [vmem:[%s387 + $0x470] sm:$0xff]
        %v985 = vld [vmem:[%s387 + $0x478] sm:$0xff]
        %v986 = vld [vmem:[%s387 + $0x480] sm:$0xff]
        %v987 = vld [vmem:[%s387 + $0x488] sm:$0xff]
        %v988 = vld [vmem:[%s387 + $0x490] sm:$0xff]
        %v989 = vld [vmem:[%s387 + $0x498] sm:$0xff]
        %v990 = vld [vmem:[%s387 + $0x4a0] sm:$0xff]
        %v991 = vld [vmem:[%s387 + $0x4a8] sm:$0xff]
        %v992 = vld [vmem:[%s387 + $0x4b0] sm:$0xff]
        %v993 = vld [vmem:[%s387 + $0x4b8] sm:$0xff]
        %v994 = vld [vmem:[%s387 + $0x4c0] sm:$0xff]
        %v995 = vld [vmem:[%s387 + $0x4c8] sm:$0xff]
        %v996 = vld [vmem:[%s387 + $0x4d0] sm:$0xff]
        %v997 = vld [vmem:[%s387 + $0x4d8] sm:$0xff]
        %v998 = vld [vmem:[%s387 + $0x4e0] sm:$0xff]
        %v999 = vld [vmem:[%s387 + $0x4e8] sm:$0xff]
        %v1000 = vld [vmem:[%s387 + $0x4f0] sm:$0xff]
        %v1001 = vld [vmem:[%s387 + $0x4f8] sm:$0xff]
        %v1002 = vld [vmem:[%s387 + $0x500] sm:$0xff]
        %v1003 = vld [vmem:[%s387 + $0x508] sm:$0xff]
        %v1004 = vld [vmem:[%s387 + $0x510] sm:$0xff]
        %v1005 = vld [vmem:[%s387 + $0x518] sm:$0xff]
        %v1006 = vld [vmem:[%s387 + $0x520] sm:$0xff]
        %v1007 = vld [vmem:[%s387 + $0x528] sm:$0xff]
        %v1008 = vld [vmem:[%s387 + $0x530] sm:$0xff]
        %v1009 = vld [vmem:[%s387 + $0x538] sm:$0xff]
        %v1010 = vld [vmem:[%s387 + $0x540] sm:$0xff]
        %v1011 = vld [vmem:[%s387 + $0x548] sm:$0xff]
        %v1012 = vld [vmem:[%s387 + $0x550] sm:$0xff]
        %v1013 = vld [vmem:[%s387 + $0x558] sm:$0xff]
        %v1014 = vld [vmem:[%s387 + $0x560] sm:$0xff]
        %v1015 = vld [vmem:[%s387 + $0x568] sm:$0xff]
        %v1016 = vld [vmem:[%s387 + $0x570] sm:$0xff]
        %v1017 = vld [vmem:[%s387 + $0x578] sm:$0xff]
        %v1018 = vld [vmem:[%s387 + $0x580] sm:$0xff]
        %v1019 = vld [vmem:[%s387 + $0x588] sm:$0xff]
        %v1020 = vld [vmem:[%s387 + $0x590] sm:$0xff]
        %v1021 = vld [vmem:[%s387 + $0x598] sm:$0xff]
        %v1022 = vld [vmem:[%s387 + $0x5a0] sm:$0xff]
        %v1023 = vld [vmem:[%s387 + $0x5a8] sm:$0xff]
        %v1024 = vld [vmem:[%s387 + $0x5b0] sm:$0xff]
        %v1025 = vld [vmem:[%s387 + $0x5b8] sm:$0xff]
        %v1026 = vld [vmem:[%s387 + $0x5c0] sm:$0xff]
        %v1027 = vld [vmem:[%s387 + $0x5c8] sm:$0xff]
        %v1028 = vld [vmem:[%s387 + $0x5d0] sm:$0xff]
        %v1029 = vld [vmem:[%s387 + $0x5d8] sm:$0xff]
        %v1030 = vld [vmem:[%s387 + $0x5e0] sm:$0xff]
        %v1031 = vld [vmem:[%s387 + $0x5e8] sm:$0xff]
        %v1032 = vld [vmem:[%s387 + $0x5f0] sm:$0xff]
        %v1033 = vld [vmem:[%s387 + $0x5f8] sm:$0xff]
        %v1034 = vld [vmem:[%s387 + $0x600] sm:$0xff]
        %v1035 = vld [vmem:[%s387 + $0x608] sm:$0xff]
        %v1036 = vld [vmem:[%s387 + $0x610] sm:$0xff]
        %v1037 = vld [vmem:[%s387 + $0x618] sm:$0xff]
        %v1038 = vld [vmem:[%s387 + $0x620] sm:$0xff]
        %v1039 = vld [vmem:[%s387 + $0x628] sm:$0xff]
        %v1040 = vld [vmem:[%s387 + $0x630] sm:$0xff]
        %v1041 = vld [vmem:[%s387 + $0x638] sm:$0xff]
        %v1042 = vld [vmem:[%s387 + $0x640] sm:$0xff]
        %v1043 = vld [vmem:[%s387 + $0x648] sm:$0xff]
        %v1044 = vld [vmem:[%s387 + $0x650] sm:$0xff]
        %v1045 = vld [vmem:[%s387 + $0x658] sm:$0xff]
        %v1046 = vld [vmem:[%s387 + $0x660] sm:$0xff]
        %v1047 = vld [vmem:[%s387 + $0x668] sm:$0xff]
        %v1048 = vld [vmem:[%s387 + $0x670] sm:$0xff]
        %v1049 = vld [vmem:[%s387 + $0x678] sm:$0xff]
        %v1050 = vld [vmem:[%s387 + $0x680] sm:$0xff]
        %v1051 = vld [vmem:[%s387 + $0x688] sm:$0xff]
        %v1052 = vld [vmem:[%s387 + $0x690] sm:$0xff]
        %v1053 = vld [vmem:[%s387 + $0x698] sm:$0xff]
        %v1054 = vld [vmem:[%s387 + $0x6a0] sm:$0xff]
        %v1055 = vld [vmem:[%s387 + $0x6a8] sm:$0xff]
        %v1056 = vld [vmem:[%s387 + $0x6b0] sm:$0xff]
        %v1057 = vld [vmem:[%s387 + $0x6b8] sm:$0xff]
        %v1058 = vld [vmem:[%s387 + $0x6c0] sm:$0xff]
        %v1059 = vld [vmem:[%s387 + $0x6c8] sm:$0xff]
        %v1060 = vld [vmem:[%s387 + $0x6d0] sm:$0xff]
        %v1061 = vld [vmem:[%s387 + $0x6d8] sm:$0xff]
        %v1062 = vld [vmem:[%s387 + $0x6e0] sm:$0xff]
        %v1063 = vld [vmem:[%s387 + $0x6e8] sm:$0xff]
        %v1064 = vld [vmem:[%s387 + $0x6f0] sm:$0xff]
        %v1065 = vld [vmem:[%s387 + $0x6f8] sm:$0xff]
        %v1066 = vld [vmem:[%s387 + $0x700] sm:$0xff]
        %v1067 = vld [vmem:[%s387 + $0x708] sm:$0xff]
        %v1068 = vld [vmem:[%s387 + $0x710] sm:$0xff]
        %v1069 = vld [vmem:[%s387 + $0x718] sm:$0xff]
        %v1070 = vld [vmem:[%s387 + $0x720] sm:$0xff]
        %v1071 = vld [vmem:[%s387 + $0x728] sm:$0xff]
        %v1072 = vld [vmem:[%s387 + $0x730] sm:$0xff]
        %v1073 = vld [vmem:[%s387 + $0x738] sm:$0xff]
        %v1074 = vld [vmem:[%s387 + $0x740] sm:$0xff]
        %v1075 = vld [vmem:[%s387 + $0x748] sm:$0xff]
        %v1076 = vld [vmem:[%s387 + $0x750] sm:$0xff]
        %v1077 = vld [vmem:[%s387 + $0x758] sm:$0xff]
        %v1078 = vld [vmem:[%s387 + $0x760] sm:$0xff]
        %v1079 = vld [vmem:[%s387 + $0x768] sm:$0xff]
        %v1080 = vld [vmem:[%s387 + $0x770] sm:$0xff]
        %v1081 = vld [vmem:[%s387 + $0x778] sm:$0xff]
        %v1082 = vld [vmem:[%s387 + $0x780] sm:$0xff]
        %v1083 = vld [vmem:[%s387 + $0x788] sm:$0xff]
        %v1084 = vld [vmem:[%s387 + $0x790] sm:$0xff]
        %v1085 = vld [vmem:[%s387 + $0x798] sm:$0xff]
        %v1086 = vld [vmem:[%s387 + $0x7a0] sm:$0xff]
        %v1087 = vld [vmem:[%s387 + $0x7a8] sm:$0xff]
        %v1088 = vld [vmem:[%s387 + $0x7b0] sm:$0xff]
        %v1089 = vld [vmem:[%s387 + $0x7b8] sm:$0xff]
        %v1090 = vld [vmem:[%s387 + $0x7c0] sm:$0xff]
        %v1091 = vld [vmem:[%s387 + $0x7c8] sm:$0xff]
        %v1092 = vld [vmem:[%s387 + $0x7d0] sm:$0xff]
        %v1093 = vld [vmem:[%s387 + $0x7d8] sm:$0xff]
        %v1094 = vld [vmem:[%s387 + $0x7e0] sm:$0xff]
        %v1095 = vld [vmem:[%s387 + $0x7e8] sm:$0xff]
        %v1096 = vld [vmem:[%s387 + $0x7f0] sm:$0xff]
        %v1097 = vld [vmem:[%s387 + $0x7f8] sm:$0xff]
        %v1098 = vld [vmem:[%s387 + $0x800] sm:$0xff]
        %v1099 = vld [vmem:[%s387 + $0x808] sm:$0xff]
        %v1100 = vld [vmem:[%s387 + $0x810] sm:$0xff]
        %v1101 = vld [vmem:[%s387 + $0x818] sm:$0xff]
        %v1102 = vld [vmem:[%s387 + $0x820] sm:$0xff]
        %v1103 = vld [vmem:[%s387 + $0x828] sm:$0xff]
        %v1104 = vld [vmem:[%s387 + $0x830] sm:$0xff]
        %v1105 = vld [vmem:[%s387 + $0x838] sm:$0xff]
        %v1106 = vld [vmem:[%s387 + $0x840] sm:$0xff]
        %v1107 = vld [vmem:[%s387 + $0x848] sm:$0xff]
        %v1108 = vld [vmem:[%s387 + $0x850] sm:$0xff]
        %v1109 = vld [vmem:[%s387 + $0x858] sm:$0xff]
        %v1110 = vld [vmem:[%s387 + $0x860] sm:$0xff]
        %v1111 = vld [vmem:[%s387 + $0x868] sm:$0xff]
        %v1112 = vld [vmem:[%s387 + $0x870] sm:$0xff]
        %v1113 = vld [vmem:[%s387 + $0x878] sm:$0xff]
        %v1114 = vld [vmem:[%s387 + $0x880] sm:$0xff]
        %v1115 = vld [vmem:[%s387 + $0x888] sm:$0xff]
        %v1116 = vld [vmem:[%s387 + $0x890] sm:$0xff]
        %v1117 = vld [vmem:[%s387 + $0x898] sm:$0xff]
        %v1118 = vld [vmem:[%s387 + $0x8a0] sm:$0xff]
        %v1119 = vld [vmem:[%s387 + $0x8a8] sm:$0xff]
        %v1120 = vld [vmem:[%s387 + $0x8b0] sm:$0xff]
        %v1121 = vld [vmem:[%s387 + $0x8b8] sm:$0xff]
        %v1122 = vld [vmem:[%s387 + $0x8c0] sm:$0xff]
        %v1123 = vld [vmem:[%s387 + $0x8c8] sm:$0xff]
        %v1124 = vld [vmem:[%s387 + $0x8d0] sm:$0xff]
        %v1125 = vld [vmem:[%s387 + $0x8d8] sm:$0xff]
        %v1126 = vld [vmem:[%s387 + $0x8e0] sm:$0xff]
        %v1127 = vld [vmem:[%s387 + $0x8e8] sm:$0xff]
        %v1128 = vld [vmem:[%s387 + $0x8f0] sm:$0xff]
        %v1129 = vld [vmem:[%s387 + $0x8f8] sm:$0xff]
        %v1130 = vld [vmem:[%s387 + $0x900] sm:$0xff]
        %v1131 = vld [vmem:[%s387 + $0x908] sm:$0xff]
        %v1132 = vld [vmem:[%s387 + $0x910] sm:$0xff]
        %v1133 = vld [vmem:[%s387 + $0x918] sm:$0xff]
        %v1134 = vld [vmem:[%s387 + $0x920] sm:$0xff]
        %v1135 = vld [vmem:[%s387 + $0x928] sm:$0xff]
        %v1136 = vld [vmem:[%s387 + $0x930] sm:$0xff]
        %v1137 = vld [vmem:[%s387 + $0x938] sm:$0xff]
        %v1138 = vld [vmem:[%s387 + $0x940] sm:$0xff]
        %v1139 = vld [vmem:[%s387 + $0x948] sm:$0xff]
        %v1140 = vld [vmem:[%s387 + $0x950] sm:$0xff]
        %v1141 = vld [vmem:[%s387 + $0x958] sm:$0xff]
        %v1142 = vld [vmem:[%s387 + $0x960] sm:$0xff]
        %v1143 = vld [vmem:[%s387 + $0x968] sm:$0xff]
        %v1144 = vld [vmem:[%s387 + $0x970] sm:$0xff]
        %v1145 = vld [vmem:[%s387 + $0x978] sm:$0xff]
        %v1146 = vld [vmem:[%s387 + $0x980] sm:$0xff]
        %v1147 = vld [vmem:[%s387 + $0x988] sm:$0xff]
        %v1148 = vld [vmem:[%s387 + $0x990] sm:$0xff]
        %v1149 = vld [vmem:[%s387 + $0x998] sm:$0xff]
        %v1150 = vld [vmem:[%s387 + $0x9a0] sm:$0xff]
        %v1151 = vld [vmem:[%s387 + $0x9a8] sm:$0xff]
        %v1152 = vld [vmem:[%s387 + $0x9b0] sm:$0xff]
        %v1153 = vld [vmem:[%s387 + $0x9b8] sm:$0xff]
        %v1154 = vld [vmem:[%s387 + $0x9c0] sm:$0xff]
        %v1155 = vld [vmem:[%s387 + $0x9c8] sm:$0xff]
        %v1156 = vld [vmem:[%s387 + $0x9d0] sm:$0xff]
        %v1157 = vld [vmem:[%s387 + $0x9d8] sm:$0xff]
        %v1158 = vld [vmem:[%s387 + $0x9e0] sm:$0xff]
        %v1159 = vld [vmem:[%s387 + $0x9e8] sm:$0xff]
        %v1160 = vld [vmem:[%s387 + $0x9f0] sm:$0xff]
        %v1161 = vld [vmem:[%s387 + $0x9f8] sm:$0xff]
        %v1162 = vld [vmem:[%s387 + $0xa00] sm:$0xff]
        %v1163 = vld [vmem:[%s387 + $0xa08] sm:$0xff]
        %v1164 = vld [vmem:[%s387 + $0xa10] sm:$0xff]
        %v1165 = vld [vmem:[%s387 + $0xa18] sm:$0xff]
        %v1166 = vld [vmem:[%s387 + $0xa20] sm:$0xff]
        %v1167 = vld [vmem:[%s387 + $0xa28] sm:$0xff]
        %v1168 = vld [vmem:[%s387 + $0xa30] sm:$0xff]
        %v1169 = vld [vmem:[%s387 + $0xa38] sm:$0xff]
        %v1170 = vld [vmem:[%s387 + $0xa40] sm:$0xff]
        %v1171 = vld [vmem:[%s387 + $0xa48] sm:$0xff]
        %v1172 = vld [vmem:[%s387 + $0xa50] sm:$0xff]
        %v1173 = vld [vmem:[%s387 + $0xa58] sm:$0xff]
        %v1174 = vld [vmem:[%s387 + $0xa60] sm:$0xff]
        %v1175 = vld [vmem:[%s387 + $0xa68] sm:$0xff]
        %v1176 = vld [vmem:[%s387 + $0xa70] sm:$0xff]
        %v1177 = vld [vmem:[%s387 + $0xa78] sm:$0xff]
        %v1178 = vld [vmem:[%s387 + $0xa80] sm:$0xff]
        %v1179 = vld [vmem:[%s387 + $0xa88] sm:$0xff]
        %v1180 = vld [vmem:[%s387 + $0xa90] sm:$0xff]
        %v1181 = vld [vmem:[%s387 + $0xa98] sm:$0xff]
        %v1182 = vld [vmem:[%s387 + $0xaa0] sm:$0xff]
        %v1183 = vld [vmem:[%s387 + $0xaa8] sm:$0xff]
        %v1184 = vld [vmem:[%s387 + $0xab0] sm:$0xff]
        %v1185 = vld [vmem:[%s387 + $0xab8] sm:$0xff]
        %v1186 = vld [vmem:[%s387 + $0xac0] sm:$0xff]
        %v1187 = vld [vmem:[%s387 + $0xac8] sm:$0xff]
        %v1188 = vld [vmem:[%s387 + $0xad0] sm:$0xff]
        %v1189 = vld [vmem:[%s387 + $0xad8] sm:$0xff]
        %v1190 = vld [vmem:[%s387 + $0xae0] sm:$0xff]
        %v1191 = vld [vmem:[%s387 + $0xae8] sm:$0xff]
        %v1192 = vld [vmem:[%s387 + $0xaf0] sm:$0xff]
        %v1193 = vld [vmem:[%s387 + $0xaf8] sm:$0xff]
        %v1194 = vld [vmem:[%s387 + $0xb00] sm:$0xff]
        %v1195 = vld [vmem:[%s387 + $0xb08] sm:$0xff]
        %v1196 = vld [vmem:[%s387 + $0xb10] sm:$0xff]
        %v1197 = vld [vmem:[%s387 + $0xb18] sm:$0xff]
        %v1198 = vld [vmem:[%s387 + $0xb20] sm:$0xff]
        %v1199 = vld [vmem:[%s387 + $0xb28] sm:$0xff]
        %v1200 = vld [vmem:[%s387 + $0xb30] sm:$0xff]
        %v1201 = vld [vmem:[%s387 + $0xb38] sm:$0xff]
        %v1202 = vld [vmem:[%s387 + $0xb40] sm:$0xff]
        %v1203 = vld [vmem:[%s387 + $0xb48] sm:$0xff]
        %v1204 = vld [vmem:[%s387 + $0xb50] sm:$0xff]
        %v1205 = vld [vmem:[%s387 + $0xb58] sm:$0xff]
        %v1206 = vld [vmem:[%s387 + $0xb60] sm:$0xff]
        %v1207 = vld [vmem:[%s387 + $0xb68] sm:$0xff]
        %v1208 = vld [vmem:[%s387 + $0xb70] sm:$0xff]
        %v1209 = vld [vmem:[%s387 + $0xb78] sm:$0xff]
        %v1210 = vld [vmem:[%s387 + $0xb80] sm:$0xff]
        %v1211 = vld [vmem:[%s387 + $0xb88] sm:$0xff]
        %v1212 = vld [vmem:[%s387 + $0xb90] sm:$0xff]
        %v1213 = vld [vmem:[%s387 + $0xb98] sm:$0xff]
        %v1214 = vld [vmem:[%s387 + $0xba0] sm:$0xff]
        %v1215 = vld [vmem:[%s387 + $0xba8] sm:$0xff]
        %v1216 = vld [vmem:[%s387 + $0xbb0] sm:$0xff]
        %v1217 = vld [vmem:[%s387 + $0xbb8] sm:$0xff]
        %v1218 = vld [vmem:[%s387 + $0xbc0] sm:$0xff]
        %v1219 = vld [vmem:[%s387 + $0xbc8] sm:$0xff]
        %v1220 = vld [vmem:[%s387 + $0xbd0] sm:$0xff]
        %v1221 = vld [vmem:[%s387 + $0xbd8] sm:$0xff]
        %v1222 = vld [vmem:[%s387 + $0xbe0] sm:$0xff]
        %v1223 = vld [vmem:[%s387 + $0xbe8] sm:$0xff]
        %v1224 = vld [vmem:[%s387 + $0xbf0] sm:$0xff]
        %v1225 = vld [vmem:[%s387 + $0xbf8] sm:$0xff]
        %v1226 = vld [vmem:[%s387 + $0xc00] sm:$0xff]
        %v1227 = vld [vmem:[%s387 + $0xc08] sm:$0xff]
        %v1228 = vld [vmem:[%s387 + $0xc10] sm:$0xff]
        %v1229 = vld [vmem:[%s387 + $0xc18] sm:$0xff]
        %v1230 = vld [vmem:[%s387 + $0xc20] sm:$0xff]
        %v1231 = vld [vmem:[%s387 + $0xc28] sm:$0xff]
        %v1232 = vld [vmem:[%s387 + $0xc30] sm:$0xff]
        %v1233 = vld [vmem:[%s387 + $0xc38] sm:$0xff]
        %v1234 = vld [vmem:[%s387 + $0xc40] sm:$0xff]
        %v1235 = vld [vmem:[%s387 + $0xc48] sm:$0xff]
        %v1236 = vld [vmem:[%s387 + $0xc50] sm:$0xff]
        %v1237 = vld [vmem:[%s387 + $0xc58] sm:$0xff]
        %v1238 = vld [vmem:[%s387 + $0xc60] sm:$0xff]
        %v1239 = vld [vmem:[%s387 + $0xc68] sm:$0xff]
        %v1240 = vld [vmem:[%s387 + $0xc70] sm:$0xff]
        %v1241 = vld [vmem:[%s387 + $0xc78] sm:$0xff]
        %v1242 = vld [vmem:[%s387 + $0xc80] sm:$0xff]
        %v1243 = vld [vmem:[%s387 + $0xc88] sm:$0xff]
        %v1244 = vld [vmem:[%s387 + $0xc90] sm:$0xff]
        %v1245 = vld [vmem:[%s387 + $0xc98] sm:$0xff]
        %v1246 = vld [vmem:[%s387 + $0xca0] sm:$0xff]
        %v1247 = vld [vmem:[%s387 + $0xca8] sm:$0xff]
        %v1248 = vld [vmem:[%s387 + $0xcb0] sm:$0xff]
        %v1249 = vld [vmem:[%s387 + $0xcb8] sm:$0xff]
        %v1250 = vld [vmem:[%s387 + $0xcc0] sm:$0xff]
        %v1251 = vld [vmem:[%s387 + $0xcc8] sm:$0xff]
        %v1252 = vld [vmem:[%s387 + $0xcd0] sm:$0xff]
        %v1253 = vld [vmem:[%s387 + $0xcd8] sm:$0xff]
        %v1254 = vld [vmem:[%s387 + $0xce0] sm:$0xff]
        %v1255 = vld [vmem:[%s387 + $0xce8] sm:$0xff]
        %v1256 = vld [vmem:[%s387 + $0xcf0] sm:$0xff]
        %v1257 = vld [vmem:[%s387 + $0xcf8] sm:$0xff]
        %v1258 = vld [vmem:[%s387 + $0xd00] sm:$0xff]
        %v1259 = vld [vmem:[%s387 + $0xd08] sm:$0xff]
        %v1260 = vld [vmem:[%s387 + $0xd10] sm:$0xff]
        %v1261 = vld [vmem:[%s387 + $0xd18] sm:$0xff]
        %v1262 = vld [vmem:[%s387 + $0xd20] sm:$0xff]
        %v1263 = vld [vmem:[%s387 + $0xd28] sm:$0xff]
        %v1264 = vld [vmem:[%s387 + $0xd30] sm:$0xff]
        %v1265 = vld [vmem:[%s387 + $0xd38] sm:$0xff]
        %v1266 = vld [vmem:[%s387 + $0xd40] sm:$0xff]
        %v1267 = vld [vmem:[%s387 + $0xd48] sm:$0xff]
        %v1268 = vld [vmem:[%s387 + $0xd50] sm:$0xff]
        %v1269 = vld [vmem:[%s387 + $0xd58] sm:$0xff]
        %v1270 = vld [vmem:[%s387 + $0xd60] sm:$0xff]
        %v1271 = vld [vmem:[%s387 + $0xd68] sm:$0xff]
        %v1272 = vld [vmem:[%s387 + $0xd70] sm:$0xff]
        %v1273 = vld [vmem:[%s387 + $0xd78] sm:$0xff]
        %v1274 = vld [vmem:[%s387 + $0xd80] sm:$0xff]
        %v1275 = vld [vmem:[%s387 + $0xd88] sm:$0xff]
        %v1276 = vld [vmem:[%s387 + $0xd90] sm:$0xff]
        %v1277 = vld [vmem:[%s387 + $0xd98] sm:$0xff]
        %v1278 = vld [vmem:[%s387 + $0xda0] sm:$0xff]
        %v1279 = vld [vmem:[%s387 + $0xda8] sm:$0xff]
        %v1280 = vld [vmem:[%s387 + $0xdb0] sm:$0xff]
        %v1281 = vld [vmem:[%s387 + $0xdb8] sm:$0xff]
        %v1282 = vld [vmem:[%s387 + $0xdc0] sm:$0xff]
        %v1283 = vld [vmem:[%s387 + $0xdc8] sm:$0xff]
        %v1284 = vld [vmem:[%s387 + $0xdd0] sm:$0xff]
        %v1285 = vld [vmem:[%s387 + $0xdd8] sm:$0xff]
        %v1286 = vld [vmem:[%s387 + $0xde0] sm:$0xff]
        %v1287 = vld [vmem:[%s387 + $0xde8] sm:$0xff]
        %v1288 = vld [vmem:[%s387 + $0xdf0] sm:$0xff]
        %v1289 = vld [vmem:[%s387 + $0xdf8] sm:$0xff]
        %v1290 = vld [vmem:[%s387 + $0xe00] sm:$0xff]
        %v1291 = vld [vmem:[%s387 + $0xe08] sm:$0xff]
        %v1292 = vld [vmem:[%s387 + $0xe10] sm:$0xff]
        %v1293 = vld [vmem:[%s387 + $0xe18] sm:$0xff]
        %v1294 = vld [vmem:[%s387 + $0xe20] sm:$0xff]
        %v1295 = vld [vmem:[%s387 + $0xe28] sm:$0xff]
        %v1296 = vld [vmem:[%s387 + $0xe30] sm:$0xff]
        %v1297 = vld [vmem:[%s387 + $0xe38] sm:$0xff]
        %v1298 = vld [vmem:[%s387 + $0xe40] sm:$0xff]
        %v1299 = vld [vmem:[%s387 + $0xe48] sm:$0xff]
        %v1300 = vld [vmem:[%s387 + $0xe50] sm:$0xff]
        %v1301 = vld [vmem:[%s387 + $0xe58] sm:$0xff]
        %v1302 = vld [vmem:[%s387 + $0xe60] sm:$0xff]
        %v1303 = vld [vmem:[%s387 + $0xe68] sm:$0xff]
        %v1304 = vld [vmem:[%s387 + $0xe70] sm:$0xff]
        %v1305 = vld [vmem:[%s387 + $0xe78] sm:$0xff]
        %v1306 = vld [vmem:[%s387 + $0xe80] sm:$0xff]
        %v1307 = vld [vmem:[%s387 + $0xe88] sm:$0xff]
        %v1308 = vld [vmem:[%s387 + $0xe90] sm:$0xff]
        %v1309 = vld [vmem:[%s387 + $0xe98] sm:$0xff]
        %v1310 = vld [vmem:[%s387 + $0xea0] sm:$0xff]
        %v1311 = vld [vmem:[%s387 + $0xea8] sm:$0xff]
        %v1312 = vld [vmem:[%s387 + $0xeb0] sm:$0xff]
        %v1313 = vld [vmem:[%s387 + $0xeb8] sm:$0xff]
        %v1314 = vld [vmem:[%s387 + $0xec0] sm:$0xff]
        %v1315 = vld [vmem:[%s387 + $0xec8] sm:$0xff]
        %v1316 = vld [vmem:[%s387 + $0xed0] sm:$0xff]
        %v1317 = vld [vmem:[%s387 + $0xed8] sm:$0xff]
        %v1318 = vld [vmem:[%s387 + $0xee0] sm:$0xff]
        %v1319 = vld [vmem:[%s387 + $0xee8] sm:$0xff]
        %v1320 = vld [vmem:[%s387 + $0xef0] sm:$0xff]
        %v1321 = vld [vmem:[%s387 + $0xef8] sm:$0xff]
        %v1322 = vld [vmem:[%s387 + $0xf00] sm:$0xff]
        %v1323 = vld [vmem:[%s387 + $0xf08] sm:$0xff]
        %v1324 = vld [vmem:[%s387 + $0xf10] sm:$0xff]
        %v1325 = vld [vmem:[%s387 + $0xf18] sm:$0xff]
        %v1326 = vld [vmem:[%s387 + $0xf20] sm:$0xff]
        %v1327 = vld [vmem:[%s387 + $0xf28] sm:$0xff]
        %v1328 = vld [vmem:[%s387 + $0xf30] sm:$0xff]
        %v1329 = vld [vmem:[%s387 + $0xf38] sm:$0xff]
        %v1330 = vld [vmem:[%s387 + $0xf40] sm:$0xff]
        %v1331 = vld [vmem:[%s387 + $0xf48] sm:$0xff]
        %v1332 = vld [vmem:[%s387 + $0xf50] sm:$0xff]
        %v1333 = vld [vmem:[%s387 + $0xf58] sm:$0xff]
        %v1334 = vld [vmem:[%s387 + $0xf60] sm:$0xff]
        %v1335 = vld [vmem:[%s387 + $0xf68] sm:$0xff]
        %v1336 = vld [vmem:[%s387 + $0xf70] sm:$0xff]
        %v1337 = vld [vmem:[%s387 + $0xf78] sm:$0xff]
        %v1338 = vld [vmem:[%s387 + $0xf80] sm:$0xff]
        %v1339 = vld [vmem:[%s387 + $0xf88] sm:$0xff]
        %v1340 = vld [vmem:[%s387 + $0xf90] sm:$0xff]
        %v1341 = vld [vmem:[%s387 + $0xf98] sm:$0xff]
        %v1342 = vld [vmem:[%s387 + $0xfa0] sm:$0xff]
        %v1343 = vld [vmem:[%s387 + $0xfa8] sm:$0xff]
        %v1344 = vld [vmem:[%s387 + $0xfb0] sm:$0xff]
        %v1345 = vld [vmem:[%s387 + $0xfb8] sm:$0xff]
        %v1346 = vld [vmem:[%s387 + $0xfc0] sm:$0xff]
        %v1347 = vld [vmem:[%s387 + $0xfc8] sm:$0xff]
        %v1348 = vld [vmem:[%s387 + $0xfd0] sm:$0xff]
        %v1349 = vld [vmem:[%s387 + $0xfd8] sm:$0xff]
        %v1350 = vld [vmem:[%s387 + $0xfe0] sm:$0xff]
        %v1351 = vld [vmem:[%s387 + $0xfe8] sm:$0xff]
        %v1352 = vld [vmem:[%s387 + $0xff0] sm:$0xff]
        %v1353 = vld [vmem:[%s387 + $0xff8] sm:$0xff]
        %v1354 = vld [vmem:[%s387 + $0x1000] sm:$0xff]
        %v1355 = vld [vmem:[%s387 + $0x1008] sm:$0xff]
        %v1356 = vld [vmem:[%s387 + $0x1010] sm:$0xff]
        %v1357 = vld [vmem:[%s387 + $0x1018] sm:$0xff]
        %v1358 = vld [vmem:[%s387 + $0x1020] sm:$0xff]
        %v1359 = vld [vmem:[%s387 + $0x1028] sm:$0xff]
        %v1360 = vld [vmem:[%s387 + $0x1030] sm:$0xff]
        %v1361 = vld [vmem:[%s387 + $0x1038] sm:$0xff]
        %v1362 = vld [vmem:[%s387 + $0x1040] sm:$0xff]
        %v1363 = vld [vmem:[%s387 + $0x1048] sm:$0xff]
        %v1364 = vld [vmem:[%s387 + $0x1050] sm:$0xff]
        %v1365 = vld [vmem:[%s387 + $0x1058] sm:$0xff]
        %v1366 = vld [vmem:[%s387 + $0x1060] sm:$0xff]
        %v1367 = vld [vmem:[%s387 + $0x1068] sm:$0xff]
        %v1368 = vld [vmem:[%s387 + $0x1070] sm:$0xff]
        %v1369 = vld [vmem:[%s387 + $0x1078] sm:$0xff]
        %v1370 = vld [vmem:[%s387 + $0x1080] sm:$0xff]
        %v1371 = vld [vmem:[%s387 + $0x1088] sm:$0xff]
        %v1372 = vld [vmem:[%s387 + $0x1090] sm:$0xff]
        %v1373 = vld [vmem:[%s387 + $0x1098] sm:$0xff]
        %v1374 = vld [vmem:[%s387 + $0x10a0] sm:$0xff]
        %v1375 = vld [vmem:[%s387 + $0x10a8] sm:$0xff]
        %v1376 = vld [vmem:[%s387 + $0x10b0] sm:$0xff]
        %v1377 = vld [vmem:[%s387 + $0x10b8] sm:$0xff]
        %v1378 = vld [vmem:[%s387 + $0x10c0] sm:$0xff]
        %v1379 = vld [vmem:[%s387 + $0x10c8] sm:$0xff]
        %v1380 = vld [vmem:[%s387 + $0x10d0] sm:$0xff]
        %v1381 = vld [vmem:[%s387 + $0x10d8] sm:$0xff]
        %v1382 = vld [vmem:[%s387 + $0x10e0] sm:$0xff]
        %v1383 = vld [vmem:[%s387 + $0x10e8] sm:$0xff]
        %v1384 = vld [vmem:[%s387 + $0x10f0] sm:$0xff]
        %v1385 = vld [vmem:[%s387 + $0x10f8] sm:$0xff]
        %v1386 = vld [vmem:[%s387 + $0x1100] sm:$0xff]
        %v1387 = vld [vmem:[%s387 + $0x1108] sm:$0xff]
        %v1388 = vld [vmem:[%s387 + $0x1110] sm:$0xff]
        %v1389 = vld [vmem:[%s387 + $0x1118] sm:$0xff]
        %v1390 = vld [vmem:[%s387 + $0x1120] sm:$0xff]
        %v1391 = vld [vmem:[%s387 + $0x1128] sm:$0xff]
        %v1392 = vld [vmem:[%s387 + $0x1130] sm:$0xff]
        %v1393 = vld [vmem:[%s387 + $0x1138] sm:$0xff]
        %v1394 = vld [vmem:[%s387 + $0x1140] sm:$0xff]
        %v1395 = vld [vmem:[%s387 + $0x1148] sm:$0xff]
        %v1396 = vld [vmem:[%s387 + $0x1150] sm:$0xff]
        %v1397 = vld [vmem:[%s387 + $0x1158] sm:$0xff]
        %v1398 = vld [vmem:[%s387 + $0x1160] sm:$0xff]
        %v1399 = vld [vmem:[%s387 + $0x1168] sm:$0xff]
        %v1400 = vld [vmem:[%s387 + $0x1170] sm:$0xff]
        %v1401 = vld [vmem:[%s387 + $0x1178] sm:$0xff]
        %v1402 = vld [vmem:[%s387 + $0x1180] sm:$0xff]
        %v1403 = vld [vmem:[%s387 + $0x1188] sm:$0xff]
        %v1404 = vld [vmem:[%s387 + $0x1190] sm:$0xff]
        %v1405 = vld [vmem:[%s387 + $0x1198] sm:$0xff]
        %v1406 = vld [vmem:[%s387 + $0x11a0] sm:$0xff]
        %v1407 = vld [vmem:[%s387 + $0x11a8] sm:$0xff]
        %v1408 = vld [vmem:[%s387 + $0x11b0] sm:$0xff]
        %v1409 = vld [vmem:[%s387 + $0x11b8] sm:$0xff]
        %v1410 = vld [vmem:[%s387 + $0x11c0] sm:$0xff]
        %v1411 = vld [vmem:[%s387 + $0x11c8] sm:$0xff]
        %v1412 = vld [vmem:[%s387 + $0x11d0] sm:$0xff]
        %v1413 = vld [vmem:[%s387 + $0x11d8] sm:$0xff]
        %v1414 = vld [vmem:[%s387 + $0x11e0] sm:$0xff]
        %v1415 = vld [vmem:[%s387 + $0x11e8] sm:$0xff]
        %v1416 = vld [vmem:[%s387 + $0x11f0] sm:$0xff]
        %v1417 = vld [vmem:[%s387 + $0x11f8] sm:$0xff]
        %v1418 = vld [vmem:[%s387 + $0x1200] sm:$0xff]
        %v1419 = vld [vmem:[%s387 + $0x1208] sm:$0xff]
        %v1420 = vld [vmem:[%s387 + $0x1210] sm:$0xff]
        %v1421 = vld [vmem:[%s387 + $0x1218] sm:$0xff]
        %v1422 = vld [vmem:[%s387 + $0x1220] sm:$0xff]
        %v1423 = vld [vmem:[%s387 + $0x1228] sm:$0xff]
        %v1424 = vld [vmem:[%s387 + $0x1230] sm:$0xff]
        %v1425 = vld [vmem:[%s387 + $0x1238] sm:$0xff]
        %v1426 = vld [vmem:[%s387 + $0x1240] sm:$0xff]
        %v1427 = vld [vmem:[%s387 + $0x1248] sm:$0xff]
        %v1428 = vld [vmem:[%s387 + $0x1250] sm:$0xff]
        %v1429 = vld [vmem:[%s387 + $0x1258] sm:$0xff]
        %v1430 = vld [vmem:[%s387 + $0x1260] sm:$0xff]
        %v1431 = vld [vmem:[%s387 + $0x1268] sm:$0xff]
        %v1432 = vld [vmem:[%s387 + $0x1270] sm:$0xff]
        %v1433 = vld [vmem:[%s387 + $0x1278] sm:$0xff]
        %v1434 = vld [vmem:[%s387 + $0x1280] sm:$0xff]
        %v1435 = vld [vmem:[%s387 + $0x1288] sm:$0xff]
        %v1436 = vld [vmem:[%s387 + $0x1290] sm:$0xff]
        %v1437 = vld [vmem:[%s387 + $0x1298] sm:$0xff]
        %v1438 = vld [vmem:[%s387 + $0x12a0] sm:$0xff]
        %v1439 = vld [vmem:[%s387 + $0x12a8] sm:$0xff]
        %v1440 = vld [vmem:[%s387 + $0x12b0] sm:$0xff]
        %v1441 = vld [vmem:[%s387 + $0x12b8] sm:$0xff]
        %v1442 = vld [vmem:[%s387 + $0x12c0] sm:$0xff]
        %v1443 = vld [vmem:[%s387 + $0x12c8] sm:$0xff]
        %v1444 = vld [vmem:[%s387 + $0x12d0] sm:$0xff]
        %v1445 = vld [vmem:[%s387 + $0x12d8] sm:$0xff]
        %v1446 = vld [vmem:[%s387 + $0x12e0] sm:$0xff]
        %v1447 = vld [vmem:[%s387 + $0x12e8] sm:$0xff]
        %v1448 = vld [vmem:[%s387 + $0x12f0] sm:$0xff]
        %v1449 = vld [vmem:[%s387 + $0x12f8] sm:$0xff]
        %v1450 = vld [vmem:[%s387 + $0x1300] sm:$0xff]
        %v1451 = vld [vmem:[%s387 + $0x1308] sm:$0xff]
        %v1452 = vld [vmem:[%s387 + $0x1310] sm:$0xff]
        %v1453 = vld [vmem:[%s387 + $0x1318] sm:$0xff]
        %v1454 = vld [vmem:[%s387 + $0x1320] sm:$0xff]
        %v1455 = vld [vmem:[%s387 + $0x1328] sm:$0xff]
        %v1456 = vld [vmem:[%s387 + $0x1330] sm:$0xff]
        %v1457 = vld [vmem:[%s387 + $0x1338] sm:$0xff]
        %v1458 = vld [vmem:[%s387 + $0x1340] sm:$0xff]
        %v1459 = vld [vmem:[%s387 + $0x1348] sm:$0xff]
        %v1460 = vld [vmem:[%s387 + $0x1350] sm:$0xff]
        %v1461 = vld [vmem:[%s387 + $0x1358] sm:$0xff]
        %v1462 = vld [vmem:[%s387 + $0x1360] sm:$0xff]
        %v1463 = vld [vmem:[%s387 + $0x1368] sm:$0xff]
        %v1464 = vld [vmem:[%s387 + $0x1370] sm:$0xff]
        %v1465 = vld [vmem:[%s387 + $0x1378] sm:$0xff]
        %v1466 = vld [vmem:[%s387 + $0x1380] sm:$0xff]
        %v1467 = vld [vmem:[%s387 + $0x1388] sm:$0xff]
        %v1468 = vld [vmem:[%s387 + $0x1390] sm:$0xff]
        %v1469 = vld [vmem:[%s387 + $0x1398] sm:$0xff]
        %v1470 = vld [vmem:[%s387 + $0x13a0] sm:$0xff]
        %v1471 = vld [vmem:[%s387 + $0x13a8] sm:$0xff]
        %v1472 = vld [vmem:[%s387 + $0x13b0] sm:$0xff]
        %v1473 = vld [vmem:[%s387 + $0x13b8] sm:$0xff]
        %v1474 = vld [vmem:[%s387 + $0x13c0] sm:$0xff]
        %v1475 = vld [vmem:[%s387 + $0x13c8] sm:$0xff]
        %v1476 = vld [vmem:[%s387 + $0x13d0] sm:$0xff]
        %v1477 = vld [vmem:[%s387 + $0x13d8] sm:$0xff]
        %v1478 = vld [vmem:[%s387 + $0x13e0] sm:$0xff]
        %v1479 = vld [vmem:[%s387 + $0x13e8] sm:$0xff]
        %v1480 = vld [vmem:[%s387 + $0x13f0] sm:$0xff]
        %v1481 = vld [vmem:[%s387 + $0x13f8] sm:$0xff]
        %v1482 = vld [vmem:[%s387 + $0x1400] sm:$0xff]
        %v1483 = vld [vmem:[%s387 + $0x1408] sm:$0xff]
        %v1484 = vld [vmem:[%s387 + $0x1410] sm:$0xff]
        %v1485 = vld [vmem:[%s387 + $0x1418] sm:$0xff]
        %v1486 = vld [vmem:[%s387 + $0x1420] sm:$0xff]
        %v1487 = vld [vmem:[%s387 + $0x1428] sm:$0xff]
        %v1488 = vld [vmem:[%s387 + $0x1430] sm:$0xff]
        %v1489 = vld [vmem:[%s387 + $0x1438] sm:$0xff]
        %v1490 = vld [vmem:[%s387 + $0x1440] sm:$0xff]
        %v1491 = vld [vmem:[%s387 + $0x1448] sm:$0xff]
        %v1492 = vld [vmem:[%s387 + $0x1450] sm:$0xff]
        %v1493 = vld [vmem:[%s387 + $0x1458] sm:$0xff]
        %v1494 = vld [vmem:[%s387 + $0x1460] sm:$0xff]
        %v1495 = vld [vmem:[%s387 + $0x1468] sm:$0xff]
        %v1496 = vld [vmem:[%s387 + $0x1470] sm:$0xff]
        %v1497 = vld [vmem:[%s387 + $0x1478] sm:$0xff]
        %v1498 = vld [vmem:[%s387 + $0x1480] sm:$0xff]
        %v1499 = vld [vmem:[%s387 + $0x1488] sm:$0xff]
        %v1500 = vld [vmem:[%s387 + $0x1490] sm:$0xff]
        %v1501 = vld [vmem:[%s387 + $0x1498] sm:$0xff]
        %v1502 = vld [vmem:[%s387 + $0x14a0] sm:$0xff]
        %v1503 = vld [vmem:[%s387 + $0x14a8] sm:$0xff]
        %v1504 = vld [vmem:[%s387 + $0x14b0] sm:$0xff]
        %v1505 = vld [vmem:[%s387 + $0x14b8] sm:$0xff]
        %v1506 = vld [vmem:[%s387 + $0x14c0] sm:$0xff]
        %v1507 = vld [vmem:[%s387 + $0x14c8] sm:$0xff]
        %v1508 = vld [vmem:[%s387 + $0x14d0] sm:$0xff]
        %v1509 = vld [vmem:[%s387 + $0x14d8] sm:$0xff]
        %v1510 = vld [vmem:[%s387 + $0x14e0] sm:$0xff]
        %v1511 = vld [vmem:[%s387 + $0x14e8] sm:$0xff]
        %v1512 = vld [vmem:[%s387 + $0x14f0] sm:$0xff]
        %v1513 = vld [vmem:[%s387 + $0x14f8] sm:$0xff]
        %v1514 = vld [vmem:[%s387 + $0x1500] sm:$0xff]
        %v1515 = vld [vmem:[%s387 + $0x1508] sm:$0xff]
        %v1516 = vld [vmem:[%s387 + $0x1510] sm:$0xff]
        %v1517 = vld [vmem:[%s387 + $0x1518] sm:$0xff]
        %v1518 = vld [vmem:[%s387 + $0x1520] sm:$0xff]
        %v1519 = vld [vmem:[%s387 + $0x1528] sm:$0xff]
        %v1520 = vld [vmem:[%s387 + $0x1530] sm:$0xff]
        %v1521 = vld [vmem:[%s387 + $0x1538] sm:$0xff]
        %v1522 = vld [vmem:[%s387 + $0x1540] sm:$0xff]
        %v1523 = vld [vmem:[%s387 + $0x1548] sm:$0xff]
        %v1524 = vld [vmem:[%s387 + $0x1550] sm:$0xff]
        %v1525 = vld [vmem:[%s387 + $0x1558] sm:$0xff]
        %v1526 = vld [vmem:[%s387 + $0x1560] sm:$0xff]
        %v1527 = vld [vmem:[%s387 + $0x1568] sm:$0xff]
        %v1528 = vld [vmem:[%s387 + $0x1570] sm:$0xff]
        %v1529 = vld [vmem:[%s387 + $0x1578] sm:$0xff]
        %v1530 = vld [vmem:[%s387 + $0x1580] sm:$0xff]
        %v1531 = vld [vmem:[%s387 + $0x1588] sm:$0xff]
        %v1532 = vld [vmem:[%s387 + $0x1590] sm:$0xff]
        %v1533 = vld [vmem:[%s387 + $0x1598] sm:$0xff]
        %v1534 = vld [vmem:[%s387 + $0x15a0] sm:$0xff]
        %v1535 = vld [vmem:[%s387 + $0x15a8] sm:$0xff]
        %v1536 = vld [vmem:[%s387 + $0x15b0] sm:$0xff]
        %v1537 = vld [vmem:[%s387 + $0x15b8] sm:$0xff]
        %v1538 = vld [vmem:[%s387 + $0x15c0] sm:$0xff]
        %v1539 = vld [vmem:[%s387 + $0x15c8] sm:$0xff]
        %v1540 = vld [vmem:[%s387 + $0x15d0] sm:$0xff]
        %v1541 = vld [vmem:[%s387 + $0x15d8] sm:$0xff]
        %v1542 = vld [vmem:[%s387 + $0x15e0] sm:$0xff]
        %v1543 = vld [vmem:[%s387 + $0x15e8] sm:$0xff]
        %v1544 = vld [vmem:[%s387 + $0x15f0] sm:$0xff]
        %v1545 = vld [vmem:[%s387 + $0x15f8] sm:$0xff]
        %v1546 = vld [vmem:[%s387 + $0x1600] sm:$0xff]
        %v1547 = vld [vmem:[%s387 + $0x1608] sm:$0xff]
        %v1548 = vld [vmem:[%s387 + $0x1610] sm:$0xff]
        %v1549 = vld [vmem:[%s387 + $0x1618] sm:$0xff]
        %v1550 = vld [vmem:[%s387 + $0x1620] sm:$0xff]
        %v1551 = vld [vmem:[%s387 + $0x1628] sm:$0xff]
        %v1552 = vld [vmem:[%s387 + $0x1630] sm:$0xff]
        %v1553 = vld [vmem:[%s387 + $0x1638] sm:$0xff]
        %v1554 = vld [vmem:[%s387 + $0x1640] sm:$0xff]
        %v1555 = vld [vmem:[%s387 + $0x1648] sm:$0xff]
        %v1556 = vld [vmem:[%s387 + $0x1650] sm:$0xff]
        %v1557 = vld [vmem:[%s387 + $0x1658] sm:$0xff]
        %v1558 = vld [vmem:[%s387 + $0x1660] sm:$0xff]
        %v1559 = vld [vmem:[%s387 + $0x1668] sm:$0xff]
        %v1560 = vld [vmem:[%s387 + $0x1670] sm:$0xff]
        %v1561 = vld [vmem:[%s387 + $0x1678] sm:$0xff]
        %v1562 = vld [vmem:[%s387 + $0x1680] sm:$0xff]
        %v1563 = vld [vmem:[%s387 + $0x1688] sm:$0xff]
        %v1564 = vld [vmem:[%s387 + $0x1690] sm:$0xff]
        %v1565 = vld [vmem:[%s387 + $0x1698] sm:$0xff]
        %v1566 = vld [vmem:[%s387 + $0x16a0] sm:$0xff]
        %v1567 = vld [vmem:[%s387 + $0x16a8] sm:$0xff]
        %v1568 = vld [vmem:[%s387 + $0x16b0] sm:$0xff]
        %v1569 = vld [vmem:[%s387 + $0x16b8] sm:$0xff]
        %v1570 = vld [vmem:[%s387 + $0x16c0] sm:$0xff]
        %v1571 = vld [vmem:[%s387 + $0x16c8] sm:$0xff]
        %v1572 = vld [vmem:[%s387 + $0x16d0] sm:$0xff]
        %v1573 = vld [vmem:[%s387 + $0x16d8] sm:$0xff]
        %v1574 = vld [vmem:[%s387 + $0x16e0] sm:$0xff]
        %v1575 = vld [vmem:[%s387 + $0x16e8] sm:$0xff]
        %v1576 = vld [vmem:[%s387 + $0x16f0] sm:$0xff]
        %v1577 = vld [vmem:[%s387 + $0x16f8] sm:$0xff]
        %v1578 = vld [vmem:[%s387 + $0x1700] sm:$0xff]
        %v1579 = vld [vmem:[%s387 + $0x1708] sm:$0xff]
        %v1580 = vld [vmem:[%s387 + $0x1710] sm:$0xff]
        %v1581 = vld [vmem:[%s387 + $0x1718] sm:$0xff]
        %v1582 = vld [vmem:[%s387 + $0x1720] sm:$0xff]
        %v1583 = vld [vmem:[%s387 + $0x1728] sm:$0xff]
        %v1584 = vld [vmem:[%s387 + $0x1730] sm:$0xff]
        %v1585 = vld [vmem:[%s387 + $0x1738] sm:$0xff]
        %v1586 = vld [vmem:[%s387 + $0x1740] sm:$0xff]
        %v1587 = vld [vmem:[%s387 + $0x1748] sm:$0xff]
        %v1588 = vld [vmem:[%s387 + $0x1750] sm:$0xff]
        %v1589 = vld [vmem:[%s387 + $0x1758] sm:$0xff]
        %v1590 = vld [vmem:[%s387 + $0x1760] sm:$0xff]
        %v1591 = vld [vmem:[%s387 + $0x1768] sm:$0xff]
        %v1592 = vld [vmem:[%s387 + $0x1770] sm:$0xff]
        %v1593 = vld [vmem:[%s387 + $0x1778] sm:$0xff]
        %v1594 = vld [vmem:[%s387 + $0x1780] sm:$0xff]
        %v1595 = vld [vmem:[%s387 + $0x1788] sm:$0xff]
        %v1596 = vld [vmem:[%s387 + $0x1790] sm:$0xff]
        %v1597 = vld [vmem:[%s387 + $0x1798] sm:$0xff]
        %v1598 = vld [vmem:[%s387 + $0x17a0] sm:$0xff]
        %v1599 = vld [vmem:[%s387 + $0x17a8] sm:$0xff]
        %v1600 = vld [vmem:[%s387 + $0x17b0] sm:$0xff]
        %v1601 = vld [vmem:[%s387 + $0x17b8] sm:$0xff]
        %v1602 = vld [vmem:[%s387 + $0x17c0] sm:$0xff]
        %v1603 = vld [vmem:[%s387 + $0x17c8] sm:$0xff]
        %v1604 = vld [vmem:[%s387 + $0x17d0] sm:$0xff]
        %v1605 = vld [vmem:[%s387 + $0x17d8] sm:$0xff]
        %v1606 = vld [vmem:[%s387 + $0x17e0] sm:$0xff]
        %v1607 = vld [vmem:[%s387 + $0x17e8] sm:$0xff]
        %v1608 = vld [vmem:[%s387 + $0x17f0] sm:$0xff]
        %v1609 = vld [vmem:[%s387 + $0x17f8] sm:$0xff]
        %v1610 = vpack.c.bf16 %v827, %v827
        %v1611 = vpack.c.bf16 %v829, %v829
        %v1612 = vpack.c.bf16 %v831, %v831
        %v1613 = vpack.c.bf16 %v833, %v833
        %v1614 = vpack.c.bf16 %v835, %v835
        %v1615 = vpack.c.bf16 %v837, %v837
        %v1616 = vpack.c.bf16 %v839, %v839
        %v1617 = vpack.c.bf16 %v841, %v841
        %v1618 = vld [vmem:[%s396] sm:$0xff]
        %v1619 = vld [vmem:[%s396 + $0x8] sm:$0xf]
        %v1622 = vlaneseq
        %v1623 = vshrl.u32 %v1622, 7
        %v1624 = vsub.s32 0, %v1623
        %v1625 = vrot.slane %v1618, %v1624
        %v1626 = vlaneseq
        %v1627 = vshrl.u32 %v1626, 7
        %v1628 = vsub.s32 1, %v1627
        %v1629 = vrot.slane %v1618, %v1628
        %v1630 = vlaneseq
        %v1631 = vshrl.u32 %v1630, 7
        %v1632 = vsub.s32 2, %v1631
        %v1633 = vrot.slane %v1618, %v1632
        %v1634 = vlaneseq
        %v1635 = vshrl.u32 %v1634, 7
        %v1636 = vsub.s32 3, %v1635
        %v1637 = vrot.slane %v1618, %v1636
        %v1638 = vlaneseq
        %v1639 = vshrl.u32 %v1638, 7
        %v1640 = vsub.s32 4, %v1639
        %v1641 = vrot.slane %v1618, %v1640
        %v1642 = vlaneseq
        %v1643 = vshrl.u32 %v1642, 7
        %v1644 = vsub.s32 5, %v1643
        %v1645 = vrot.slane %v1618, %v1644
        %v1646 = vlaneseq
        %v1647 = vshrl.u32 %v1646, 7
        %v1648 = vsub.s32 6, %v1647
        %v1649 = vrot.slane %v1618, %v1648
        %v1650 = vlaneseq
        %v1651 = vshrl.u32 %v1650, 7
        %v1652 = vsub.s32 7, %v1651
        %v1653 = vrot.slane %v1618, %v1652
        %v1654 = vlaneseq
        %v1655 = vshrl.u32 %v1654, 7
        %v1656 = vsub.s32 0, %v1655
        %v1657 = vrot.slane %v1619, %v1656
        %v1658 = vlaneseq
        %v1659 = vshrl.u32 %v1658, 7
        %v1660 = vsub.s32 1, %v1659
        %v1661 = vrot.slane %v1619, %v1660
        %v1662 = vlaneseq
        %v1663 = vshrl.u32 %v1662, 7
        %v1664 = vsub.s32 2, %v1663
        %v1665 = vrot.slane %v1619, %v1664
        %v1666 = vlaneseq
        %v1667 = vshrl.u32 %v1666, 7
        %v1668 = vsub.s32 3, %v1667
        %v1669 = vrot.slane %v1619, %v1668
        %v2450 = vunpack.c.l.b16 %v842
        %v2451 = vunpack.c.h.b16 %v842
        %v2452 = vunpack.c.l.b16 %v843
        %v2453 = vunpack.c.h.b16 %v843
        %v2454 = vunpack.c.l.b16 %v844
        %v2455 = vunpack.c.h.b16 %v844
        %v2456 = vunpack.c.l.b16 %v845
        %v2457 = vunpack.c.h.b16 %v845
        %v2458 = vunpack.c.l.b16 %v846
        %v2459 = vunpack.c.h.b16 %v846
        %v2460 = vunpack.c.l.b16 %v847
        %v2461 = vunpack.c.h.b16 %v847
        %v2462 = vunpack.c.l.b16 %v848
        %v2463 = vunpack.c.h.b16 %v848
        %v2464 = vunpack.c.l.b16 %v849
        %v2465 = vunpack.c.h.b16 %v849
        %v2466 = vunpack.c.l.b16 %v850
        %v2467 = vunpack.c.h.b16 %v850
        %v2468 = vunpack.c.l.b16 %v851
        %v2469 = vunpack.c.h.b16 %v851
        %v2470 = vunpack.c.l.b16 %v852
        %v2471 = vunpack.c.h.b16 %v852
        %v2472 = vunpack.c.l.b16 %v853
        %v2473 = vunpack.c.h.b16 %v853
        %v2474 = vunpack.c.l.b16 %v854
        %v2475 = vunpack.c.h.b16 %v854
        %v2476 = vunpack.c.l.b16 %v855
        %v2477 = vunpack.c.h.b16 %v855
        %v2478 = vunpack.c.l.b16 %v856
        %v2479 = vunpack.c.h.b16 %v856
        %v2480 = vunpack.c.l.b16 %v857
        %v2481 = vunpack.c.h.b16 %v857
        %v2482 = vunpack.c.l.b16 %v858
        %v2483 = vunpack.c.h.b16 %v858
        %v2484 = vunpack.c.l.b16 %v859
        %v2485 = vunpack.c.h.b16 %v859
        %v2486 = vunpack.c.l.b16 %v860
        %v2487 = vunpack.c.h.b16 %v860
        %v2488 = vunpack.c.l.b16 %v861
        %v2489 = vunpack.c.h.b16 %v861
        %v2490 = vunpack.c.l.b16 %v862
        %v2491 = vunpack.c.h.b16 %v862
        %v2492 = vunpack.c.l.b16 %v863
        %v2493 = vunpack.c.h.b16 %v863
        %v2494 = vunpack.c.l.b16 %v864
        %v2495 = vunpack.c.h.b16 %v864
        %v2496 = vunpack.c.l.b16 %v865
        %v2497 = vunpack.c.h.b16 %v865
        %v2498 = vunpack.c.l.b16 %v866
        %v2499 = vunpack.c.h.b16 %v866
        %v2500 = vunpack.c.l.b16 %v867
        %v2501 = vunpack.c.h.b16 %v867
        %v2502 = vunpack.c.l.b16 %v868
        %v2503 = vunpack.c.h.b16 %v868
        %v2504 = vunpack.c.l.b16 %v869
        %v2505 = vunpack.c.h.b16 %v869
        %v2506 = vunpack.c.l.b16 %v870
        %v2507 = vunpack.c.h.b16 %v870
        %v2508 = vunpack.c.l.b16 %v871
        %v2509 = vunpack.c.h.b16 %v871
        %v2510 = vunpack.c.l.b16 %v872
        %v2511 = vunpack.c.h.b16 %v872
        %v2512 = vunpack.c.l.b16 %v873
        %v2513 = vunpack.c.h.b16 %v873
        %v2514 = vunpack.c.l.b16 %v874
        %v2515 = vunpack.c.h.b16 %v874
        %v2516 = vunpack.c.l.b16 %v875
        %v2517 = vunpack.c.h.b16 %v875
        %v2518 = vunpack.c.l.b16 %v876
        %v2519 = vunpack.c.h.b16 %v876
        %v2520 = vunpack.c.l.b16 %v877
        %v2521 = vunpack.c.h.b16 %v877
        %v2522 = vunpack.c.l.b16 %v878
        %v2523 = vunpack.c.h.b16 %v878
        %v2524 = vunpack.c.l.b16 %v879
        %v2525 = vunpack.c.h.b16 %v879
        %v2526 = vunpack.c.l.b16 %v880
        %v2527 = vunpack.c.h.b16 %v880
        %v2528 = vunpack.c.l.b16 %v881
        %v2529 = vunpack.c.h.b16 %v881
        %v2530 = vunpack.c.l.b16 %v882
        %v2531 = vunpack.c.h.b16 %v882
        %v2532 = vunpack.c.l.b16 %v883
        %v2533 = vunpack.c.h.b16 %v883
        %v2534 = vunpack.c.l.b16 %v884
        %v2535 = vunpack.c.h.b16 %v884
        %v2536 = vunpack.c.l.b16 %v885
        %v2537 = vunpack.c.h.b16 %v885
        %v2538 = vunpack.c.l.b16 %v886
        %v2539 = vunpack.c.h.b16 %v886
        %v2540 = vunpack.c.l.b16 %v887
        %v2541 = vunpack.c.h.b16 %v887
        %v2542 = vunpack.c.l.b16 %v888
        %v2543 = vunpack.c.h.b16 %v888
        %v2544 = vunpack.c.l.b16 %v889
        %v2545 = vunpack.c.h.b16 %v889
        %v2546 = vunpack.c.l.b16 %v890
        %v2547 = vunpack.c.h.b16 %v890
        %v2548 = vunpack.c.l.b16 %v891
        %v2549 = vunpack.c.h.b16 %v891
        %v2550 = vunpack.c.l.b16 %v892
        %v2551 = vunpack.c.h.b16 %v892
        %v2552 = vunpack.c.l.b16 %v893
        %v2553 = vunpack.c.h.b16 %v893
        %v2554 = vunpack.c.l.b16 %v894
        %v2555 = vunpack.c.h.b16 %v894
        %v2556 = vunpack.c.l.b16 %v895
        %v2557 = vunpack.c.h.b16 %v895
        %v2558 = vunpack.c.l.b16 %v896
        %v2559 = vunpack.c.h.b16 %v896
        %v2560 = vunpack.c.l.b16 %v897
        %v2561 = vunpack.c.h.b16 %v897
        %v2562 = vunpack.c.l.b16 %v898
        %v2563 = vunpack.c.h.b16 %v898
        %v2564 = vunpack.c.l.b16 %v899
        %v2565 = vunpack.c.h.b16 %v899
        %v2566 = vunpack.c.l.b16 %v900
        %v2567 = vunpack.c.h.b16 %v900
        %v2568 = vunpack.c.l.b16 %v901
        %v2569 = vunpack.c.h.b16 %v901
        %v2570 = vunpack.c.l.b16 %v902
        %v2571 = vunpack.c.h.b16 %v902
        %v2572 = vunpack.c.l.b16 %v903
        %v2573 = vunpack.c.h.b16 %v903
        %v2574 = vunpack.c.l.b16 %v904
        %v2575 = vunpack.c.h.b16 %v904
        %v2576 = vunpack.c.l.b16 %v905
        %v2577 = vunpack.c.h.b16 %v905
        %v2578 = vunpack.c.l.b16 %v906
        %v2579 = vunpack.c.h.b16 %v906
        %v2580 = vunpack.c.l.b16 %v907
        %v2581 = vunpack.c.h.b16 %v907
        %v2582 = vunpack.c.l.b16 %v908
        %v2583 = vunpack.c.h.b16 %v908
        %v2584 = vunpack.c.l.b16 %v909
        %v2585 = vunpack.c.h.b16 %v909
        %v2586 = vunpack.c.l.b16 %v910
        %v2587 = vunpack.c.h.b16 %v910
        %v2588 = vunpack.c.l.b16 %v911
        %v2589 = vunpack.c.h.b16 %v911
        %v2590 = vunpack.c.l.b16 %v912
        %v2591 = vunpack.c.h.b16 %v912
        %v2592 = vunpack.c.l.b16 %v913
        %v2593 = vunpack.c.h.b16 %v913
        %v2594 = vunpack.c.l.b16 %v914
        %v2595 = vunpack.c.h.b16 %v914
        %v2596 = vunpack.c.l.b16 %v915
        %v2597 = vunpack.c.h.b16 %v915
        %v2598 = vunpack.c.l.b16 %v916
        %v2599 = vunpack.c.h.b16 %v916
        %v2600 = vunpack.c.l.b16 %v917
        %v2601 = vunpack.c.h.b16 %v917
        %v2602 = vunpack.c.l.b16 %v918
        %v2603 = vunpack.c.h.b16 %v918
        %v2604 = vunpack.c.l.b16 %v919
        %v2605 = vunpack.c.h.b16 %v919
        %v2606 = vunpack.c.l.b16 %v920
        %v2607 = vunpack.c.h.b16 %v920
        %v2608 = vunpack.c.l.b16 %v921
        %v2609 = vunpack.c.h.b16 %v921
        %v2610 = vunpack.c.l.b16 %v922
        %v2611 = vunpack.c.h.b16 %v922
        %v2612 = vunpack.c.l.b16 %v923
        %v2613 = vunpack.c.h.b16 %v923
        %v2614 = vunpack.c.l.b16 %v924
        %v2615 = vunpack.c.h.b16 %v924
        %v2616 = vunpack.c.l.b16 %v925
        %v2617 = vunpack.c.h.b16 %v925
        %v2618 = vunpack.c.l.b16 %v926
        %v2619 = vunpack.c.h.b16 %v926
        %v2620 = vunpack.c.l.b16 %v927
        %v2621 = vunpack.c.h.b16 %v927
        %v2622 = vunpack.c.l.b16 %v928
        %v2623 = vunpack.c.h.b16 %v928
        %v2624 = vunpack.c.l.b16 %v929
        %v2625 = vunpack.c.h.b16 %v929
        %v2626 = vunpack.c.l.b16 %v930
        %v2627 = vunpack.c.h.b16 %v930
        %v2628 = vunpack.c.l.b16 %v931
        %v2629 = vunpack.c.h.b16 %v931
        %v2630 = vunpack.c.l.b16 %v932
        %v2631 = vunpack.c.h.b16 %v932
        %v2632 = vunpack.c.l.b16 %v933
        %v2633 = vunpack.c.h.b16 %v933
        %v2634 = vunpack.c.l.b16 %v934
        %v2635 = vunpack.c.h.b16 %v934
        %v2636 = vunpack.c.l.b16 %v935
        %v2637 = vunpack.c.h.b16 %v935
        %v2638 = vunpack.c.l.b16 %v936
        %v2639 = vunpack.c.h.b16 %v936
        %v2640 = vunpack.c.l.b16 %v937
        %v2641 = vunpack.c.h.b16 %v937
        %v2642 = vunpack.c.l.b16 %v938
        %v2643 = vunpack.c.h.b16 %v938
        %v2644 = vunpack.c.l.b16 %v939
        %v2645 = vunpack.c.h.b16 %v939
        %v2646 = vunpack.c.l.b16 %v940
        %v2647 = vunpack.c.h.b16 %v940
        %v2648 = vunpack.c.l.b16 %v941
        %v2649 = vunpack.c.h.b16 %v941
        %v2650 = vunpack.c.l.b16 %v942
        %v2651 = vunpack.c.h.b16 %v942
        %v2652 = vunpack.c.l.b16 %v943
        %v2653 = vunpack.c.h.b16 %v943
        %v2654 = vunpack.c.l.b16 %v944
        %v2655 = vunpack.c.h.b16 %v944
        %v2656 = vunpack.c.l.b16 %v945
        %v2657 = vunpack.c.h.b16 %v945
        %v2658 = vunpack.c.l.b16 %v946
        %v2659 = vunpack.c.h.b16 %v946
        %v2660 = vunpack.c.l.b16 %v947
        %v2661 = vunpack.c.h.b16 %v947
        %v2662 = vunpack.c.l.b16 %v948
        %v2663 = vunpack.c.h.b16 %v948
        %v2664 = vunpack.c.l.b16 %v949
        %v2665 = vunpack.c.h.b16 %v949
        %v2666 = vunpack.c.l.b16 %v950
        %v2667 = vunpack.c.h.b16 %v950
        %v2668 = vunpack.c.l.b16 %v951
        %v2669 = vunpack.c.h.b16 %v951
        %v2670 = vunpack.c.l.b16 %v952
        %v2671 = vunpack.c.h.b16 %v952
        %v2672 = vunpack.c.l.b16 %v953
        %v2673 = vunpack.c.h.b16 %v953
        %v2674 = vunpack.c.l.b16 %v954
        %v2675 = vunpack.c.h.b16 %v954
        %v2676 = vunpack.c.l.b16 %v955
        %v2677 = vunpack.c.h.b16 %v955
        %v2678 = vunpack.c.l.b16 %v956
        %v2679 = vunpack.c.h.b16 %v956
        %v2680 = vunpack.c.l.b16 %v957
        %v2681 = vunpack.c.h.b16 %v957
        %v2682 = vunpack.c.l.b16 %v958
        %v2683 = vunpack.c.h.b16 %v958
        %v2684 = vunpack.c.l.b16 %v959
        %v2685 = vunpack.c.h.b16 %v959
        %v2686 = vunpack.c.l.b16 %v960
        %v2687 = vunpack.c.h.b16 %v960
        %v2688 = vunpack.c.l.b16 %v961
        %v2689 = vunpack.c.h.b16 %v961
        %v2690 = vunpack.c.l.b16 %v962
        %v2691 = vunpack.c.h.b16 %v962
        %v2692 = vunpack.c.l.b16 %v963
        %v2693 = vunpack.c.h.b16 %v963
        %v2694 = vunpack.c.l.b16 %v964
        %v2695 = vunpack.c.h.b16 %v964
        %v2696 = vunpack.c.l.b16 %v965
        %v2697 = vunpack.c.h.b16 %v965
        %v2698 = vunpack.c.l.b16 %v966
        %v2699 = vunpack.c.h.b16 %v966
        %v2700 = vunpack.c.l.b16 %v967
        %v2701 = vunpack.c.h.b16 %v967
        %v2702 = vunpack.c.l.b16 %v968
        %v2703 = vunpack.c.h.b16 %v968
        %v2704 = vunpack.c.l.b16 %v969
        %v2705 = vunpack.c.h.b16 %v969
        %v2706 = vunpack.c.l.b16 %v970
        %v2707 = vunpack.c.h.b16 %v970
        %v2708 = vunpack.c.l.b16 %v971
        %v2709 = vunpack.c.h.b16 %v971
        %v2710 = vunpack.c.l.b16 %v972
        %v2711 = vunpack.c.h.b16 %v972
        %v2712 = vunpack.c.l.b16 %v973
        %v2713 = vunpack.c.h.b16 %v973
        %v2714 = vunpack.c.l.b16 %v974
        %v2715 = vunpack.c.h.b16 %v974
        %v2716 = vunpack.c.l.b16 %v975
        %v2717 = vunpack.c.h.b16 %v975
        %v2718 = vunpack.c.l.b16 %v976
        %v2719 = vunpack.c.h.b16 %v976
        %v2720 = vunpack.c.l.b16 %v977
        %v2721 = vunpack.c.h.b16 %v977
        %v2722 = vunpack.c.l.b16 %v978
        %v2723 = vunpack.c.h.b16 %v978
        %v2724 = vunpack.c.l.b16 %v979
        %v2725 = vunpack.c.h.b16 %v979
        %v2726 = vunpack.c.l.b16 %v980
        %v2727 = vunpack.c.h.b16 %v980
        %v2728 = vunpack.c.l.b16 %v981
        %v2729 = vunpack.c.h.b16 %v981
        %v2730 = vunpack.c.l.b16 %v982
        %v2731 = vunpack.c.h.b16 %v982
        %v2732 = vunpack.c.l.b16 %v983
        %v2733 = vunpack.c.h.b16 %v983
        %v2734 = vunpack.c.l.b16 %v984
        %v2735 = vunpack.c.h.b16 %v984
        %v2736 = vunpack.c.l.b16 %v985
        %v2737 = vunpack.c.h.b16 %v985
        %v2738 = vunpack.c.l.b16 %v986
        %v2739 = vunpack.c.h.b16 %v986
        %v2740 = vunpack.c.l.b16 %v987
        %v2741 = vunpack.c.h.b16 %v987
        %v2742 = vunpack.c.l.b16 %v988
        %v2743 = vunpack.c.h.b16 %v988
        %v2744 = vunpack.c.l.b16 %v989
        %v2745 = vunpack.c.h.b16 %v989
        %v2746 = vunpack.c.l.b16 %v990
        %v2747 = vunpack.c.h.b16 %v990
        %v2748 = vunpack.c.l.b16 %v991
        %v2749 = vunpack.c.h.b16 %v991
        %v2750 = vunpack.c.l.b16 %v992
        %v2751 = vunpack.c.h.b16 %v992
        %v2752 = vunpack.c.l.b16 %v993
        %v2753 = vunpack.c.h.b16 %v993
        %v2754 = vunpack.c.l.b16 %v994
        %v2755 = vunpack.c.h.b16 %v994
        %v2756 = vunpack.c.l.b16 %v995
        %v2757 = vunpack.c.h.b16 %v995
        %v2758 = vunpack.c.l.b16 %v996
        %v2759 = vunpack.c.h.b16 %v996
        %v2760 = vunpack.c.l.b16 %v997
        %v2761 = vunpack.c.h.b16 %v997
        %v2762 = vunpack.c.l.b16 %v998
        %v2763 = vunpack.c.h.b16 %v998
        %v2764 = vunpack.c.l.b16 %v999
        %v2765 = vunpack.c.h.b16 %v999
        %v2766 = vunpack.c.l.b16 %v1000
        %v2767 = vunpack.c.h.b16 %v1000
        %v2768 = vunpack.c.l.b16 %v1001
        %v2769 = vunpack.c.h.b16 %v1001
        %v2770 = vunpack.c.l.b16 %v1002
        %v2771 = vunpack.c.h.b16 %v1002
        %v2772 = vunpack.c.l.b16 %v1003
        %v2773 = vunpack.c.h.b16 %v1003
        %v2774 = vunpack.c.l.b16 %v1004
        %v2775 = vunpack.c.h.b16 %v1004
        %v2776 = vunpack.c.l.b16 %v1005
        %v2777 = vunpack.c.h.b16 %v1005
        %v2778 = vunpack.c.l.b16 %v1006
        %v2779 = vunpack.c.h.b16 %v1006
        %v2780 = vunpack.c.l.b16 %v1007
        %v2781 = vunpack.c.h.b16 %v1007
        %v2782 = vunpack.c.l.b16 %v1008
        %v2783 = vunpack.c.h.b16 %v1008
        %v2784 = vunpack.c.l.b16 %v1009
        %v2785 = vunpack.c.h.b16 %v1009
        %v2786 = vunpack.c.l.b16 %v1010
        %v2787 = vunpack.c.h.b16 %v1010
        %v2788 = vunpack.c.l.b16 %v1011
        %v2789 = vunpack.c.h.b16 %v1011
        %v2790 = vunpack.c.l.b16 %v1012
        %v2791 = vunpack.c.h.b16 %v1012
        %v2792 = vunpack.c.l.b16 %v1013
        %v2793 = vunpack.c.h.b16 %v1013
        %v2794 = vunpack.c.l.b16 %v1014
        %v2795 = vunpack.c.h.b16 %v1014
        %v2796 = vunpack.c.l.b16 %v1015
        %v2797 = vunpack.c.h.b16 %v1015
        %v2798 = vunpack.c.l.b16 %v1016
        %v2799 = vunpack.c.h.b16 %v1016
        %v2800 = vunpack.c.l.b16 %v1017
        %v2801 = vunpack.c.h.b16 %v1017
        %v2802 = vunpack.c.l.b16 %v1018
        %v2803 = vunpack.c.h.b16 %v1018
        %v2804 = vunpack.c.l.b16 %v1019
        %v2805 = vunpack.c.h.b16 %v1019
        %v2806 = vunpack.c.l.b16 %v1020
        %v2807 = vunpack.c.h.b16 %v1020
        %v2808 = vunpack.c.l.b16 %v1021
        %v2809 = vunpack.c.h.b16 %v1021
        %v2810 = vunpack.c.l.b16 %v1022
        %v2811 = vunpack.c.h.b16 %v1022
        %v2812 = vunpack.c.l.b16 %v1023
        %v2813 = vunpack.c.h.b16 %v1023
        %v2814 = vunpack.c.l.b16 %v1024
        %v2815 = vunpack.c.h.b16 %v1024
        %v2816 = vunpack.c.l.b16 %v1025
        %v2817 = vunpack.c.h.b16 %v1025
        %v2818 = vunpack.c.l.b16 %v1026
        %v2819 = vunpack.c.h.b16 %v1026
        %v2820 = vunpack.c.l.b16 %v1027
        %v2821 = vunpack.c.h.b16 %v1027
        %v2822 = vunpack.c.l.b16 %v1028
        %v2823 = vunpack.c.h.b16 %v1028
        %v2824 = vunpack.c.l.b16 %v1029
        %v2825 = vunpack.c.h.b16 %v1029
        %v2826 = vunpack.c.l.b16 %v1030
        %v2827 = vunpack.c.h.b16 %v1030
        %v2828 = vunpack.c.l.b16 %v1031
        %v2829 = vunpack.c.h.b16 %v1031
        %v2830 = vunpack.c.l.b16 %v1032
        %v2831 = vunpack.c.h.b16 %v1032
        %v2832 = vunpack.c.l.b16 %v1033
        %v2833 = vunpack.c.h.b16 %v1033
        %v2834 = vunpack.c.l.b16 %v1034
        %v2835 = vunpack.c.h.b16 %v1034
        %v2836 = vunpack.c.l.b16 %v1035
        %v2837 = vunpack.c.h.b16 %v1035
        %v2838 = vunpack.c.l.b16 %v1036
        %v2839 = vunpack.c.h.b16 %v1036
        %v2840 = vunpack.c.l.b16 %v1037
        %v2841 = vunpack.c.h.b16 %v1037
        %v2842 = vunpack.c.l.b16 %v1038
        %v2843 = vunpack.c.h.b16 %v1038
        %v2844 = vunpack.c.l.b16 %v1039
        %v2845 = vunpack.c.h.b16 %v1039
        %v2846 = vunpack.c.l.b16 %v1040
        %v2847 = vunpack.c.h.b16 %v1040
        %v2848 = vunpack.c.l.b16 %v1041
        %v2849 = vunpack.c.h.b16 %v1041
        %v2850 = vunpack.c.l.b16 %v1042
        %v2851 = vunpack.c.h.b16 %v1042
        %v2852 = vunpack.c.l.b16 %v1043
        %v2853 = vunpack.c.h.b16 %v1043
        %v2854 = vunpack.c.l.b16 %v1044
        %v2855 = vunpack.c.h.b16 %v1044
        %v2856 = vunpack.c.l.b16 %v1045
        %v2857 = vunpack.c.h.b16 %v1045
        %v2858 = vunpack.c.l.b16 %v1046
        %v2859 = vunpack.c.h.b16 %v1046
        %v2860 = vunpack.c.l.b16 %v1047
        %v2861 = vunpack.c.h.b16 %v1047
        %v2862 = vunpack.c.l.b16 %v1048
        %v2863 = vunpack.c.h.b16 %v1048
        %v2864 = vunpack.c.l.b16 %v1049
        %v2865 = vunpack.c.h.b16 %v1049
        %v2866 = vunpack.c.l.b16 %v1050
        %v2867 = vunpack.c.h.b16 %v1050
        %v2868 = vunpack.c.l.b16 %v1051
        %v2869 = vunpack.c.h.b16 %v1051
        %v2870 = vunpack.c.l.b16 %v1052
        %v2871 = vunpack.c.h.b16 %v1052
        %v2872 = vunpack.c.l.b16 %v1053
        %v2873 = vunpack.c.h.b16 %v1053
        %v2874 = vunpack.c.l.b16 %v1054
        %v2875 = vunpack.c.h.b16 %v1054
        %v2876 = vunpack.c.l.b16 %v1055
        %v2877 = vunpack.c.h.b16 %v1055
        %v2878 = vunpack.c.l.b16 %v1056
        %v2879 = vunpack.c.h.b16 %v1056
        %v2880 = vunpack.c.l.b16 %v1057
        %v2881 = vunpack.c.h.b16 %v1057
        %v2882 = vunpack.c.l.b16 %v1058
        %v2883 = vunpack.c.h.b16 %v1058
        %v2884 = vunpack.c.l.b16 %v1059
        %v2885 = vunpack.c.h.b16 %v1059
        %v2886 = vunpack.c.l.b16 %v1060
        %v2887 = vunpack.c.h.b16 %v1060
        %v2888 = vunpack.c.l.b16 %v1061
        %v2889 = vunpack.c.h.b16 %v1061
        %v2890 = vunpack.c.l.b16 %v1062
        %v2891 = vunpack.c.h.b16 %v1062
        %v2892 = vunpack.c.l.b16 %v1063
        %v2893 = vunpack.c.h.b16 %v1063
        %v2894 = vunpack.c.l.b16 %v1064
        %v2895 = vunpack.c.h.b16 %v1064
        %v2896 = vunpack.c.l.b16 %v1065
        %v2897 = vunpack.c.h.b16 %v1065
        %v2898 = vunpack.c.l.b16 %v1066
        %v2899 = vunpack.c.h.b16 %v1066
        %v2900 = vunpack.c.l.b16 %v1067
        %v2901 = vunpack.c.h.b16 %v1067
        %v2902 = vunpack.c.l.b16 %v1068
        %v2903 = vunpack.c.h.b16 %v1068
        %v2904 = vunpack.c.l.b16 %v1069
        %v2905 = vunpack.c.h.b16 %v1069
        %v2906 = vunpack.c.l.b16 %v1070
        %v2907 = vunpack.c.h.b16 %v1070
        %v2908 = vunpack.c.l.b16 %v1071
        %v2909 = vunpack.c.h.b16 %v1071
        %v2910 = vunpack.c.l.b16 %v1072
        %v2911 = vunpack.c.h.b16 %v1072
        %v2912 = vunpack.c.l.b16 %v1073
        %v2913 = vunpack.c.h.b16 %v1073
        %v2914 = vunpack.c.l.b16 %v1074
        %v2915 = vunpack.c.h.b16 %v1074
        %v2916 = vunpack.c.l.b16 %v1075
        %v2917 = vunpack.c.h.b16 %v1075
        %v2918 = vunpack.c.l.b16 %v1076
        %v2919 = vunpack.c.h.b16 %v1076
        %v2920 = vunpack.c.l.b16 %v1077
        %v2921 = vunpack.c.h.b16 %v1077
        %v2922 = vunpack.c.l.b16 %v1078
        %v2923 = vunpack.c.h.b16 %v1078
        %v2924 = vunpack.c.l.b16 %v1079
        %v2925 = vunpack.c.h.b16 %v1079
        %v2926 = vunpack.c.l.b16 %v1080
        %v2927 = vunpack.c.h.b16 %v1080
        %v2928 = vunpack.c.l.b16 %v1081
        %v2929 = vunpack.c.h.b16 %v1081
        %v2930 = vunpack.c.l.b16 %v1082
        %v2931 = vunpack.c.h.b16 %v1082
        %v2932 = vunpack.c.l.b16 %v1083
        %v2933 = vunpack.c.h.b16 %v1083
        %v2934 = vunpack.c.l.b16 %v1084
        %v2935 = vunpack.c.h.b16 %v1084
        %v2936 = vunpack.c.l.b16 %v1085
        %v2937 = vunpack.c.h.b16 %v1085
        %v2938 = vunpack.c.l.b16 %v1086
        %v2939 = vunpack.c.h.b16 %v1086
        %v2940 = vunpack.c.l.b16 %v1087
        %v2941 = vunpack.c.h.b16 %v1087
        %v2942 = vunpack.c.l.b16 %v1088
        %v2943 = vunpack.c.h.b16 %v1088
        %v2944 = vunpack.c.l.b16 %v1089
        %v2945 = vunpack.c.h.b16 %v1089
        %v2946 = vunpack.c.l.b16 %v1090
        %v2947 = vunpack.c.h.b16 %v1090
        %v2948 = vunpack.c.l.b16 %v1091
        %v2949 = vunpack.c.h.b16 %v1091
        %v2950 = vunpack.c.l.b16 %v1092
        %v2951 = vunpack.c.h.b16 %v1092
        %v2952 = vunpack.c.l.b16 %v1093
        %v2953 = vunpack.c.h.b16 %v1093
        %v2954 = vunpack.c.l.b16 %v1094
        %v2955 = vunpack.c.h.b16 %v1094
        %v2956 = vunpack.c.l.b16 %v1095
        %v2957 = vunpack.c.h.b16 %v1095
        %v2958 = vunpack.c.l.b16 %v1096
        %v2959 = vunpack.c.h.b16 %v1096
        %v2960 = vunpack.c.l.b16 %v1097
        %v2961 = vunpack.c.h.b16 %v1097
        %v2962 = vunpack.c.l.b16 %v1098
        %v2963 = vunpack.c.h.b16 %v1098
        %v2964 = vunpack.c.l.b16 %v1099
        %v2965 = vunpack.c.h.b16 %v1099
        %v2966 = vunpack.c.l.b16 %v1100
        %v2967 = vunpack.c.h.b16 %v1100
        %v2968 = vunpack.c.l.b16 %v1101
        %v2969 = vunpack.c.h.b16 %v1101
        %v2970 = vunpack.c.l.b16 %v1102
        %v2971 = vunpack.c.h.b16 %v1102
        %v2972 = vunpack.c.l.b16 %v1103
        %v2973 = vunpack.c.h.b16 %v1103
        %v2974 = vunpack.c.l.b16 %v1104
        %v2975 = vunpack.c.h.b16 %v1104
        %v2976 = vunpack.c.l.b16 %v1105
        %v2977 = vunpack.c.h.b16 %v1105
        %v2978 = vunpack.c.l.b16 %v1106
        %v2979 = vunpack.c.h.b16 %v1106
        %v2980 = vunpack.c.l.b16 %v1107
        %v2981 = vunpack.c.h.b16 %v1107
        %v2982 = vunpack.c.l.b16 %v1108
        %v2983 = vunpack.c.h.b16 %v1108
        %v2984 = vunpack.c.l.b16 %v1109
        %v2985 = vunpack.c.h.b16 %v1109
        %v2986 = vunpack.c.l.b16 %v1110
        %v2987 = vunpack.c.h.b16 %v1110
        %v2988 = vunpack.c.l.b16 %v1111
        %v2989 = vunpack.c.h.b16 %v1111
        %v2990 = vunpack.c.l.b16 %v1112
        %v2991 = vunpack.c.h.b16 %v1112
        %v2992 = vunpack.c.l.b16 %v1113
        %v2993 = vunpack.c.h.b16 %v1113
        %v2994 = vunpack.c.l.b16 %v1114
        %v2995 = vunpack.c.h.b16 %v1114
        %v2996 = vunpack.c.l.b16 %v1115
        %v2997 = vunpack.c.h.b16 %v1115
        %v2998 = vunpack.c.l.b16 %v1116
        %v2999 = vunpack.c.h.b16 %v1116
        %v3000 = vunpack.c.l.b16 %v1117
        %v3001 = vunpack.c.h.b16 %v1117
        %v3002 = vunpack.c.l.b16 %v1118
        %v3003 = vunpack.c.h.b16 %v1118
        %v3004 = vunpack.c.l.b16 %v1119
        %v3005 = vunpack.c.h.b16 %v1119
        %v3006 = vunpack.c.l.b16 %v1120
        %v3007 = vunpack.c.h.b16 %v1120
        %v3008 = vunpack.c.l.b16 %v1121
        %v3009 = vunpack.c.h.b16 %v1121
        %v3010 = vunpack.c.l.b16 %v1122
        %v3011 = vunpack.c.h.b16 %v1122
        %v3012 = vunpack.c.l.b16 %v1123
        %v3013 = vunpack.c.h.b16 %v1123
        %v3014 = vunpack.c.l.b16 %v1124
        %v3015 = vunpack.c.h.b16 %v1124
        %v3016 = vunpack.c.l.b16 %v1125
        %v3017 = vunpack.c.h.b16 %v1125
        %v3018 = vunpack.c.l.b16 %v1126
        %v3019 = vunpack.c.h.b16 %v1126
        %v3020 = vunpack.c.l.b16 %v1127
        %v3021 = vunpack.c.h.b16 %v1127
        %v3022 = vunpack.c.l.b16 %v1128
        %v3023 = vunpack.c.h.b16 %v1128
        %v3024 = vunpack.c.l.b16 %v1129
        %v3025 = vunpack.c.h.b16 %v1129
        %v3026 = vunpack.c.l.b16 %v1130
        %v3027 = vunpack.c.h.b16 %v1130
        %v3028 = vunpack.c.l.b16 %v1131
        %v3029 = vunpack.c.h.b16 %v1131
        %v3030 = vunpack.c.l.b16 %v1132
        %v3031 = vunpack.c.h.b16 %v1132
        %v3032 = vunpack.c.l.b16 %v1133
        %v3033 = vunpack.c.h.b16 %v1133
        %v3034 = vunpack.c.l.b16 %v1134
        %v3035 = vunpack.c.h.b16 %v1134
        %v3036 = vunpack.c.l.b16 %v1135
        %v3037 = vunpack.c.h.b16 %v1135
        %v3038 = vunpack.c.l.b16 %v1136
        %v3039 = vunpack.c.h.b16 %v1136
        %v3040 = vunpack.c.l.b16 %v1137
        %v3041 = vunpack.c.h.b16 %v1137
        %v3042 = vunpack.c.l.b16 %v1138
        %v3043 = vunpack.c.h.b16 %v1138
        %v3044 = vunpack.c.l.b16 %v1139
        %v3045 = vunpack.c.h.b16 %v1139
        %v3046 = vunpack.c.l.b16 %v1140
        %v3047 = vunpack.c.h.b16 %v1140
        %v3048 = vunpack.c.l.b16 %v1141
        %v3049 = vunpack.c.h.b16 %v1141
        %v3050 = vunpack.c.l.b16 %v1142
        %v3051 = vunpack.c.h.b16 %v1142
        %v3052 = vunpack.c.l.b16 %v1143
        %v3053 = vunpack.c.h.b16 %v1143
        %v3054 = vunpack.c.l.b16 %v1144
        %v3055 = vunpack.c.h.b16 %v1144
        %v3056 = vunpack.c.l.b16 %v1145
        %v3057 = vunpack.c.h.b16 %v1145
        %v3058 = vunpack.c.l.b16 %v1146
        %v3059 = vunpack.c.h.b16 %v1146
        %v3060 = vunpack.c.l.b16 %v1147
        %v3061 = vunpack.c.h.b16 %v1147
        %v3062 = vunpack.c.l.b16 %v1148
        %v3063 = vunpack.c.h.b16 %v1148
        %v3064 = vunpack.c.l.b16 %v1149
        %v3065 = vunpack.c.h.b16 %v1149
        %v3066 = vunpack.c.l.b16 %v1150
        %v3067 = vunpack.c.h.b16 %v1150
        %v3068 = vunpack.c.l.b16 %v1151
        %v3069 = vunpack.c.h.b16 %v1151
        %v3070 = vunpack.c.l.b16 %v1152
        %v3071 = vunpack.c.h.b16 %v1152
        %v3072 = vunpack.c.l.b16 %v1153
        %v3073 = vunpack.c.h.b16 %v1153
        %v3074 = vunpack.c.l.b16 %v1154
        %v3075 = vunpack.c.h.b16 %v1154
        %v3076 = vunpack.c.l.b16 %v1155
        %v3077 = vunpack.c.h.b16 %v1155
        %v3078 = vunpack.c.l.b16 %v1156
        %v3079 = vunpack.c.h.b16 %v1156
        %v3080 = vunpack.c.l.b16 %v1157
        %v3081 = vunpack.c.h.b16 %v1157
        %v3082 = vunpack.c.l.b16 %v1158
        %v3083 = vunpack.c.h.b16 %v1158
        %v3084 = vunpack.c.l.b16 %v1159
        %v3085 = vunpack.c.h.b16 %v1159
        %v3086 = vunpack.c.l.b16 %v1160
        %v3087 = vunpack.c.h.b16 %v1160
        %v3088 = vunpack.c.l.b16 %v1161
        %v3089 = vunpack.c.h.b16 %v1161
        %v3090 = vunpack.c.l.b16 %v1162
        %v3091 = vunpack.c.h.b16 %v1162
        %v3092 = vunpack.c.l.b16 %v1163
        %v3093 = vunpack.c.h.b16 %v1163
        %v3094 = vunpack.c.l.b16 %v1164
        %v3095 = vunpack.c.h.b16 %v1164
        %v3096 = vunpack.c.l.b16 %v1165
        %v3097 = vunpack.c.h.b16 %v1165
        %v3098 = vunpack.c.l.b16 %v1166
        %v3099 = vunpack.c.h.b16 %v1166
        %v3100 = vunpack.c.l.b16 %v1167
        %v3101 = vunpack.c.h.b16 %v1167
        %v3102 = vunpack.c.l.b16 %v1168
        %v3103 = vunpack.c.h.b16 %v1168
        %v3104 = vunpack.c.l.b16 %v1169
        %v3105 = vunpack.c.h.b16 %v1169
        %v3106 = vunpack.c.l.b16 %v1170
        %v3107 = vunpack.c.h.b16 %v1170
        %v3108 = vunpack.c.l.b16 %v1171
        %v3109 = vunpack.c.h.b16 %v1171
        %v3110 = vunpack.c.l.b16 %v1172
        %v3111 = vunpack.c.h.b16 %v1172
        %v3112 = vunpack.c.l.b16 %v1173
        %v3113 = vunpack.c.h.b16 %v1173
        %v3114 = vunpack.c.l.b16 %v1174
        %v3115 = vunpack.c.h.b16 %v1174
        %v3116 = vunpack.c.l.b16 %v1175
        %v3117 = vunpack.c.h.b16 %v1175
        %v3118 = vunpack.c.l.b16 %v1176
        %v3119 = vunpack.c.h.b16 %v1176
        %v3120 = vunpack.c.l.b16 %v1177
        %v3121 = vunpack.c.h.b16 %v1177
        %v3122 = vunpack.c.l.b16 %v1178
        %v3123 = vunpack.c.h.b16 %v1178
        %v3124 = vunpack.c.l.b16 %v1179
        %v3125 = vunpack.c.h.b16 %v1179
        %v3126 = vunpack.c.l.b16 %v1180
        %v3127 = vunpack.c.h.b16 %v1180
        %v3128 = vunpack.c.l.b16 %v1181
        %v3129 = vunpack.c.h.b16 %v1181
        %v3130 = vunpack.c.l.b16 %v1182
        %v3131 = vunpack.c.h.b16 %v1182
        %v3132 = vunpack.c.l.b16 %v1183
        %v3133 = vunpack.c.h.b16 %v1183
        %v3134 = vunpack.c.l.b16 %v1184
        %v3135 = vunpack.c.h.b16 %v1184
        %v3136 = vunpack.c.l.b16 %v1185
        %v3137 = vunpack.c.h.b16 %v1185
        %v3138 = vunpack.c.l.b16 %v1186
        %v3139 = vunpack.c.h.b16 %v1186
        %v3140 = vunpack.c.l.b16 %v1187
        %v3141 = vunpack.c.h.b16 %v1187
        %v3142 = vunpack.c.l.b16 %v1188
        %v3143 = vunpack.c.h.b16 %v1188
        %v3144 = vunpack.c.l.b16 %v1189
        %v3145 = vunpack.c.h.b16 %v1189
        %v3146 = vunpack.c.l.b16 %v1190
        %v3147 = vunpack.c.h.b16 %v1190
        %v3148 = vunpack.c.l.b16 %v1191
        %v3149 = vunpack.c.h.b16 %v1191
        %v3150 = vunpack.c.l.b16 %v1192
        %v3151 = vunpack.c.h.b16 %v1192
        %v3152 = vunpack.c.l.b16 %v1193
        %v3153 = vunpack.c.h.b16 %v1193
        %v3154 = vunpack.c.l.b16 %v1194
        %v3155 = vunpack.c.h.b16 %v1194
        %v3156 = vunpack.c.l.b16 %v1195
        %v3157 = vunpack.c.h.b16 %v1195
        %v3158 = vunpack.c.l.b16 %v1196
        %v3159 = vunpack.c.h.b16 %v1196
        %v3160 = vunpack.c.l.b16 %v1197
        %v3161 = vunpack.c.h.b16 %v1197
        %v3162 = vunpack.c.l.b16 %v1198
        %v3163 = vunpack.c.h.b16 %v1198
        %v3164 = vunpack.c.l.b16 %v1199
        %v3165 = vunpack.c.h.b16 %v1199
        %v3166 = vunpack.c.l.b16 %v1200
        %v3167 = vunpack.c.h.b16 %v1200
        %v3168 = vunpack.c.l.b16 %v1201
        %v3169 = vunpack.c.h.b16 %v1201
        %v3170 = vunpack.c.l.b16 %v1202
        %v3171 = vunpack.c.h.b16 %v1202
        %v3172 = vunpack.c.l.b16 %v1203
        %v3173 = vunpack.c.h.b16 %v1203
        %v3174 = vunpack.c.l.b16 %v1204
        %v3175 = vunpack.c.h.b16 %v1204
        %v3176 = vunpack.c.l.b16 %v1205
        %v3177 = vunpack.c.h.b16 %v1205
        %v3178 = vunpack.c.l.b16 %v1206
        %v3179 = vunpack.c.h.b16 %v1206
        %v3180 = vunpack.c.l.b16 %v1207
        %v3181 = vunpack.c.h.b16 %v1207
        %v3182 = vunpack.c.l.b16 %v1208
        %v3183 = vunpack.c.h.b16 %v1208
        %v3184 = vunpack.c.l.b16 %v1209
        %v3185 = vunpack.c.h.b16 %v1209
        %v3186 = vunpack.c.l.b16 %v1210
        %v3187 = vunpack.c.h.b16 %v1210
        %v3188 = vunpack.c.l.b16 %v1211
        %v3189 = vunpack.c.h.b16 %v1211
        %v3190 = vunpack.c.l.b16 %v1212
        %v3191 = vunpack.c.h.b16 %v1212
        %v3192 = vunpack.c.l.b16 %v1213
        %v3193 = vunpack.c.h.b16 %v1213
        %v3194 = vunpack.c.l.b16 %v1214
        %v3195 = vunpack.c.h.b16 %v1214
        %v3196 = vunpack.c.l.b16 %v1215
        %v3197 = vunpack.c.h.b16 %v1215
        %v3198 = vunpack.c.l.b16 %v1216
        %v3199 = vunpack.c.h.b16 %v1216
        %v3200 = vunpack.c.l.b16 %v1217
        %v3201 = vunpack.c.h.b16 %v1217
        %v3202 = vunpack.c.l.b16 %v1218
        %v3203 = vunpack.c.h.b16 %v1218
        %v3204 = vunpack.c.l.b16 %v1219
        %v3205 = vunpack.c.h.b16 %v1219
        %v3206 = vunpack.c.l.b16 %v1220
        %v3207 = vunpack.c.h.b16 %v1220
        %v3208 = vunpack.c.l.b16 %v1221
        %v3209 = vunpack.c.h.b16 %v1221
        %v3210 = vunpack.c.l.b16 %v1222
        %v3211 = vunpack.c.h.b16 %v1222
        %v3212 = vunpack.c.l.b16 %v1223
        %v3213 = vunpack.c.h.b16 %v1223
        %v3214 = vunpack.c.l.b16 %v1224
        %v3215 = vunpack.c.h.b16 %v1224
        %v3216 = vunpack.c.l.b16 %v1225
        %v3217 = vunpack.c.h.b16 %v1225
        %v3218 = vunpack.c.l.b16 %v1226
        %v3219 = vunpack.c.h.b16 %v1226
        %v3220 = vunpack.c.l.b16 %v1227
        %v3221 = vunpack.c.h.b16 %v1227
        %v3222 = vunpack.c.l.b16 %v1228
        %v3223 = vunpack.c.h.b16 %v1228
        %v3224 = vunpack.c.l.b16 %v1229
        %v3225 = vunpack.c.h.b16 %v1229
        %v3226 = vunpack.c.l.b16 %v1230
        %v3227 = vunpack.c.h.b16 %v1230
        %v3228 = vunpack.c.l.b16 %v1231
        %v3229 = vunpack.c.h.b16 %v1231
        %v3230 = vunpack.c.l.b16 %v1232
        %v3231 = vunpack.c.h.b16 %v1232
        %v3232 = vunpack.c.l.b16 %v1233
        %v3233 = vunpack.c.h.b16 %v1233
        %v3234 = vunpack.c.l.b16 %v1234
        %v3235 = vunpack.c.h.b16 %v1234
        %v3236 = vunpack.c.l.b16 %v1235
        %v3237 = vunpack.c.h.b16 %v1235
        %v3238 = vunpack.c.l.b16 %v1236
        %v3239 = vunpack.c.h.b16 %v1236
        %v3240 = vunpack.c.l.b16 %v1237
        %v3241 = vunpack.c.h.b16 %v1237
        %v3242 = vunpack.c.l.b16 %v1238
        %v3243 = vunpack.c.h.b16 %v1238
        %v3244 = vunpack.c.l.b16 %v1239
        %v3245 = vunpack.c.h.b16 %v1239
        %v3246 = vunpack.c.l.b16 %v1240
        %v3247 = vunpack.c.h.b16 %v1240
        %v3248 = vunpack.c.l.b16 %v1241
        %v3249 = vunpack.c.h.b16 %v1241
        %v3250 = vunpack.c.l.b16 %v1242
        %v3251 = vunpack.c.h.b16 %v1242
        %v3252 = vunpack.c.l.b16 %v1243
        %v3253 = vunpack.c.h.b16 %v1243
        %v3254 = vunpack.c.l.b16 %v1244
        %v3255 = vunpack.c.h.b16 %v1244
        %v3256 = vunpack.c.l.b16 %v1245
        %v3257 = vunpack.c.h.b16 %v1245
        %v3258 = vunpack.c.l.b16 %v1246
        %v3259 = vunpack.c.h.b16 %v1246
        %v3260 = vunpack.c.l.b16 %v1247
        %v3261 = vunpack.c.h.b16 %v1247
        %v3262 = vunpack.c.l.b16 %v1248
        %v3263 = vunpack.c.h.b16 %v1248
        %v3264 = vunpack.c.l.b16 %v1249
        %v3265 = vunpack.c.h.b16 %v1249
        %v3266 = vunpack.c.l.b16 %v1250
        %v3267 = vunpack.c.h.b16 %v1250
        %v3268 = vunpack.c.l.b16 %v1251
        %v3269 = vunpack.c.h.b16 %v1251
        %v3270 = vunpack.c.l.b16 %v1252
        %v3271 = vunpack.c.h.b16 %v1252
        %v3272 = vunpack.c.l.b16 %v1253
        %v3273 = vunpack.c.h.b16 %v1253
        %v3274 = vunpack.c.l.b16 %v1254
        %v3275 = vunpack.c.h.b16 %v1254
        %v3276 = vunpack.c.l.b16 %v1255
        %v3277 = vunpack.c.h.b16 %v1255
        %v3278 = vunpack.c.l.b16 %v1256
        %v3279 = vunpack.c.h.b16 %v1256
        %v3280 = vunpack.c.l.b16 %v1257
        %v3281 = vunpack.c.h.b16 %v1257
        %v3282 = vunpack.c.l.b16 %v1258
        %v3283 = vunpack.c.h.b16 %v1258
        %v3284 = vunpack.c.l.b16 %v1259
        %v3285 = vunpack.c.h.b16 %v1259
        %v3286 = vunpack.c.l.b16 %v1260
        %v3287 = vunpack.c.h.b16 %v1260
        %v3288 = vunpack.c.l.b16 %v1261
        %v3289 = vunpack.c.h.b16 %v1261
        %v3290 = vunpack.c.l.b16 %v1262
        %v3291 = vunpack.c.h.b16 %v1262
        %v3292 = vunpack.c.l.b16 %v1263
        %v3293 = vunpack.c.h.b16 %v1263
        %v3294 = vunpack.c.l.b16 %v1264
        %v3295 = vunpack.c.h.b16 %v1264
        %v3296 = vunpack.c.l.b16 %v1265
        %v3297 = vunpack.c.h.b16 %v1265
        %v3298 = vunpack.c.l.b16 %v1266
        %v3299 = vunpack.c.h.b16 %v1266
        %v3300 = vunpack.c.l.b16 %v1267
        %v3301 = vunpack.c.h.b16 %v1267
        %v3302 = vunpack.c.l.b16 %v1268
        %v3303 = vunpack.c.h.b16 %v1268
        %v3304 = vunpack.c.l.b16 %v1269
        %v3305 = vunpack.c.h.b16 %v1269
        %v3306 = vunpack.c.l.b16 %v1270
        %v3307 = vunpack.c.h.b16 %v1270
        %v3308 = vunpack.c.l.b16 %v1271
        %v3309 = vunpack.c.h.b16 %v1271
        %v3310 = vunpack.c.l.b16 %v1272
        %v3311 = vunpack.c.h.b16 %v1272
        %v3312 = vunpack.c.l.b16 %v1273
        %v3313 = vunpack.c.h.b16 %v1273
        %v3314 = vunpack.c.l.b16 %v1274
        %v3315 = vunpack.c.h.b16 %v1274
        %v3316 = vunpack.c.l.b16 %v1275
        %v3317 = vunpack.c.h.b16 %v1275
        %v3318 = vunpack.c.l.b16 %v1276
        %v3319 = vunpack.c.h.b16 %v1276
        %v3320 = vunpack.c.l.b16 %v1277
        %v3321 = vunpack.c.h.b16 %v1277
        %v3322 = vunpack.c.l.b16 %v1278
        %v3323 = vunpack.c.h.b16 %v1278
        %v3324 = vunpack.c.l.b16 %v1279
        %v3325 = vunpack.c.h.b16 %v1279
        %v3326 = vunpack.c.l.b16 %v1280
        %v3327 = vunpack.c.h.b16 %v1280
        %v3328 = vunpack.c.l.b16 %v1281
        %v3329 = vunpack.c.h.b16 %v1281
        %v3330 = vunpack.c.l.b16 %v1282
        %v3331 = vunpack.c.h.b16 %v1282
        %v3332 = vunpack.c.l.b16 %v1283
        %v3333 = vunpack.c.h.b16 %v1283
        %v3334 = vunpack.c.l.b16 %v1284
        %v3335 = vunpack.c.h.b16 %v1284
        %v3336 = vunpack.c.l.b16 %v1285
        %v3337 = vunpack.c.h.b16 %v1285
        %v3338 = vunpack.c.l.b16 %v1286
        %v3339 = vunpack.c.h.b16 %v1286
        %v3340 = vunpack.c.l.b16 %v1287
        %v3341 = vunpack.c.h.b16 %v1287
        %v3342 = vunpack.c.l.b16 %v1288
        %v3343 = vunpack.c.h.b16 %v1288
        %v3344 = vunpack.c.l.b16 %v1289
        %v3345 = vunpack.c.h.b16 %v1289
        %v3346 = vunpack.c.l.b16 %v1290
        %v3347 = vunpack.c.h.b16 %v1290
        %v3348 = vunpack.c.l.b16 %v1291
        %v3349 = vunpack.c.h.b16 %v1291
        %v3350 = vunpack.c.l.b16 %v1292
        %v3351 = vunpack.c.h.b16 %v1292
        %v3352 = vunpack.c.l.b16 %v1293
        %v3353 = vunpack.c.h.b16 %v1293
        %v3354 = vunpack.c.l.b16 %v1294
        %v3355 = vunpack.c.h.b16 %v1294
        %v3356 = vunpack.c.l.b16 %v1295
        %v3357 = vunpack.c.h.b16 %v1295
        %v3358 = vunpack.c.l.b16 %v1296
        %v3359 = vunpack.c.h.b16 %v1296
        %v3360 = vunpack.c.l.b16 %v1297
        %v3361 = vunpack.c.h.b16 %v1297
        %v3362 = vunpack.c.l.b16 %v1298
        %v3363 = vunpack.c.h.b16 %v1298
        %v3364 = vunpack.c.l.b16 %v1299
        %v3365 = vunpack.c.h.b16 %v1299
        %v3366 = vunpack.c.l.b16 %v1300
        %v3367 = vunpack.c.h.b16 %v1300
        %v3368 = vunpack.c.l.b16 %v1301
        %v3369 = vunpack.c.h.b16 %v1301
        %v3370 = vunpack.c.l.b16 %v1302
        %v3371 = vunpack.c.h.b16 %v1302
        %v3372 = vunpack.c.l.b16 %v1303
        %v3373 = vunpack.c.h.b16 %v1303
        %v3374 = vunpack.c.l.b16 %v1304
        %v3375 = vunpack.c.h.b16 %v1304
        %v3376 = vunpack.c.l.b16 %v1305
        %v3377 = vunpack.c.h.b16 %v1305
        %v3378 = vunpack.c.l.b16 %v1306
        %v3379 = vunpack.c.h.b16 %v1306
        %v3380 = vunpack.c.l.b16 %v1307
        %v3381 = vunpack.c.h.b16 %v1307
        %v3382 = vunpack.c.l.b16 %v1308
        %v3383 = vunpack.c.h.b16 %v1308
        %v3384 = vunpack.c.l.b16 %v1309
        %v3385 = vunpack.c.h.b16 %v1309
        %v3386 = vunpack.c.l.b16 %v1310
        %v3387 = vunpack.c.h.b16 %v1310
        %v3388 = vunpack.c.l.b16 %v1311
        %v3389 = vunpack.c.h.b16 %v1311
        %v3390 = vunpack.c.l.b16 %v1312
        %v3391 = vunpack.c.h.b16 %v1312
        %v3392 = vunpack.c.l.b16 %v1313
        %v3393 = vunpack.c.h.b16 %v1313
        %v3394 = vunpack.c.l.b16 %v1314
        %v3395 = vunpack.c.h.b16 %v1314
        %v3396 = vunpack.c.l.b16 %v1315
        %v3397 = vunpack.c.h.b16 %v1315
        %v3398 = vunpack.c.l.b16 %v1316
        %v3399 = vunpack.c.h.b16 %v1316
        %v3400 = vunpack.c.l.b16 %v1317
        %v3401 = vunpack.c.h.b16 %v1317
        %v3402 = vunpack.c.l.b16 %v1318
        %v3403 = vunpack.c.h.b16 %v1318
        %v3404 = vunpack.c.l.b16 %v1319
        %v3405 = vunpack.c.h.b16 %v1319
        %v3406 = vunpack.c.l.b16 %v1320
        %v3407 = vunpack.c.h.b16 %v1320
        %v3408 = vunpack.c.l.b16 %v1321
        %v3409 = vunpack.c.h.b16 %v1321
        %v3410 = vunpack.c.l.b16 %v1322
        %v3411 = vunpack.c.h.b16 %v1322
        %v3412 = vunpack.c.l.b16 %v1323
        %v3413 = vunpack.c.h.b16 %v1323
        %v3414 = vunpack.c.l.b16 %v1324
        %v3415 = vunpack.c.h.b16 %v1324
        %v3416 = vunpack.c.l.b16 %v1325
        %v3417 = vunpack.c.h.b16 %v1325
        %v3418 = vunpack.c.l.b16 %v1326
        %v3419 = vunpack.c.h.b16 %v1326
        %v3420 = vunpack.c.l.b16 %v1327
        %v3421 = vunpack.c.h.b16 %v1327
        %v3422 = vunpack.c.l.b16 %v1328
        %v3423 = vunpack.c.h.b16 %v1328
        %v3424 = vunpack.c.l.b16 %v1329
        %v3425 = vunpack.c.h.b16 %v1329
        %v3426 = vunpack.c.l.b16 %v1330
        %v3427 = vunpack.c.h.b16 %v1330
        %v3428 = vunpack.c.l.b16 %v1331
        %v3429 = vunpack.c.h.b16 %v1331
        %v3430 = vunpack.c.l.b16 %v1332
        %v3431 = vunpack.c.h.b16 %v1332
        %v3432 = vunpack.c.l.b16 %v1333
        %v3433 = vunpack.c.h.b16 %v1333
        %v3434 = vunpack.c.l.b16 %v1334
        %v3435 = vunpack.c.h.b16 %v1334
        %v3436 = vunpack.c.l.b16 %v1335
        %v3437 = vunpack.c.h.b16 %v1335
        %v3438 = vunpack.c.l.b16 %v1336
        %v3439 = vunpack.c.h.b16 %v1336
        %v3440 = vunpack.c.l.b16 %v1337
        %v3441 = vunpack.c.h.b16 %v1337
        %v3442 = vunpack.c.l.b16 %v1338
        %v3443 = vunpack.c.h.b16 %v1338
        %v3444 = vunpack.c.l.b16 %v1339
        %v3445 = vunpack.c.h.b16 %v1339
        %v3446 = vunpack.c.l.b16 %v1340
        %v3447 = vunpack.c.h.b16 %v1340
        %v3448 = vunpack.c.l.b16 %v1341
        %v3449 = vunpack.c.h.b16 %v1341
        %v3450 = vunpack.c.l.b16 %v1342
        %v3451 = vunpack.c.h.b16 %v1342
        %v3452 = vunpack.c.l.b16 %v1343
        %v3453 = vunpack.c.h.b16 %v1343
        %v3454 = vunpack.c.l.b16 %v1344
        %v3455 = vunpack.c.h.b16 %v1344
        %v3456 = vunpack.c.l.b16 %v1345
        %v3457 = vunpack.c.h.b16 %v1345
        %v3458 = vunpack.c.l.b16 %v1346
        %v3459 = vunpack.c.h.b16 %v1346
        %v3460 = vunpack.c.l.b16 %v1347
        %v3461 = vunpack.c.h.b16 %v1347
        %v3462 = vunpack.c.l.b16 %v1348
        %v3463 = vunpack.c.h.b16 %v1348
        %v3464 = vunpack.c.l.b16 %v1349
        %v3465 = vunpack.c.h.b16 %v1349
        %v3466 = vunpack.c.l.b16 %v1350
        %v3467 = vunpack.c.h.b16 %v1350
        %v3468 = vunpack.c.l.b16 %v1351
        %v3469 = vunpack.c.h.b16 %v1351
        %v3470 = vunpack.c.l.b16 %v1352
        %v3471 = vunpack.c.h.b16 %v1352
        %v3472 = vunpack.c.l.b16 %v1353
        %v3473 = vunpack.c.h.b16 %v1353
        %v3474 = vunpack.c.l.b16 %v1354
        %v3475 = vunpack.c.h.b16 %v1354
        %v3476 = vunpack.c.l.b16 %v1355
        %v3477 = vunpack.c.h.b16 %v1355
        %v3478 = vunpack.c.l.b16 %v1356
        %v3479 = vunpack.c.h.b16 %v1356
        %v3480 = vunpack.c.l.b16 %v1357
        %v3481 = vunpack.c.h.b16 %v1357
        %v3482 = vunpack.c.l.b16 %v1358
        %v3483 = vunpack.c.h.b16 %v1358
        %v3484 = vunpack.c.l.b16 %v1359
        %v3485 = vunpack.c.h.b16 %v1359
        %v3486 = vunpack.c.l.b16 %v1360
        %v3487 = vunpack.c.h.b16 %v1360
        %v3488 = vunpack.c.l.b16 %v1361
        %v3489 = vunpack.c.h.b16 %v1361
        %v3490 = vunpack.c.l.b16 %v1362
        %v3491 = vunpack.c.h.b16 %v1362
        %v3492 = vunpack.c.l.b16 %v1363
        %v3493 = vunpack.c.h.b16 %v1363
        %v3494 = vunpack.c.l.b16 %v1364
        %v3495 = vunpack.c.h.b16 %v1364
        %v3496 = vunpack.c.l.b16 %v1365
        %v3497 = vunpack.c.h.b16 %v1365
        %v3498 = vunpack.c.l.b16 %v1366
        %v3499 = vunpack.c.h.b16 %v1366
        %v3500 = vunpack.c.l.b16 %v1367
        %v3501 = vunpack.c.h.b16 %v1367
        %v3502 = vunpack.c.l.b16 %v1368
        %v3503 = vunpack.c.h.b16 %v1368
        %v3504 = vunpack.c.l.b16 %v1369
        %v3505 = vunpack.c.h.b16 %v1369
        %v3506 = vunpack.c.l.b16 %v1370
        %v3507 = vunpack.c.h.b16 %v1370
        %v3508 = vunpack.c.l.b16 %v1371
        %v3509 = vunpack.c.h.b16 %v1371
        %v3510 = vunpack.c.l.b16 %v1372
        %v3511 = vunpack.c.h.b16 %v1372
        %v3512 = vunpack.c.l.b16 %v1373
        %v3513 = vunpack.c.h.b16 %v1373
        %v3514 = vunpack.c.l.b16 %v1374
        %v3515 = vunpack.c.h.b16 %v1374
        %v3516 = vunpack.c.l.b16 %v1375
        %v3517 = vunpack.c.h.b16 %v1375
        %v3518 = vunpack.c.l.b16 %v1376
        %v3519 = vunpack.c.h.b16 %v1376
        %v3520 = vunpack.c.l.b16 %v1377
        %v3521 = vunpack.c.h.b16 %v1377
        %v3522 = vunpack.c.l.b16 %v1378
        %v3523 = vunpack.c.h.b16 %v1378
        %v3524 = vunpack.c.l.b16 %v1379
        %v3525 = vunpack.c.h.b16 %v1379
        %v3526 = vunpack.c.l.b16 %v1380
        %v3527 = vunpack.c.h.b16 %v1380
        %v3528 = vunpack.c.l.b16 %v1381
        %v3529 = vunpack.c.h.b16 %v1381
        %v3530 = vunpack.c.l.b16 %v1382
        %v3531 = vunpack.c.h.b16 %v1382
        %v3532 = vunpack.c.l.b16 %v1383
        %v3533 = vunpack.c.h.b16 %v1383
        %v3534 = vunpack.c.l.b16 %v1384
        %v3535 = vunpack.c.h.b16 %v1384
        %v3536 = vunpack.c.l.b16 %v1385
        %v3537 = vunpack.c.h.b16 %v1385
        %v3538 = vunpack.c.l.b16 %v1386
        %v3539 = vunpack.c.h.b16 %v1386
        %v3540 = vunpack.c.l.b16 %v1387
        %v3541 = vunpack.c.h.b16 %v1387
        %v3542 = vunpack.c.l.b16 %v1388
        %v3543 = vunpack.c.h.b16 %v1388
        %v3544 = vunpack.c.l.b16 %v1389
        %v3545 = vunpack.c.h.b16 %v1389
        %v3546 = vunpack.c.l.b16 %v1390
        %v3547 = vunpack.c.h.b16 %v1390
        %v3548 = vunpack.c.l.b16 %v1391
        %v3549 = vunpack.c.h.b16 %v1391
        %v3550 = vunpack.c.l.b16 %v1392
        %v3551 = vunpack.c.h.b16 %v1392
        %v3552 = vunpack.c.l.b16 %v1393
        %v3553 = vunpack.c.h.b16 %v1393
        %v3554 = vunpack.c.l.b16 %v1394
        %v3555 = vunpack.c.h.b16 %v1394
        %v3556 = vunpack.c.l.b16 %v1395
        %v3557 = vunpack.c.h.b16 %v1395
        %v3558 = vunpack.c.l.b16 %v1396
        %v3559 = vunpack.c.h.b16 %v1396
        %v3560 = vunpack.c.l.b16 %v1397
        %v3561 = vunpack.c.h.b16 %v1397
        %v3562 = vunpack.c.l.b16 %v1398
        %v3563 = vunpack.c.h.b16 %v1398
        %v3564 = vunpack.c.l.b16 %v1399
        %v3565 = vunpack.c.h.b16 %v1399
        %v3566 = vunpack.c.l.b16 %v1400
        %v3567 = vunpack.c.h.b16 %v1400
        %v3568 = vunpack.c.l.b16 %v1401
        %v3569 = vunpack.c.h.b16 %v1401
        %v3570 = vunpack.c.l.b16 %v1402
        %v3571 = vunpack.c.h.b16 %v1402
        %v3572 = vunpack.c.l.b16 %v1403
        %v3573 = vunpack.c.h.b16 %v1403
        %v3574 = vunpack.c.l.b16 %v1404
        %v3575 = vunpack.c.h.b16 %v1404
        %v3576 = vunpack.c.l.b16 %v1405
        %v3577 = vunpack.c.h.b16 %v1405
        %v3578 = vunpack.c.l.b16 %v1406
        %v3579 = vunpack.c.h.b16 %v1406
        %v3580 = vunpack.c.l.b16 %v1407
        %v3581 = vunpack.c.h.b16 %v1407
        %v3582 = vunpack.c.l.b16 %v1408
        %v3583 = vunpack.c.h.b16 %v1408
        %v3584 = vunpack.c.l.b16 %v1409
        %v3585 = vunpack.c.h.b16 %v1409
        %v3586 = vunpack.c.l.b16 %v1410
        %v3587 = vunpack.c.h.b16 %v1410
        %v3588 = vunpack.c.l.b16 %v1411
        %v3589 = vunpack.c.h.b16 %v1411
        %v3590 = vunpack.c.l.b16 %v1412
        %v3591 = vunpack.c.h.b16 %v1412
        %v3592 = vunpack.c.l.b16 %v1413
        %v3593 = vunpack.c.h.b16 %v1413
        %v3594 = vunpack.c.l.b16 %v1414
        %v3595 = vunpack.c.h.b16 %v1414
        %v3596 = vunpack.c.l.b16 %v1415
        %v3597 = vunpack.c.h.b16 %v1415
        %v3598 = vunpack.c.l.b16 %v1416
        %v3599 = vunpack.c.h.b16 %v1416
        %v3600 = vunpack.c.l.b16 %v1417
        %v3601 = vunpack.c.h.b16 %v1417
        %v3602 = vunpack.c.l.b16 %v1418
        %v3603 = vunpack.c.h.b16 %v1418
        %v3604 = vunpack.c.l.b16 %v1419
        %v3605 = vunpack.c.h.b16 %v1419
        %v3606 = vunpack.c.l.b16 %v1420
        %v3607 = vunpack.c.h.b16 %v1420
        %v3608 = vunpack.c.l.b16 %v1421
        %v3609 = vunpack.c.h.b16 %v1421
        %v3610 = vunpack.c.l.b16 %v1422
        %v3611 = vunpack.c.h.b16 %v1422
        %v3612 = vunpack.c.l.b16 %v1423
        %v3613 = vunpack.c.h.b16 %v1423
        %v3614 = vunpack.c.l.b16 %v1424
        %v3615 = vunpack.c.h.b16 %v1424
        %v3616 = vunpack.c.l.b16 %v1425
        %v3617 = vunpack.c.h.b16 %v1425
        %v3618 = vunpack.c.l.b16 %v1426
        %v3619 = vunpack.c.h.b16 %v1426
        %v3620 = vunpack.c.l.b16 %v1427
        %v3621 = vunpack.c.h.b16 %v1427
        %v3622 = vunpack.c.l.b16 %v1428
        %v3623 = vunpack.c.h.b16 %v1428
        %v3624 = vunpack.c.l.b16 %v1429
        %v3625 = vunpack.c.h.b16 %v1429
        %v3626 = vunpack.c.l.b16 %v1430
        %v3627 = vunpack.c.h.b16 %v1430
        %v3628 = vunpack.c.l.b16 %v1431
        %v3629 = vunpack.c.h.b16 %v1431
        %v3630 = vunpack.c.l.b16 %v1432
        %v3631 = vunpack.c.h.b16 %v1432
        %v3632 = vunpack.c.l.b16 %v1433
        %v3633 = vunpack.c.h.b16 %v1433
        %v3634 = vunpack.c.l.b16 %v1434
        %v3635 = vunpack.c.h.b16 %v1434
        %v3636 = vunpack.c.l.b16 %v1435
        %v3637 = vunpack.c.h.b16 %v1435
        %v3638 = vunpack.c.l.b16 %v1436
        %v3639 = vunpack.c.h.b16 %v1436
        %v3640 = vunpack.c.l.b16 %v1437
        %v3641 = vunpack.c.h.b16 %v1437
        %v3642 = vunpack.c.l.b16 %v1438
        %v3643 = vunpack.c.h.b16 %v1438
        %v3644 = vunpack.c.l.b16 %v1439
        %v3645 = vunpack.c.h.b16 %v1439
        %v3646 = vunpack.c.l.b16 %v1440
        %v3647 = vunpack.c.h.b16 %v1440
        %v3648 = vunpack.c.l.b16 %v1441
        %v3649 = vunpack.c.h.b16 %v1441
        %v3650 = vunpack.c.l.b16 %v1442
        %v3651 = vunpack.c.h.b16 %v1442
        %v3652 = vunpack.c.l.b16 %v1443
        %v3653 = vunpack.c.h.b16 %v1443
        %v3654 = vunpack.c.l.b16 %v1444
        %v3655 = vunpack.c.h.b16 %v1444
        %v3656 = vunpack.c.l.b16 %v1445
        %v3657 = vunpack.c.h.b16 %v1445
        %v3658 = vunpack.c.l.b16 %v1446
        %v3659 = vunpack.c.h.b16 %v1446
        %v3660 = vunpack.c.l.b16 %v1447
        %v3661 = vunpack.c.h.b16 %v1447
        %v3662 = vunpack.c.l.b16 %v1448
        %v3663 = vunpack.c.h.b16 %v1448
        %v3664 = vunpack.c.l.b16 %v1449
        %v3665 = vunpack.c.h.b16 %v1449
        %v3666 = vunpack.c.l.b16 %v1450
        %v3667 = vunpack.c.h.b16 %v1450
        %v3668 = vunpack.c.l.b16 %v1451
        %v3669 = vunpack.c.h.b16 %v1451
        %v3670 = vunpack.c.l.b16 %v1452
        %v3671 = vunpack.c.h.b16 %v1452
        %v3672 = vunpack.c.l.b16 %v1453
        %v3673 = vunpack.c.h.b16 %v1453
        %v3674 = vunpack.c.l.b16 %v1454
        %v3675 = vunpack.c.h.b16 %v1454
        %v3676 = vunpack.c.l.b16 %v1455
        %v3677 = vunpack.c.h.b16 %v1455
        %v3678 = vunpack.c.l.b16 %v1456
        %v3679 = vunpack.c.h.b16 %v1456
        %v3680 = vunpack.c.l.b16 %v1457
        %v3681 = vunpack.c.h.b16 %v1457
        %v3682 = vunpack.c.l.b16 %v1458
        %v3683 = vunpack.c.h.b16 %v1458
        %v3684 = vunpack.c.l.b16 %v1459
        %v3685 = vunpack.c.h.b16 %v1459
        %v3686 = vunpack.c.l.b16 %v1460
        %v3687 = vunpack.c.h.b16 %v1460
        %v3688 = vunpack.c.l.b16 %v1461
        %v3689 = vunpack.c.h.b16 %v1461
        %v3690 = vunpack.c.l.b16 %v1462
        %v3691 = vunpack.c.h.b16 %v1462
        %v3692 = vunpack.c.l.b16 %v1463
        %v3693 = vunpack.c.h.b16 %v1463
        %v3694 = vunpack.c.l.b16 %v1464
        %v3695 = vunpack.c.h.b16 %v1464
        %v3696 = vunpack.c.l.b16 %v1465
        %v3697 = vunpack.c.h.b16 %v1465
        %v3698 = vunpack.c.l.b16 %v1466
        %v3699 = vunpack.c.h.b16 %v1466
        %v3700 = vunpack.c.l.b16 %v1467
        %v3701 = vunpack.c.h.b16 %v1467
        %v3702 = vunpack.c.l.b16 %v1468
        %v3703 = vunpack.c.h.b16 %v1468
        %v3704 = vunpack.c.l.b16 %v1469
        %v3705 = vunpack.c.h.b16 %v1469
        %v3706 = vunpack.c.l.b16 %v1470
        %v3707 = vunpack.c.h.b16 %v1470
        %v3708 = vunpack.c.l.b16 %v1471
        %v3709 = vunpack.c.h.b16 %v1471
        %v3710 = vunpack.c.l.b16 %v1472
        %v3711 = vunpack.c.h.b16 %v1472
        %v3712 = vunpack.c.l.b16 %v1473
        %v3713 = vunpack.c.h.b16 %v1473
        %v3714 = vunpack.c.l.b16 %v1474
        %v3715 = vunpack.c.h.b16 %v1474
        %v3716 = vunpack.c.l.b16 %v1475
        %v3717 = vunpack.c.h.b16 %v1475
        %v3718 = vunpack.c.l.b16 %v1476
        %v3719 = vunpack.c.h.b16 %v1476
        %v3720 = vunpack.c.l.b16 %v1477
        %v3721 = vunpack.c.h.b16 %v1477
        %v3722 = vunpack.c.l.b16 %v1478
        %v3723 = vunpack.c.h.b16 %v1478
        %v3724 = vunpack.c.l.b16 %v1479
        %v3725 = vunpack.c.h.b16 %v1479
        %v3726 = vunpack.c.l.b16 %v1480
        %v3727 = vunpack.c.h.b16 %v1480
        %v3728 = vunpack.c.l.b16 %v1481
        %v3729 = vunpack.c.h.b16 %v1481
        %v3730 = vunpack.c.l.b16 %v1482
        %v3731 = vunpack.c.h.b16 %v1482
        %v3732 = vunpack.c.l.b16 %v1483
        %v3733 = vunpack.c.h.b16 %v1483
        %v3734 = vunpack.c.l.b16 %v1484
        %v3735 = vunpack.c.h.b16 %v1484
        %v3736 = vunpack.c.l.b16 %v1485
        %v3737 = vunpack.c.h.b16 %v1485
        %v3738 = vunpack.c.l.b16 %v1486
        %v3739 = vunpack.c.h.b16 %v1486
        %v3740 = vunpack.c.l.b16 %v1487
        %v3741 = vunpack.c.h.b16 %v1487
        %v3742 = vunpack.c.l.b16 %v1488
        %v3743 = vunpack.c.h.b16 %v1488
        %v3744 = vunpack.c.l.b16 %v1489
        %v3745 = vunpack.c.h.b16 %v1489
        %v3746 = vunpack.c.l.b16 %v1490
        %v3747 = vunpack.c.h.b16 %v1490
        %v3748 = vunpack.c.l.b16 %v1491
        %v3749 = vunpack.c.h.b16 %v1491
        %v3750 = vunpack.c.l.b16 %v1492
        %v3751 = vunpack.c.h.b16 %v1492
        %v3752 = vunpack.c.l.b16 %v1493
        %v3753 = vunpack.c.h.b16 %v1493
        %v3754 = vunpack.c.l.b16 %v1494
        %v3755 = vunpack.c.h.b16 %v1494
        %v3756 = vunpack.c.l.b16 %v1495
        %v3757 = vunpack.c.h.b16 %v1495
        %v3758 = vunpack.c.l.b16 %v1496
        %v3759 = vunpack.c.h.b16 %v1496
        %v3760 = vunpack.c.l.b16 %v1497
        %v3761 = vunpack.c.h.b16 %v1497
        %v3762 = vunpack.c.l.b16 %v1498
        %v3763 = vunpack.c.h.b16 %v1498
        %v3764 = vunpack.c.l.b16 %v1499
        %v3765 = vunpack.c.h.b16 %v1499
        %v3766 = vunpack.c.l.b16 %v1500
        %v3767 = vunpack.c.h.b16 %v1500
        %v3768 = vunpack.c.l.b16 %v1501
        %v3769 = vunpack.c.h.b16 %v1501
        %v3770 = vunpack.c.l.b16 %v1502
        %v3771 = vunpack.c.h.b16 %v1502
        %v3772 = vunpack.c.l.b16 %v1503
        %v3773 = vunpack.c.h.b16 %v1503
        %v3774 = vunpack.c.l.b16 %v1504
        %v3775 = vunpack.c.h.b16 %v1504
        %v3776 = vunpack.c.l.b16 %v1505
        %v3777 = vunpack.c.h.b16 %v1505
        %v3778 = vunpack.c.l.b16 %v1506
        %v3779 = vunpack.c.h.b16 %v1506
        %v3780 = vunpack.c.l.b16 %v1507
        %v3781 = vunpack.c.h.b16 %v1507
        %v3782 = vunpack.c.l.b16 %v1508
        %v3783 = vunpack.c.h.b16 %v1508
        %v3784 = vunpack.c.l.b16 %v1509
        %v3785 = vunpack.c.h.b16 %v1509
        %v3786 = vunpack.c.l.b16 %v1510
        %v3787 = vunpack.c.h.b16 %v1510
        %v3788 = vunpack.c.l.b16 %v1511
        %v3789 = vunpack.c.h.b16 %v1511
        %v3790 = vunpack.c.l.b16 %v1512
        %v3791 = vunpack.c.h.b16 %v1512
        %v3792 = vunpack.c.l.b16 %v1513
        %v3793 = vunpack.c.h.b16 %v1513
        %v3794 = vunpack.c.l.b16 %v1514
        %v3795 = vunpack.c.h.b16 %v1514
        %v3796 = vunpack.c.l.b16 %v1515
        %v3797 = vunpack.c.h.b16 %v1515
        %v3798 = vunpack.c.l.b16 %v1516
        %v3799 = vunpack.c.h.b16 %v1516
        %v3800 = vunpack.c.l.b16 %v1517
        %v3801 = vunpack.c.h.b16 %v1517
        %v3802 = vunpack.c.l.b16 %v1518
        %v3803 = vunpack.c.h.b16 %v1518
        %v3804 = vunpack.c.l.b16 %v1519
        %v3805 = vunpack.c.h.b16 %v1519
        %v3806 = vunpack.c.l.b16 %v1520
        %v3807 = vunpack.c.h.b16 %v1520
        %v3808 = vunpack.c.l.b16 %v1521
        %v3809 = vunpack.c.h.b16 %v1521
        %v3810 = vunpack.c.l.b16 %v1522
        %v3811 = vunpack.c.h.b16 %v1522
        %v3812 = vunpack.c.l.b16 %v1523
        %v3813 = vunpack.c.h.b16 %v1523
        %v3814 = vunpack.c.l.b16 %v1524
        %v3815 = vunpack.c.h.b16 %v1524
        %v3816 = vunpack.c.l.b16 %v1525
        %v3817 = vunpack.c.h.b16 %v1525
        %v3818 = vunpack.c.l.b16 %v1526
        %v3819 = vunpack.c.h.b16 %v1526
        %v3820 = vunpack.c.l.b16 %v1527
        %v3821 = vunpack.c.h.b16 %v1527
        %v3822 = vunpack.c.l.b16 %v1528
        %v3823 = vunpack.c.h.b16 %v1528
        %v3824 = vunpack.c.l.b16 %v1529
        %v3825 = vunpack.c.h.b16 %v1529
        %v3826 = vunpack.c.l.b16 %v1530
        %v3827 = vunpack.c.h.b16 %v1530
        %v3828 = vunpack.c.l.b16 %v1531
        %v3829 = vunpack.c.h.b16 %v1531
        %v3830 = vunpack.c.l.b16 %v1532
        %v3831 = vunpack.c.h.b16 %v1532
        %v3832 = vunpack.c.l.b16 %v1533
        %v3833 = vunpack.c.h.b16 %v1533
        %v3834 = vunpack.c.l.b16 %v1534
        %v3835 = vunpack.c.h.b16 %v1534
        %v3836 = vunpack.c.l.b16 %v1535
        %v3837 = vunpack.c.h.b16 %v1535
        %v3838 = vunpack.c.l.b16 %v1536
        %v3839 = vunpack.c.h.b16 %v1536
        %v3840 = vunpack.c.l.b16 %v1537
        %v3841 = vunpack.c.h.b16 %v1537
        %v3842 = vunpack.c.l.b16 %v1538
        %v3843 = vunpack.c.h.b16 %v1538
        %v3844 = vunpack.c.l.b16 %v1539
        %v3845 = vunpack.c.h.b16 %v1539
        %v3846 = vunpack.c.l.b16 %v1540
        %v3847 = vunpack.c.h.b16 %v1540
        %v3848 = vunpack.c.l.b16 %v1541
        %v3849 = vunpack.c.h.b16 %v1541
        %v3850 = vunpack.c.l.b16 %v1542
        %v3851 = vunpack.c.h.b16 %v1542
        %v3852 = vunpack.c.l.b16 %v1543
        %v3853 = vunpack.c.h.b16 %v1543
        %v3854 = vunpack.c.l.b16 %v1544
        %v3855 = vunpack.c.h.b16 %v1544
        %v3856 = vunpack.c.l.b16 %v1545
        %v3857 = vunpack.c.h.b16 %v1545
        %v3858 = vunpack.c.l.b16 %v1546
        %v3859 = vunpack.c.h.b16 %v1546
        %v3860 = vunpack.c.l.b16 %v1547
        %v3861 = vunpack.c.h.b16 %v1547
        %v3862 = vunpack.c.l.b16 %v1548
        %v3863 = vunpack.c.h.b16 %v1548
        %v3864 = vunpack.c.l.b16 %v1549
        %v3865 = vunpack.c.h.b16 %v1549
        %v3866 = vunpack.c.l.b16 %v1550
        %v3867 = vunpack.c.h.b16 %v1550
        %v3868 = vunpack.c.l.b16 %v1551
        %v3869 = vunpack.c.h.b16 %v1551
        %v3870 = vunpack.c.l.b16 %v1552
        %v3871 = vunpack.c.h.b16 %v1552
        %v3872 = vunpack.c.l.b16 %v1553
        %v3873 = vunpack.c.h.b16 %v1553
        %v3874 = vunpack.c.l.b16 %v1554
        %v3875 = vunpack.c.h.b16 %v1554
        %v3876 = vunpack.c.l.b16 %v1555
        %v3877 = vunpack.c.h.b16 %v1555
        %v3878 = vunpack.c.l.b16 %v1556
        %v3879 = vunpack.c.h.b16 %v1556
        %v3880 = vunpack.c.l.b16 %v1557
        %v3881 = vunpack.c.h.b16 %v1557
        %v3882 = vunpack.c.l.b16 %v1558
        %v3883 = vunpack.c.h.b16 %v1558
        %v3884 = vunpack.c.l.b16 %v1559
        %v3885 = vunpack.c.h.b16 %v1559
        %v3886 = vunpack.c.l.b16 %v1560
        %v3887 = vunpack.c.h.b16 %v1560
        %v3888 = vunpack.c.l.b16 %v1561
        %v3889 = vunpack.c.h.b16 %v1561
        %v3890 = vunpack.c.l.b16 %v1562
        %v3891 = vunpack.c.h.b16 %v1562
        %v3892 = vunpack.c.l.b16 %v1563
        %v3893 = vunpack.c.h.b16 %v1563
        %v3894 = vunpack.c.l.b16 %v1564
        %v3895 = vunpack.c.h.b16 %v1564
        %v3896 = vunpack.c.l.b16 %v1565
        %v3897 = vunpack.c.h.b16 %v1565
        %v3898 = vunpack.c.l.b16 %v1566
        %v3899 = vunpack.c.h.b16 %v1566
        %v3900 = vunpack.c.l.b16 %v1567
        %v3901 = vunpack.c.h.b16 %v1567
        %v3902 = vunpack.c.l.b16 %v1568
        %v3903 = vunpack.c.h.b16 %v1568
        %v3904 = vunpack.c.l.b16 %v1569
        %v3905 = vunpack.c.h.b16 %v1569
        %v3906 = vunpack.c.l.b16 %v1570
        %v3907 = vunpack.c.h.b16 %v1570
        %v3908 = vunpack.c.l.b16 %v1571
        %v3909 = vunpack.c.h.b16 %v1571
        %v3910 = vunpack.c.l.b16 %v1572
        %v3911 = vunpack.c.h.b16 %v1572
        %v3912 = vunpack.c.l.b16 %v1573
        %v3913 = vunpack.c.h.b16 %v1573
        %v3914 = vunpack.c.l.b16 %v1574
        %v3915 = vunpack.c.h.b16 %v1574
        %v3916 = vunpack.c.l.b16 %v1575
        %v3917 = vunpack.c.h.b16 %v1575
        %v3918 = vunpack.c.l.b16 %v1576
        %v3919 = vunpack.c.h.b16 %v1576
        %v3920 = vunpack.c.l.b16 %v1577
        %v3921 = vunpack.c.h.b16 %v1577
        %v3922 = vunpack.c.l.b16 %v1578
        %v3923 = vunpack.c.h.b16 %v1578
        %v3924 = vunpack.c.l.b16 %v1579
        %v3925 = vunpack.c.h.b16 %v1579
        %v3926 = vunpack.c.l.b16 %v1580
        %v3927 = vunpack.c.h.b16 %v1580
        %v3928 = vunpack.c.l.b16 %v1581
        %v3929 = vunpack.c.h.b16 %v1581
        %v3930 = vunpack.c.l.b16 %v1582
        %v3931 = vunpack.c.h.b16 %v1582
        %v3932 = vunpack.c.l.b16 %v1583
        %v3933 = vunpack.c.h.b16 %v1583
        %v3934 = vunpack.c.l.b16 %v1584
        %v3935 = vunpack.c.h.b16 %v1584
        %v3936 = vunpack.c.l.b16 %v1585
        %v3937 = vunpack.c.h.b16 %v1585
        %v3938 = vunpack.c.l.b16 %v1586
        %v3939 = vunpack.c.h.b16 %v1586
        %v3940 = vunpack.c.l.b16 %v1587
        %v3941 = vunpack.c.h.b16 %v1587
        %v3942 = vunpack.c.l.b16 %v1588
        %v3943 = vunpack.c.h.b16 %v1588
        %v3944 = vunpack.c.l.b16 %v1589
        %v3945 = vunpack.c.h.b16 %v1589
        %v3946 = vunpack.c.l.b16 %v1590
        %v3947 = vunpack.c.h.b16 %v1590
        %v3948 = vunpack.c.l.b16 %v1591
        %v3949 = vunpack.c.h.b16 %v1591
        %v3950 = vunpack.c.l.b16 %v1592
        %v3951 = vunpack.c.h.b16 %v1592
        %v3952 = vunpack.c.l.b16 %v1593
        %v3953 = vunpack.c.h.b16 %v1593
        %v3954 = vunpack.c.l.b16 %v1594
        %v3955 = vunpack.c.h.b16 %v1594
        %v3956 = vunpack.c.l.b16 %v1595
        %v3957 = vunpack.c.h.b16 %v1595
        %v3958 = vunpack.c.l.b16 %v1596
        %v3959 = vunpack.c.h.b16 %v1596
        %v3960 = vunpack.c.l.b16 %v1597
        %v3961 = vunpack.c.h.b16 %v1597
        %v3962 = vunpack.c.l.b16 %v1598
        %v3963 = vunpack.c.h.b16 %v1598
        %v3964 = vunpack.c.l.b16 %v1599
        %v3965 = vunpack.c.h.b16 %v1599
        %v3966 = vunpack.c.l.b16 %v1600
        %v3967 = vunpack.c.h.b16 %v1600
        %v3968 = vunpack.c.l.b16 %v1601
        %v3969 = vunpack.c.h.b16 %v1601
        %v3970 = vunpack.c.l.b16 %v1602
        %v3971 = vunpack.c.h.b16 %v1602
        %v3972 = vunpack.c.l.b16 %v1603
        %v3973 = vunpack.c.h.b16 %v1603
        %v3974 = vunpack.c.l.b16 %v1604
        %v3975 = vunpack.c.h.b16 %v1604
        %v3976 = vunpack.c.l.b16 %v1605
        %v3977 = vunpack.c.h.b16 %v1605
        %v3978 = vunpack.c.l.b16 %v1606
        %v3979 = vunpack.c.h.b16 %v1606
        %v3980 = vunpack.c.l.b16 %v1607
        %v3981 = vunpack.c.h.b16 %v1607
        %v3982 = vunpack.c.l.b16 %v1608
        %v3983 = vunpack.c.h.b16 %v1608
        %v3984 = vunpack.c.l.b16 %v1609
        %v3985 = vunpack.c.h.b16 %v1609
        %v3986 = vpack.c.b16 %v2462, %v2450
        %v3987 = vpack.c.b16 %v2463, %v2451
        %v3988 = vpack.c.b16 %v2464, %v2452
        %v3989 = vpack.c.b16 %v2465, %v2453
        %v3990 = vpack.c.b16 %v2466, %v2454
        %v3991 = vpack.c.b16 %v2467, %v2455
        %v3992 = vpack.c.b16 %v2468, %v2456
        %v3993 = vpack.c.b16 %v2469, %v2457
        %v3994 = vpack.c.b16 %v2470, %v2458
        %v3995 = vpack.c.b16 %v2471, %v2459
        %v3996 = vpack.c.b16 %v2472, %v2460
        %v3997 = vpack.c.b16 %v2473, %v2461
        %v3998 = vpack.c.b16 %v2486, %v2474
        %v3999 = vpack.c.b16 %v2487, %v2475
        %v4000 = vpack.c.b16 %v2488, %v2476
        %v4001 = vpack.c.b16 %v2489, %v2477
        %v4002 = vpack.c.b16 %v2490, %v2478
        %v4003 = vpack.c.b16 %v2491, %v2479
        %v4004 = vpack.c.b16 %v2492, %v2480
        %v4005 = vpack.c.b16 %v2493, %v2481
        %v4006 = vpack.c.b16 %v2494, %v2482
        %v4007 = vpack.c.b16 %v2495, %v2483
        %v4008 = vpack.c.b16 %v2496, %v2484
        %v4009 = vpack.c.b16 %v2497, %v2485
        %v4010 = vpack.c.b16 %v2510, %v2498
        %v4011 = vpack.c.b16 %v2511, %v2499
        %v4012 = vpack.c.b16 %v2512, %v2500
        %v4013 = vpack.c.b16 %v2513, %v2501
        %v4014 = vpack.c.b16 %v2514, %v2502
        %v4015 = vpack.c.b16 %v2515, %v2503
        %v4016 = vpack.c.b16 %v2516, %v2504
        %v4017 = vpack.c.b16 %v2517, %v2505
        %v4018 = vpack.c.b16 %v2518, %v2506
        %v4019 = vpack.c.b16 %v2519, %v2507
        %v4020 = vpack.c.b16 %v2520, %v2508
        %v4021 = vpack.c.b16 %v2521, %v2509
        %v4022 = vpack.c.b16 %v2534, %v2522
        %v4023 = vpack.c.b16 %v2535, %v2523
        %v4024 = vpack.c.b16 %v2536, %v2524
        %v4025 = vpack.c.b16 %v2537, %v2525
        %v4026 = vpack.c.b16 %v2538, %v2526
        %v4027 = vpack.c.b16 %v2539, %v2527
        %v4028 = vpack.c.b16 %v2540, %v2528
        %v4029 = vpack.c.b16 %v2541, %v2529
        %v4030 = vpack.c.b16 %v2542, %v2530
        %v4031 = vpack.c.b16 %v2543, %v2531
        %v4032 = vpack.c.b16 %v2544, %v2532
        %v4033 = vpack.c.b16 %v2545, %v2533
        %v4034 = vpack.c.b16 %v2558, %v2546
        %v4035 = vpack.c.b16 %v2559, %v2547
        %v4036 = vpack.c.b16 %v2560, %v2548
        %v4037 = vpack.c.b16 %v2561, %v2549
        %v4038 = vpack.c.b16 %v2562, %v2550
        %v4039 = vpack.c.b16 %v2563, %v2551
        %v4040 = vpack.c.b16 %v2564, %v2552
        %v4041 = vpack.c.b16 %v2565, %v2553
        %v4042 = vpack.c.b16 %v2566, %v2554
        %v4043 = vpack.c.b16 %v2567, %v2555
        %v4044 = vpack.c.b16 %v2568, %v2556
        %v4045 = vpack.c.b16 %v2569, %v2557
        %v4046 = vpack.c.b16 %v2582, %v2570
        %v4047 = vpack.c.b16 %v2583, %v2571
        %v4048 = vpack.c.b16 %v2584, %v2572
        %v4049 = vpack.c.b16 %v2585, %v2573
        %v4050 = vpack.c.b16 %v2586, %v2574
        %v4051 = vpack.c.b16 %v2587, %v2575
        %v4052 = vpack.c.b16 %v2588, %v2576
        %v4053 = vpack.c.b16 %v2589, %v2577
        %v4054 = vpack.c.b16 %v2590, %v2578
        %v4055 = vpack.c.b16 %v2591, %v2579
        %v4056 = vpack.c.b16 %v2592, %v2580
        %v4057 = vpack.c.b16 %v2593, %v2581
        %v4058 = vpack.c.b16 %v2606, %v2594
        %v4059 = vpack.c.b16 %v2607, %v2595
        %v4060 = vpack.c.b16 %v2608, %v2596
        %v4061 = vpack.c.b16 %v2609, %v2597
        %v4062 = vpack.c.b16 %v2610, %v2598
        %v4063 = vpack.c.b16 %v2611, %v2599
        %v4064 = vpack.c.b16 %v2612, %v2600
        %v4065 = vpack.c.b16 %v2613, %v2601
        %v4066 = vpack.c.b16 %v2614, %v2602
        %v4067 = vpack.c.b16 %v2615, %v2603
        %v4068 = vpack.c.b16 %v2616, %v2604
        %v4069 = vpack.c.b16 %v2617, %v2605
        %v4070 = vpack.c.b16 %v2630, %v2618
        %v4071 = vpack.c.b16 %v2631, %v2619
        %v4072 = vpack.c.b16 %v2632, %v2620
        %v4073 = vpack.c.b16 %v2633, %v2621
        %v4074 = vpack.c.b16 %v2634, %v2622
        %v4075 = vpack.c.b16 %v2635, %v2623
        %v4076 = vpack.c.b16 %v2636, %v2624
        %v4077 = vpack.c.b16 %v2637, %v2625
        %v4078 = vpack.c.b16 %v2638, %v2626
        %v4079 = vpack.c.b16 %v2639, %v2627
        %v4080 = vpack.c.b16 %v2640, %v2628
        %v4081 = vpack.c.b16 %v2641, %v2629
        %v4082 = vpack.c.b16 %v2654, %v2642
        %v4083 = vpack.c.b16 %v2655, %v2643
        %v4084 = vpack.c.b16 %v2656, %v2644
        %v4085 = vpack.c.b16 %v2657, %v2645
        %v4086 = vpack.c.b16 %v2658, %v2646
        %v4087 = vpack.c.b16 %v2659, %v2647
        %v4088 = vpack.c.b16 %v2660, %v2648
        %v4089 = vpack.c.b16 %v2661, %v2649
        %v4090 = vpack.c.b16 %v2662, %v2650
        %v4091 = vpack.c.b16 %v2663, %v2651
        %v4092 = vpack.c.b16 %v2664, %v2652
        %v4093 = vpack.c.b16 %v2665, %v2653
        %v4094 = vpack.c.b16 %v2678, %v2666
        %v4095 = vpack.c.b16 %v2679, %v2667
        %v4096 = vpack.c.b16 %v2680, %v2668
        %v4097 = vpack.c.b16 %v2681, %v2669
        %v4098 = vpack.c.b16 %v2682, %v2670
        %v4099 = vpack.c.b16 %v2683, %v2671
        %v4100 = vpack.c.b16 %v2684, %v2672
        %v4101 = vpack.c.b16 %v2685, %v2673
        %v4102 = vpack.c.b16 %v2686, %v2674
        %v4103 = vpack.c.b16 %v2687, %v2675
        %v4104 = vpack.c.b16 %v2688, %v2676
        %v4105 = vpack.c.b16 %v2689, %v2677
        %v4106 = vpack.c.b16 %v2702, %v2690
        %v4107 = vpack.c.b16 %v2703, %v2691
        %v4108 = vpack.c.b16 %v2704, %v2692
        %v4109 = vpack.c.b16 %v2705, %v2693
        %v4110 = vpack.c.b16 %v2706, %v2694
        %v4111 = vpack.c.b16 %v2707, %v2695
        %v4112 = vpack.c.b16 %v2708, %v2696
        %v4113 = vpack.c.b16 %v2709, %v2697
        %v4114 = vpack.c.b16 %v2710, %v2698
        %v4115 = vpack.c.b16 %v2711, %v2699
        %v4116 = vpack.c.b16 %v2712, %v2700
        %v4117 = vpack.c.b16 %v2713, %v2701
        %v4118 = vpack.c.b16 %v2726, %v2714
        %v4119 = vpack.c.b16 %v2727, %v2715
        %v4120 = vpack.c.b16 %v2728, %v2716
        %v4121 = vpack.c.b16 %v2729, %v2717
        %v4122 = vpack.c.b16 %v2730, %v2718
        %v4123 = vpack.c.b16 %v2731, %v2719
        %v4124 = vpack.c.b16 %v2732, %v2720
        %v4125 = vpack.c.b16 %v2733, %v2721
        %v4126 = vpack.c.b16 %v2734, %v2722
        %v4127 = vpack.c.b16 %v2735, %v2723
        %v4128 = vpack.c.b16 %v2736, %v2724
        %v4129 = vpack.c.b16 %v2737, %v2725
        %v4130 = vpack.c.b16 %v2750, %v2738
        %v4131 = vpack.c.b16 %v2751, %v2739
        %v4132 = vpack.c.b16 %v2752, %v2740
        %v4133 = vpack.c.b16 %v2753, %v2741
        %v4134 = vpack.c.b16 %v2754, %v2742
        %v4135 = vpack.c.b16 %v2755, %v2743
        %v4136 = vpack.c.b16 %v2756, %v2744
        %v4137 = vpack.c.b16 %v2757, %v2745
        %v4138 = vpack.c.b16 %v2758, %v2746
        %v4139 = vpack.c.b16 %v2759, %v2747
        %v4140 = vpack.c.b16 %v2760, %v2748
        %v4141 = vpack.c.b16 %v2761, %v2749
        %v4142 = vpack.c.b16 %v2774, %v2762
        %v4143 = vpack.c.b16 %v2775, %v2763
        %v4144 = vpack.c.b16 %v2776, %v2764
        %v4145 = vpack.c.b16 %v2777, %v2765
        %v4146 = vpack.c.b16 %v2778, %v2766
        %v4147 = vpack.c.b16 %v2779, %v2767
        %v4148 = vpack.c.b16 %v2780, %v2768
        %v4149 = vpack.c.b16 %v2781, %v2769
        %v4150 = vpack.c.b16 %v2782, %v2770
        %v4151 = vpack.c.b16 %v2783, %v2771
        %v4152 = vpack.c.b16 %v2784, %v2772
        %v4153 = vpack.c.b16 %v2785, %v2773
        %v4154 = vpack.c.b16 %v2798, %v2786
        %v4155 = vpack.c.b16 %v2799, %v2787
        %v4156 = vpack.c.b16 %v2800, %v2788
        %v4157 = vpack.c.b16 %v2801, %v2789
        %v4158 = vpack.c.b16 %v2802, %v2790
        %v4159 = vpack.c.b16 %v2803, %v2791
        %v4160 = vpack.c.b16 %v2804, %v2792
        %v4161 = vpack.c.b16 %v2805, %v2793
        %v4162 = vpack.c.b16 %v2806, %v2794
        %v4163 = vpack.c.b16 %v2807, %v2795
        %v4164 = vpack.c.b16 %v2808, %v2796
        %v4165 = vpack.c.b16 %v2809, %v2797
        %v4166 = vpack.c.b16 %v2822, %v2810
        %v4167 = vpack.c.b16 %v2823, %v2811
        %v4168 = vpack.c.b16 %v2824, %v2812
        %v4169 = vpack.c.b16 %v2825, %v2813
        %v4170 = vpack.c.b16 %v2826, %v2814
        %v4171 = vpack.c.b16 %v2827, %v2815
        %v4172 = vpack.c.b16 %v2828, %v2816
        %v4173 = vpack.c.b16 %v2829, %v2817
        %v4174 = vpack.c.b16 %v2830, %v2818
        %v4175 = vpack.c.b16 %v2831, %v2819
        %v4176 = vpack.c.b16 %v2832, %v2820
        %v4177 = vpack.c.b16 %v2833, %v2821
        %v4178 = vpack.c.b16 %v2846, %v2834
        %v4179 = vpack.c.b16 %v2847, %v2835
        %v4180 = vpack.c.b16 %v2848, %v2836
        %v4181 = vpack.c.b16 %v2849, %v2837
        %v4182 = vpack.c.b16 %v2850, %v2838
        %v4183 = vpack.c.b16 %v2851, %v2839
        %v4184 = vpack.c.b16 %v2852, %v2840
        %v4185 = vpack.c.b16 %v2853, %v2841
        %v4186 = vpack.c.b16 %v2854, %v2842
        %v4187 = vpack.c.b16 %v2855, %v2843
        %v4188 = vpack.c.b16 %v2856, %v2844
        %v4189 = vpack.c.b16 %v2857, %v2845
        %v4190 = vpack.c.b16 %v2870, %v2858
        %v4191 = vpack.c.b16 %v2871, %v2859
        %v4192 = vpack.c.b16 %v2872, %v2860
        %v4193 = vpack.c.b16 %v2873, %v2861
        %v4194 = vpack.c.b16 %v2874, %v2862
        %v4195 = vpack.c.b16 %v2875, %v2863
        %v4196 = vpack.c.b16 %v2876, %v2864
        %v4197 = vpack.c.b16 %v2877, %v2865
        %v4198 = vpack.c.b16 %v2878, %v2866
        %v4199 = vpack.c.b16 %v2879, %v2867
        %v4200 = vpack.c.b16 %v2880, %v2868
        %v4201 = vpack.c.b16 %v2881, %v2869
        %v4202 = vpack.c.b16 %v2894, %v2882
        %v4203 = vpack.c.b16 %v2895, %v2883
        %v4204 = vpack.c.b16 %v2896, %v2884
        %v4205 = vpack.c.b16 %v2897, %v2885
        %v4206 = vpack.c.b16 %v2898, %v2886
        %v4207 = vpack.c.b16 %v2899, %v2887
        %v4208 = vpack.c.b16 %v2900, %v2888
        %v4209 = vpack.c.b16 %v2901, %v2889
        %v4210 = vpack.c.b16 %v2902, %v2890
        %v4211 = vpack.c.b16 %v2903, %v2891
        %v4212 = vpack.c.b16 %v2904, %v2892
        %v4213 = vpack.c.b16 %v2905, %v2893
        %v4214 = vpack.c.b16 %v2918, %v2906
        %v4215 = vpack.c.b16 %v2919, %v2907
        %v4216 = vpack.c.b16 %v2920, %v2908
        %v4217 = vpack.c.b16 %v2921, %v2909
        %v4218 = vpack.c.b16 %v2922, %v2910
        %v4219 = vpack.c.b16 %v2923, %v2911
        %v4220 = vpack.c.b16 %v2924, %v2912
        %v4221 = vpack.c.b16 %v2925, %v2913
        %v4222 = vpack.c.b16 %v2926, %v2914
        %v4223 = vpack.c.b16 %v2927, %v2915
        %v4224 = vpack.c.b16 %v2928, %v2916
        %v4225 = vpack.c.b16 %v2929, %v2917
        %v4226 = vpack.c.b16 %v2942, %v2930
        %v4227 = vpack.c.b16 %v2943, %v2931
        %v4228 = vpack.c.b16 %v2944, %v2932
        %v4229 = vpack.c.b16 %v2945, %v2933
        %v4230 = vpack.c.b16 %v2946, %v2934
        %v4231 = vpack.c.b16 %v2947, %v2935
        %v4232 = vpack.c.b16 %v2948, %v2936
        %v4233 = vpack.c.b16 %v2949, %v2937
        %v4234 = vpack.c.b16 %v2950, %v2938
        %v4235 = vpack.c.b16 %v2951, %v2939
        %v4236 = vpack.c.b16 %v2952, %v2940
        %v4237 = vpack.c.b16 %v2953, %v2941
        %v4238 = vpack.c.b16 %v2966, %v2954
        %v4239 = vpack.c.b16 %v2967, %v2955
        %v4240 = vpack.c.b16 %v2968, %v2956
        %v4241 = vpack.c.b16 %v2969, %v2957
        %v4242 = vpack.c.b16 %v2970, %v2958
        %v4243 = vpack.c.b16 %v2971, %v2959
        %v4244 = vpack.c.b16 %v2972, %v2960
        %v4245 = vpack.c.b16 %v2973, %v2961
        %v4246 = vpack.c.b16 %v2974, %v2962
        %v4247 = vpack.c.b16 %v2975, %v2963
        %v4248 = vpack.c.b16 %v2976, %v2964
        %v4249 = vpack.c.b16 %v2977, %v2965
        %v4250 = vpack.c.b16 %v2990, %v2978
        %v4251 = vpack.c.b16 %v2991, %v2979
        %v4252 = vpack.c.b16 %v2992, %v2980
        %v4253 = vpack.c.b16 %v2993, %v2981
        %v4254 = vpack.c.b16 %v2994, %v2982
        %v4255 = vpack.c.b16 %v2995, %v2983
        %v4256 = vpack.c.b16 %v2996, %v2984
        %v4257 = vpack.c.b16 %v2997, %v2985
        %v4258 = vpack.c.b16 %v2998, %v2986
        %v4259 = vpack.c.b16 %v2999, %v2987
        %v4260 = vpack.c.b16 %v3000, %v2988
        %v4261 = vpack.c.b16 %v3001, %v2989
        %v4262 = vpack.c.b16 %v3014, %v3002
        %v4263 = vpack.c.b16 %v3015, %v3003
        %v4264 = vpack.c.b16 %v3016, %v3004
        %v4265 = vpack.c.b16 %v3017, %v3005
        %v4266 = vpack.c.b16 %v3018, %v3006
        %v4267 = vpack.c.b16 %v3019, %v3007
        %v4268 = vpack.c.b16 %v3020, %v3008
        %v4269 = vpack.c.b16 %v3021, %v3009
        %v4270 = vpack.c.b16 %v3022, %v3010
        %v4271 = vpack.c.b16 %v3023, %v3011
        %v4272 = vpack.c.b16 %v3024, %v3012
        %v4273 = vpack.c.b16 %v3025, %v3013
        %v4274 = vpack.c.b16 %v3038, %v3026
        %v4275 = vpack.c.b16 %v3039, %v3027
        %v4276 = vpack.c.b16 %v3040, %v3028
        %v4277 = vpack.c.b16 %v3041, %v3029
        %v4278 = vpack.c.b16 %v3042, %v3030
        %v4279 = vpack.c.b16 %v3043, %v3031
        %v4280 = vpack.c.b16 %v3044, %v3032
        %v4281 = vpack.c.b16 %v3045, %v3033
        %v4282 = vpack.c.b16 %v3046, %v3034
        %v4283 = vpack.c.b16 %v3047, %v3035
        %v4284 = vpack.c.b16 %v3048, %v3036
        %v4285 = vpack.c.b16 %v3049, %v3037
        %v4286 = vpack.c.b16 %v3062, %v3050
        %v4287 = vpack.c.b16 %v3063, %v3051
        %v4288 = vpack.c.b16 %v3064, %v3052
        %v4289 = vpack.c.b16 %v3065, %v3053
        %v4290 = vpack.c.b16 %v3066, %v3054
        %v4291 = vpack.c.b16 %v3067, %v3055
        %v4292 = vpack.c.b16 %v3068, %v3056
        %v4293 = vpack.c.b16 %v3069, %v3057
        %v4294 = vpack.c.b16 %v3070, %v3058
        %v4295 = vpack.c.b16 %v3071, %v3059
        %v4296 = vpack.c.b16 %v3072, %v3060
        %v4297 = vpack.c.b16 %v3073, %v3061
        %v4298 = vpack.c.b16 %v3086, %v3074
        %v4299 = vpack.c.b16 %v3087, %v3075
        %v4300 = vpack.c.b16 %v3088, %v3076
        %v4301 = vpack.c.b16 %v3089, %v3077
        %v4302 = vpack.c.b16 %v3090, %v3078
        %v4303 = vpack.c.b16 %v3091, %v3079
        %v4304 = vpack.c.b16 %v3092, %v3080
        %v4305 = vpack.c.b16 %v3093, %v3081
        %v4306 = vpack.c.b16 %v3094, %v3082
        %v4307 = vpack.c.b16 %v3095, %v3083
        %v4308 = vpack.c.b16 %v3096, %v3084
        %v4309 = vpack.c.b16 %v3097, %v3085
        %v4310 = vpack.c.b16 %v3110, %v3098
        %v4311 = vpack.c.b16 %v3111, %v3099
        %v4312 = vpack.c.b16 %v3112, %v3100
        %v4313 = vpack.c.b16 %v3113, %v3101
        %v4314 = vpack.c.b16 %v3114, %v3102
        %v4315 = vpack.c.b16 %v3115, %v3103
        %v4316 = vpack.c.b16 %v3116, %v3104
        %v4317 = vpack.c.b16 %v3117, %v3105
        %v4318 = vpack.c.b16 %v3118, %v3106
        %v4319 = vpack.c.b16 %v3119, %v3107
        %v4320 = vpack.c.b16 %v3120, %v3108
        %v4321 = vpack.c.b16 %v3121, %v3109
        %v4322 = vpack.c.b16 %v3134, %v3122
        %v4323 = vpack.c.b16 %v3135, %v3123
        %v4324 = vpack.c.b16 %v3136, %v3124
        %v4325 = vpack.c.b16 %v3137, %v3125
        %v4326 = vpack.c.b16 %v3138, %v3126
        %v4327 = vpack.c.b16 %v3139, %v3127
        %v4328 = vpack.c.b16 %v3140, %v3128
        %v4329 = vpack.c.b16 %v3141, %v3129
        %v4330 = vpack.c.b16 %v3142, %v3130
        %v4331 = vpack.c.b16 %v3143, %v3131
        %v4332 = vpack.c.b16 %v3144, %v3132
        %v4333 = vpack.c.b16 %v3145, %v3133
        %v4334 = vpack.c.b16 %v3158, %v3146
        %v4335 = vpack.c.b16 %v3159, %v3147
        %v4336 = vpack.c.b16 %v3160, %v3148
        %v4337 = vpack.c.b16 %v3161, %v3149
        %v4338 = vpack.c.b16 %v3162, %v3150
        %v4339 = vpack.c.b16 %v3163, %v3151
        %v4340 = vpack.c.b16 %v3164, %v3152
        %v4341 = vpack.c.b16 %v3165, %v3153
        %v4342 = vpack.c.b16 %v3166, %v3154
        %v4343 = vpack.c.b16 %v3167, %v3155
        %v4344 = vpack.c.b16 %v3168, %v3156
        %v4345 = vpack.c.b16 %v3169, %v3157
        %v4346 = vpack.c.b16 %v3182, %v3170
        %v4347 = vpack.c.b16 %v3183, %v3171
        %v4348 = vpack.c.b16 %v3184, %v3172
        %v4349 = vpack.c.b16 %v3185, %v3173
        %v4350 = vpack.c.b16 %v3186, %v3174
        %v4351 = vpack.c.b16 %v3187, %v3175
        %v4352 = vpack.c.b16 %v3188, %v3176
        %v4353 = vpack.c.b16 %v3189, %v3177
        %v4354 = vpack.c.b16 %v3190, %v3178
        %v4355 = vpack.c.b16 %v3191, %v3179
        %v4356 = vpack.c.b16 %v3192, %v3180
        %v4357 = vpack.c.b16 %v3193, %v3181
        %v4358 = vpack.c.b16 %v3206, %v3194
        %v4359 = vpack.c.b16 %v3207, %v3195
        %v4360 = vpack.c.b16 %v3208, %v3196
        %v4361 = vpack.c.b16 %v3209, %v3197
        %v4362 = vpack.c.b16 %v3210, %v3198
        %v4363 = vpack.c.b16 %v3211, %v3199
        %v4364 = vpack.c.b16 %v3212, %v3200
        %v4365 = vpack.c.b16 %v3213, %v3201
        %v4366 = vpack.c.b16 %v3214, %v3202
        %v4367 = vpack.c.b16 %v3215, %v3203
        %v4368 = vpack.c.b16 %v3216, %v3204
        %v4369 = vpack.c.b16 %v3217, %v3205
        %v4370 = vpack.c.b16 %v3230, %v3218
        %v4371 = vpack.c.b16 %v3231, %v3219
        %v4372 = vpack.c.b16 %v3232, %v3220
        %v4373 = vpack.c.b16 %v3233, %v3221
        %v4374 = vpack.c.b16 %v3234, %v3222
        %v4375 = vpack.c.b16 %v3235, %v3223
        %v4376 = vpack.c.b16 %v3236, %v3224
        %v4377 = vpack.c.b16 %v3237, %v3225
        %v4378 = vpack.c.b16 %v3238, %v3226
        %v4379 = vpack.c.b16 %v3239, %v3227
        %v4380 = vpack.c.b16 %v3240, %v3228
        %v4381 = vpack.c.b16 %v3241, %v3229
        %v4382 = vpack.c.b16 %v3254, %v3242
        %v4383 = vpack.c.b16 %v3255, %v3243
        %v4384 = vpack.c.b16 %v3256, %v3244
        %v4385 = vpack.c.b16 %v3257, %v3245
        %v4386 = vpack.c.b16 %v3258, %v3246
        %v4387 = vpack.c.b16 %v3259, %v3247
        %v4388 = vpack.c.b16 %v3260, %v3248
        %v4389 = vpack.c.b16 %v3261, %v3249
        %v4390 = vpack.c.b16 %v3262, %v3250
        %v4391 = vpack.c.b16 %v3263, %v3251
        %v4392 = vpack.c.b16 %v3264, %v3252
        %v4393 = vpack.c.b16 %v3265, %v3253
        %v4394 = vpack.c.b16 %v3278, %v3266
        %v4395 = vpack.c.b16 %v3279, %v3267
        %v4396 = vpack.c.b16 %v3280, %v3268
        %v4397 = vpack.c.b16 %v3281, %v3269
        %v4398 = vpack.c.b16 %v3282, %v3270
        %v4399 = vpack.c.b16 %v3283, %v3271
        %v4400 = vpack.c.b16 %v3284, %v3272
        %v4401 = vpack.c.b16 %v3285, %v3273
        %v4402 = vpack.c.b16 %v3286, %v3274
        %v4403 = vpack.c.b16 %v3287, %v3275
        %v4404 = vpack.c.b16 %v3288, %v3276
        %v4405 = vpack.c.b16 %v3289, %v3277
        %v4406 = vpack.c.b16 %v3302, %v3290
        %v4407 = vpack.c.b16 %v3303, %v3291
        %v4408 = vpack.c.b16 %v3304, %v3292
        %v4409 = vpack.c.b16 %v3305, %v3293
        %v4410 = vpack.c.b16 %v3306, %v3294
        %v4411 = vpack.c.b16 %v3307, %v3295
        %v4412 = vpack.c.b16 %v3308, %v3296
        %v4413 = vpack.c.b16 %v3309, %v3297
        %v4414 = vpack.c.b16 %v3310, %v3298
        %v4415 = vpack.c.b16 %v3311, %v3299
        %v4416 = vpack.c.b16 %v3312, %v3300
        %v4417 = vpack.c.b16 %v3313, %v3301
        %v4418 = vpack.c.b16 %v3326, %v3314
        %v4419 = vpack.c.b16 %v3327, %v3315
        %v4420 = vpack.c.b16 %v3328, %v3316
        %v4421 = vpack.c.b16 %v3329, %v3317
        %v4422 = vpack.c.b16 %v3330, %v3318
        %v4423 = vpack.c.b16 %v3331, %v3319
        %v4424 = vpack.c.b16 %v3332, %v3320
        %v4425 = vpack.c.b16 %v3333, %v3321
        %v4426 = vpack.c.b16 %v3334, %v3322
        %v4427 = vpack.c.b16 %v3335, %v3323
        %v4428 = vpack.c.b16 %v3336, %v3324
        %v4429 = vpack.c.b16 %v3337, %v3325
        %v4430 = vpack.c.b16 %v3350, %v3338
        %v4431 = vpack.c.b16 %v3351, %v3339
        %v4432 = vpack.c.b16 %v3352, %v3340
        %v4433 = vpack.c.b16 %v3353, %v3341
        %v4434 = vpack.c.b16 %v3354, %v3342
        %v4435 = vpack.c.b16 %v3355, %v3343
        %v4436 = vpack.c.b16 %v3356, %v3344
        %v4437 = vpack.c.b16 %v3357, %v3345
        %v4438 = vpack.c.b16 %v3358, %v3346
        %v4439 = vpack.c.b16 %v3359, %v3347
        %v4440 = vpack.c.b16 %v3360, %v3348
        %v4441 = vpack.c.b16 %v3361, %v3349
        %v4442 = vpack.c.b16 %v3374, %v3362
        %v4443 = vpack.c.b16 %v3375, %v3363
        %v4444 = vpack.c.b16 %v3376, %v3364
        %v4445 = vpack.c.b16 %v3377, %v3365
        %v4446 = vpack.c.b16 %v3378, %v3366
        %v4447 = vpack.c.b16 %v3379, %v3367
        %v4448 = vpack.c.b16 %v3380, %v3368
        %v4449 = vpack.c.b16 %v3381, %v3369
        %v4450 = vpack.c.b16 %v3382, %v3370
        %v4451 = vpack.c.b16 %v3383, %v3371
        %v4452 = vpack.c.b16 %v3384, %v3372
        %v4453 = vpack.c.b16 %v3385, %v3373
        %v4454 = vpack.c.b16 %v3398, %v3386
        %v4455 = vpack.c.b16 %v3399, %v3387
        %v4456 = vpack.c.b16 %v3400, %v3388
        %v4457 = vpack.c.b16 %v3401, %v3389
        %v4458 = vpack.c.b16 %v3402, %v3390
        %v4459 = vpack.c.b16 %v3403, %v3391
        %v4460 = vpack.c.b16 %v3404, %v3392
        %v4461 = vpack.c.b16 %v3405, %v3393
        %v4462 = vpack.c.b16 %v3406, %v3394
        %v4463 = vpack.c.b16 %v3407, %v3395
        %v4464 = vpack.c.b16 %v3408, %v3396
        %v4465 = vpack.c.b16 %v3409, %v3397
        %v4466 = vpack.c.b16 %v3422, %v3410
        %v4467 = vpack.c.b16 %v3423, %v3411
        %v4468 = vpack.c.b16 %v3424, %v3412
        %v4469 = vpack.c.b16 %v3425, %v3413
        %v4470 = vpack.c.b16 %v3426, %v3414
        %v4471 = vpack.c.b16 %v3427, %v3415
        %v4472 = vpack.c.b16 %v3428, %v3416
        %v4473 = vpack.c.b16 %v3429, %v3417
        %v4474 = vpack.c.b16 %v3430, %v3418
        %v4475 = vpack.c.b16 %v3431, %v3419
        %v4476 = vpack.c.b16 %v3432, %v3420
        %v4477 = vpack.c.b16 %v3433, %v3421
        %v4478 = vpack.c.b16 %v3446, %v3434
        %v4479 = vpack.c.b16 %v3447, %v3435
        %v4480 = vpack.c.b16 %v3448, %v3436
        %v4481 = vpack.c.b16 %v3449, %v3437
        %v4482 = vpack.c.b16 %v3450, %v3438
        %v4483 = vpack.c.b16 %v3451, %v3439
        %v4484 = vpack.c.b16 %v3452, %v3440
        %v4485 = vpack.c.b16 %v3453, %v3441
        %v4486 = vpack.c.b16 %v3454, %v3442
        %v4487 = vpack.c.b16 %v3455, %v3443
        %v4488 = vpack.c.b16 %v3456, %v3444
        %v4489 = vpack.c.b16 %v3457, %v3445
        %v4490 = vpack.c.b16 %v3470, %v3458
        %v4491 = vpack.c.b16 %v3471, %v3459
        %v4492 = vpack.c.b16 %v3472, %v3460
        %v4493 = vpack.c.b16 %v3473, %v3461
        %v4494 = vpack.c.b16 %v3474, %v3462
        %v4495 = vpack.c.b16 %v3475, %v3463
        %v4496 = vpack.c.b16 %v3476, %v3464
        %v4497 = vpack.c.b16 %v3477, %v3465
        %v4498 = vpack.c.b16 %v3478, %v3466
        %v4499 = vpack.c.b16 %v3479, %v3467
        %v4500 = vpack.c.b16 %v3480, %v3468
        %v4501 = vpack.c.b16 %v3481, %v3469
        %v4502 = vpack.c.b16 %v3494, %v3482
        %v4503 = vpack.c.b16 %v3495, %v3483
        %v4504 = vpack.c.b16 %v3496, %v3484
        %v4505 = vpack.c.b16 %v3497, %v3485
        %v4506 = vpack.c.b16 %v3498, %v3486
        %v4507 = vpack.c.b16 %v3499, %v3487
        %v4508 = vpack.c.b16 %v3500, %v3488
        %v4509 = vpack.c.b16 %v3501, %v3489
        %v4510 = vpack.c.b16 %v3502, %v3490
        %v4511 = vpack.c.b16 %v3503, %v3491
        %v4512 = vpack.c.b16 %v3504, %v3492
        %v4513 = vpack.c.b16 %v3505, %v3493
        %v4514 = vpack.c.b16 %v3518, %v3506
        %v4515 = vpack.c.b16 %v3519, %v3507
        %v4516 = vpack.c.b16 %v3520, %v3508
        %v4517 = vpack.c.b16 %v3521, %v3509
        %v4518 = vpack.c.b16 %v3522, %v3510
        %v4519 = vpack.c.b16 %v3523, %v3511
        %v4520 = vpack.c.b16 %v3524, %v3512
        %v4521 = vpack.c.b16 %v3525, %v3513
        %v4522 = vpack.c.b16 %v3526, %v3514
        %v4523 = vpack.c.b16 %v3527, %v3515
        %v4524 = vpack.c.b16 %v3528, %v3516
        %v4525 = vpack.c.b16 %v3529, %v3517
        %v4526 = vpack.c.b16 %v3542, %v3530
        %v4527 = vpack.c.b16 %v3543, %v3531
        %v4528 = vpack.c.b16 %v3544, %v3532
        %v4529 = vpack.c.b16 %v3545, %v3533
        %v4530 = vpack.c.b16 %v3546, %v3534
        %v4531 = vpack.c.b16 %v3547, %v3535
        %v4532 = vpack.c.b16 %v3548, %v3536
        %v4533 = vpack.c.b16 %v3549, %v3537
        %v4534 = vpack.c.b16 %v3550, %v3538
        %v4535 = vpack.c.b16 %v3551, %v3539
        %v4536 = vpack.c.b16 %v3552, %v3540
        %v4537 = vpack.c.b16 %v3553, %v3541
        %v4538 = vpack.c.b16 %v3566, %v3554
        %v4539 = vpack.c.b16 %v3567, %v3555
        %v4540 = vpack.c.b16 %v3568, %v3556
        %v4541 = vpack.c.b16 %v3569, %v3557
        %v4542 = vpack.c.b16 %v3570, %v3558
        %v4543 = vpack.c.b16 %v3571, %v3559
        %v4544 = vpack.c.b16 %v3572, %v3560
        %v4545 = vpack.c.b16 %v3573, %v3561
        %v4546 = vpack.c.b16 %v3574, %v3562
        %v4547 = vpack.c.b16 %v3575, %v3563
        %v4548 = vpack.c.b16 %v3576, %v3564
        %v4549 = vpack.c.b16 %v3577, %v3565
        %v4550 = vpack.c.b16 %v3590, %v3578
        %v4551 = vpack.c.b16 %v3591, %v3579
        %v4552 = vpack.c.b16 %v3592, %v3580
        %v4553 = vpack.c.b16 %v3593, %v3581
        %v4554 = vpack.c.b16 %v3594, %v3582
        %v4555 = vpack.c.b16 %v3595, %v3583
        %v4556 = vpack.c.b16 %v3596, %v3584
        %v4557 = vpack.c.b16 %v3597, %v3585
        %v4558 = vpack.c.b16 %v3598, %v3586
        %v4559 = vpack.c.b16 %v3599, %v3587
        %v4560 = vpack.c.b16 %v3600, %v3588
        %v4561 = vpack.c.b16 %v3601, %v3589
        %v4562 = vpack.c.b16 %v3614, %v3602
        %v4563 = vpack.c.b16 %v3615, %v3603
        %v4564 = vpack.c.b16 %v3616, %v3604
        %v4565 = vpack.c.b16 %v3617, %v3605
        %v4566 = vpack.c.b16 %v3618, %v3606
        %v4567 = vpack.c.b16 %v3619, %v3607
        %v4568 = vpack.c.b16 %v3620, %v3608
        %v4569 = vpack.c.b16 %v3621, %v3609
        %v4570 = vpack.c.b16 %v3622, %v3610
        %v4571 = vpack.c.b16 %v3623, %v3611
        %v4572 = vpack.c.b16 %v3624, %v3612
        %v4573 = vpack.c.b16 %v3625, %v3613
        %v4574 = vpack.c.b16 %v3638, %v3626
        %v4575 = vpack.c.b16 %v3639, %v3627
        %v4576 = vpack.c.b16 %v3640, %v3628
        %v4577 = vpack.c.b16 %v3641, %v3629
        %v4578 = vpack.c.b16 %v3642, %v3630
        %v4579 = vpack.c.b16 %v3643, %v3631
        %v4580 = vpack.c.b16 %v3644, %v3632
        %v4581 = vpack.c.b16 %v3645, %v3633
        %v4582 = vpack.c.b16 %v3646, %v3634
        %v4583 = vpack.c.b16 %v3647, %v3635
        %v4584 = vpack.c.b16 %v3648, %v3636
        %v4585 = vpack.c.b16 %v3649, %v3637
        %v4586 = vpack.c.b16 %v3662, %v3650
        %v4587 = vpack.c.b16 %v3663, %v3651
        %v4588 = vpack.c.b16 %v3664, %v3652
        %v4589 = vpack.c.b16 %v3665, %v3653
        %v4590 = vpack.c.b16 %v3666, %v3654
        %v4591 = vpack.c.b16 %v3667, %v3655
        %v4592 = vpack.c.b16 %v3668, %v3656
        %v4593 = vpack.c.b16 %v3669, %v3657
        %v4594 = vpack.c.b16 %v3670, %v3658
        %v4595 = vpack.c.b16 %v3671, %v3659
        %v4596 = vpack.c.b16 %v3672, %v3660
        %v4597 = vpack.c.b16 %v3673, %v3661
        %v4598 = vpack.c.b16 %v3686, %v3674
        %v4599 = vpack.c.b16 %v3687, %v3675
        %v4600 = vpack.c.b16 %v3688, %v3676
        %v4601 = vpack.c.b16 %v3689, %v3677
        %v4602 = vpack.c.b16 %v3690, %v3678
        %v4603 = vpack.c.b16 %v3691, %v3679
        %v4604 = vpack.c.b16 %v3692, %v3680
        %v4605 = vpack.c.b16 %v3693, %v3681
        %v4606 = vpack.c.b16 %v3694, %v3682
        %v4607 = vpack.c.b16 %v3695, %v3683
        %v4608 = vpack.c.b16 %v3696, %v3684
        %v4609 = vpack.c.b16 %v3697, %v3685
        %v4610 = vpack.c.b16 %v3710, %v3698
        %v4611 = vpack.c.b16 %v3711, %v3699
        %v4612 = vpack.c.b16 %v3712, %v3700
        %v4613 = vpack.c.b16 %v3713, %v3701
        %v4614 = vpack.c.b16 %v3714, %v3702
        %v4615 = vpack.c.b16 %v3715, %v3703
        %v4616 = vpack.c.b16 %v3716, %v3704
        %v4617 = vpack.c.b16 %v3717, %v3705
        %v4618 = vpack.c.b16 %v3718, %v3706
        %v4619 = vpack.c.b16 %v3719, %v3707
        %v4620 = vpack.c.b16 %v3720, %v3708
        %v4621 = vpack.c.b16 %v3721, %v3709
        %v4622 = vpack.c.b16 %v3734, %v3722
        %v4623 = vpack.c.b16 %v3735, %v3723
        %v4624 = vpack.c.b16 %v3736, %v3724
        %v4625 = vpack.c.b16 %v3737, %v3725
        %v4626 = vpack.c.b16 %v3738, %v3726
        %v4627 = vpack.c.b16 %v3739, %v3727
        %v4628 = vpack.c.b16 %v3740, %v3728
        %v4629 = vpack.c.b16 %v3741, %v3729
        %v4630 = vpack.c.b16 %v3742, %v3730
        %v4631 = vpack.c.b16 %v3743, %v3731
        %v4632 = vpack.c.b16 %v3744, %v3732
        %v4633 = vpack.c.b16 %v3745, %v3733
        %v4634 = vpack.c.b16 %v3758, %v3746
        %v4635 = vpack.c.b16 %v3759, %v3747
        %v4636 = vpack.c.b16 %v3760, %v3748
        %v4637 = vpack.c.b16 %v3761, %v3749
        %v4638 = vpack.c.b16 %v3762, %v3750
        %v4639 = vpack.c.b16 %v3763, %v3751
        %v4640 = vpack.c.b16 %v3764, %v3752
        %v4641 = vpack.c.b16 %v3765, %v3753
        %v4642 = vpack.c.b16 %v3766, %v3754
        %v4643 = vpack.c.b16 %v3767, %v3755
        %v4644 = vpack.c.b16 %v3768, %v3756
        %v4645 = vpack.c.b16 %v3769, %v3757
        %v4646 = vpack.c.b16 %v3782, %v3770
        %v4647 = vpack.c.b16 %v3783, %v3771
        %v4648 = vpack.c.b16 %v3784, %v3772
        %v4649 = vpack.c.b16 %v3785, %v3773
        %v4650 = vpack.c.b16 %v3786, %v3774
        %v4651 = vpack.c.b16 %v3787, %v3775
        %v4652 = vpack.c.b16 %v3788, %v3776
        %v4653 = vpack.c.b16 %v3789, %v3777
        %v4654 = vpack.c.b16 %v3790, %v3778
        %v4655 = vpack.c.b16 %v3791, %v3779
        %v4656 = vpack.c.b16 %v3792, %v3780
        %v4657 = vpack.c.b16 %v3793, %v3781
        %v4658 = vpack.c.b16 %v3806, %v3794
        %v4659 = vpack.c.b16 %v3807, %v3795
        %v4660 = vpack.c.b16 %v3808, %v3796
        %v4661 = vpack.c.b16 %v3809, %v3797
        %v4662 = vpack.c.b16 %v3810, %v3798
        %v4663 = vpack.c.b16 %v3811, %v3799
        %v4664 = vpack.c.b16 %v3812, %v3800
        %v4665 = vpack.c.b16 %v3813, %v3801
        %v4666 = vpack.c.b16 %v3814, %v3802
        %v4667 = vpack.c.b16 %v3815, %v3803
        %v4668 = vpack.c.b16 %v3816, %v3804
        %v4669 = vpack.c.b16 %v3817, %v3805
        %v4670 = vpack.c.b16 %v3830, %v3818
        %v4671 = vpack.c.b16 %v3831, %v3819
        %v4672 = vpack.c.b16 %v3832, %v3820
        %v4673 = vpack.c.b16 %v3833, %v3821
        %v4674 = vpack.c.b16 %v3834, %v3822
        %v4675 = vpack.c.b16 %v3835, %v3823
        %v4676 = vpack.c.b16 %v3836, %v3824
        %v4677 = vpack.c.b16 %v3837, %v3825
        %v4678 = vpack.c.b16 %v3838, %v3826
        %v4679 = vpack.c.b16 %v3839, %v3827
        %v4680 = vpack.c.b16 %v3840, %v3828
        %v4681 = vpack.c.b16 %v3841, %v3829
        %v4682 = vpack.c.b16 %v3854, %v3842
        %v4683 = vpack.c.b16 %v3855, %v3843
        %v4684 = vpack.c.b16 %v3856, %v3844
        %v4685 = vpack.c.b16 %v3857, %v3845
        %v4686 = vpack.c.b16 %v3858, %v3846
        %v4687 = vpack.c.b16 %v3859, %v3847
        %v4688 = vpack.c.b16 %v3860, %v3848
        %v4689 = vpack.c.b16 %v3861, %v3849
        %v4690 = vpack.c.b16 %v3862, %v3850
        %v4691 = vpack.c.b16 %v3863, %v3851
        %v4692 = vpack.c.b16 %v3864, %v3852
        %v4693 = vpack.c.b16 %v3865, %v3853
        %v4694 = vpack.c.b16 %v3878, %v3866
        %v4695 = vpack.c.b16 %v3879, %v3867
        %v4696 = vpack.c.b16 %v3880, %v3868
        %v4697 = vpack.c.b16 %v3881, %v3869
        %v4698 = vpack.c.b16 %v3882, %v3870
        %v4699 = vpack.c.b16 %v3883, %v3871
        %v4700 = vpack.c.b16 %v3884, %v3872
        %v4701 = vpack.c.b16 %v3885, %v3873
        %v4702 = vpack.c.b16 %v3886, %v3874
        %v4703 = vpack.c.b16 %v3887, %v3875
        %v4704 = vpack.c.b16 %v3888, %v3876
        %v4705 = vpack.c.b16 %v3889, %v3877
        %v4706 = vpack.c.b16 %v3902, %v3890
        %v4707 = vpack.c.b16 %v3903, %v3891
        %v4708 = vpack.c.b16 %v3904, %v3892
        %v4709 = vpack.c.b16 %v3905, %v3893
        %v4710 = vpack.c.b16 %v3906, %v3894
        %v4711 = vpack.c.b16 %v3907, %v3895
        %v4712 = vpack.c.b16 %v3908, %v3896
        %v4713 = vpack.c.b16 %v3909, %v3897
        %v4714 = vpack.c.b16 %v3910, %v3898
        %v4715 = vpack.c.b16 %v3911, %v3899
        %v4716 = vpack.c.b16 %v3912, %v3900
        %v4717 = vpack.c.b16 %v3913, %v3901
        %v4718 = vpack.c.b16 %v3926, %v3914
        %v4719 = vpack.c.b16 %v3927, %v3915
        %v4720 = vpack.c.b16 %v3928, %v3916
        %v4721 = vpack.c.b16 %v3929, %v3917
        %v4722 = vpack.c.b16 %v3930, %v3918
        %v4723 = vpack.c.b16 %v3931, %v3919
        %v4724 = vpack.c.b16 %v3932, %v3920
        %v4725 = vpack.c.b16 %v3933, %v3921
        %v4726 = vpack.c.b16 %v3934, %v3922
        %v4727 = vpack.c.b16 %v3935, %v3923
        %v4728 = vpack.c.b16 %v3936, %v3924
        %v4729 = vpack.c.b16 %v3937, %v3925
        %v4730 = vpack.c.b16 %v3950, %v3938
        %v4731 = vpack.c.b16 %v3951, %v3939
        %v4732 = vpack.c.b16 %v3952, %v3940
        %v4733 = vpack.c.b16 %v3953, %v3941
        %v4734 = vpack.c.b16 %v3954, %v3942
        %v4735 = vpack.c.b16 %v3955, %v3943
        %v4736 = vpack.c.b16 %v3956, %v3944
        %v4737 = vpack.c.b16 %v3957, %v3945
        %v4738 = vpack.c.b16 %v3958, %v3946
        %v4739 = vpack.c.b16 %v3959, %v3947
        %v4740 = vpack.c.b16 %v3960, %v3948
        %v4741 = vpack.c.b16 %v3961, %v3949
        %v4742 = vpack.c.b16 %v3974, %v3962
        %v4743 = vpack.c.b16 %v3975, %v3963
        %v4744 = vpack.c.b16 %v3976, %v3964
        %v4745 = vpack.c.b16 %v3977, %v3965
        %v4746 = vpack.c.b16 %v3978, %v3966
        %v4747 = vpack.c.b16 %v3979, %v3967
        %v4748 = vpack.c.b16 %v3980, %v3968
        %v4749 = vpack.c.b16 %v3981, %v3969
        %v4750 = vpack.c.b16 %v3982, %v3970
        %v4751 = vpack.c.b16 %v3983, %v3971
        %v4752 = vpack.c.b16 %v3984, %v3972
        %v4753 = vpack.c.b16 %v3985, %v3973
        %5522 = vmatprep.subr.bf16.mxu0 %v3987
        %5523 = vmatpush1.bf16.msra.mxu0 %v3986
        %5524 = vmatprep.subr.bf16.mxu0 %v3999
        %5525 = vmatpush1.bf16.msra.mxu0 %v3998
        %5526 = vmatprep.subr.bf16.mxu0 %v4011
        %5527 = vmatpush1.bf16.msra.mxu0 %v4010
        %5528 = vmatprep.subr.bf16.mxu0 %v4023
        %5529 = vmatpush1.bf16.msra.mxu0 %v4022
        %5530 = vmatprep.subr.bf16.mxu0 %v4035
        %5531 = vmatpush1.bf16.msra.mxu0 %v4034
        %5532 = vmatprep.subr.bf16.mxu0 %v4047
        %5533 = vmatpush1.bf16.msra.mxu0 %v4046
        %5534 = vmatprep.subr.bf16.mxu0 %v4059
        %5535 = vmatpush1.bf16.msra.mxu0 %v4058
        %5536 = vmatprep.subr.bf16.mxu0 %v4071
        %5537 = vmatpush1.bf16.msra.mxu0 %v4070
        %5538 = vmatprep.subr.bf16.mxu0 %v4083
        %5539 = vmatpush1.bf16.msra.mxu0 %v4082
        %5540 = vmatprep.subr.bf16.mxu0 %v4095
        %5541 = vmatpush1.bf16.msra.mxu0 %v4094
        %5542 = vmatprep.subr.bf16.mxu0 %v4107
        %5543 = vmatpush1.bf16.msra.mxu0 %v4106
        %5544 = vmatprep.subr.bf16.mxu0 %v4119
        %5545 = vmatpush1.bf16.msra.mxu0 %v4118
        %5546 = vmatprep.subr.bf16.mxu0 %v4131
        %5547 = vmatpush1.bf16.msra.mxu0 %v4130
        %5548 = vmatprep.subr.bf16.mxu0 %v4143
        %5549 = vmatpush1.bf16.msra.mxu0 %v4142
        %5550 = vmatprep.subr.bf16.mxu0 %v4155
        %5551 = vmatpush1.bf16.msra.mxu0 %v4154
        %5552 = vmatprep.subr.bf16.mxu0 %v4167
        %5553 = vmatpush1.bf16.msra.mxu0 %v4166
        %5554 = vmatprep.mubr.bf16.mxu0 %v1611
        %5555 = vmatmul.mubr.bf16.gmra.mrb[0].mxu0 %v1610
        %v5556 = vpop.f32.mrb[0].mxu0
        %v5557 = vadd.f32 %v1625, %v5556
        %v5558 = vpop.f32.mrb[0].mxu0
        %v5559 = vadd.f32 %v1629, %v5558
        %v5560 = vpop.f32.mrb[0].mxu0
        %v5561 = vpop.f32.mrb[0].mxu0
        %5562 = vdwg.mxu0
        %5563 = vmatprep.subr.bf16.mxu0 %v4179
        %5564 = vmatpush1.bf16.msra.mxu0 %v4178
        %5565 = vmatprep.subr.bf16.mxu0 %v4191
        %5566 = vmatpush1.bf16.msra.mxu0 %v4190
        %5567 = vmatprep.subr.bf16.mxu0 %v4203
        %5568 = vmatpush1.bf16.msra.mxu0 %v4202
        %5569 = vmatprep.subr.bf16.mxu0 %v4215
        %5570 = vmatpush1.bf16.msra.mxu0 %v4214
        %5571 = vmatprep.subr.bf16.mxu0 %v4227
        %5572 = vmatpush1.bf16.msra.mxu0 %v4226
        %5573 = vmatprep.subr.bf16.mxu0 %v4239
        %5574 = vmatpush1.bf16.msra.mxu0 %v4238
        %5575 = vmatprep.subr.bf16.mxu0 %v4251
        %5576 = vmatpush1.bf16.msra.mxu0 %v4250
        %5577 = vmatprep.subr.bf16.mxu0 %v4263
        %5578 = vmatpush1.bf16.msra.mxu0 %v4262
        %5579 = vmatprep.subr.bf16.mxu0 %v4275
        %5580 = vmatpush1.bf16.msra.mxu0 %v4274
        %5581 = vmatprep.subr.bf16.mxu0 %v4287
        %5582 = vmatpush1.bf16.msra.mxu0 %v4286
        %5583 = vmatprep.subr.bf16.mxu0 %v4299
        %5584 = vmatpush1.bf16.msra.mxu0 %v4298
        %5585 = vmatprep.subr.bf16.mxu0 %v4311
        %5586 = vmatpush1.bf16.msra.mxu0 %v4310
        %5587 = vmatprep.subr.bf16.mxu0 %v4323
        %5588 = vmatpush1.bf16.msra.mxu0 %v4322
        %5589 = vmatprep.subr.bf16.mxu0 %v4335
        %5590 = vmatpush1.bf16.msra.mxu0 %v4334
        %5591 = vmatprep.subr.bf16.mxu0 %v4347
        %5592 = vmatpush1.bf16.msra.mxu0 %v4346
        %5593 = vmatprep.subr.bf16.mxu0 %v4359
        %5594 = vmatpush1.bf16.msra.mxu0 %v4358
        %5595 = vmatprep.mubr.bf16.mxu0 %v1613
        %5596 = vmatmul.mubr.bf16.gmra.mrb[0].mxu0 %v1612
        %v5597 = vpop.f32.mrb[0].mxu0
        %v5598 = vadd.f32 %v5557, %v5597
        %v5599 = vpop.f32.mrb[0].mxu0
        %v5600 = vadd.f32 %v5559, %v5599
        %v5601 = vpop.f32.mrb[0].mxu0
        %v5602 = vpop.f32.mrb[0].mxu0
        %5603 = vdwg.mxu0
        %5604 = vmatprep.subr.bf16.mxu0 %v4371
        %5605 = vmatpush1.bf16.msra.mxu0 %v4370
        %5606 = vmatprep.subr.bf16.mxu0 %v4383
        %5607 = vmatpush1.bf16.msra.mxu0 %v4382
        %5608 = vmatprep.subr.bf16.mxu0 %v4395
        %5609 = vmatpush1.bf16.msra.mxu0 %v4394
        %5610 = vmatprep.subr.bf16.mxu0 %v4407
        %5611 = vmatpush1.bf16.msra.mxu0 %v4406
        %5612 = vmatprep.subr.bf16.mxu0 %v4419
        %5613 = vmatpush1.bf16.msra.mxu0 %v4418
        %5614 = vmatprep.subr.bf16.mxu0 %v4431
        %5615 = vmatpush1.bf16.msra.mxu0 %v4430
        %5616 = vmatprep.subr.bf16.mxu0 %v4443
        %5617 = vmatpush1.bf16.msra.mxu0 %v4442
        %5618 = vmatprep.subr.bf16.mxu0 %v4455
        %5619 = vmatpush1.bf16.msra.mxu0 %v4454
        %5620 = vmatprep.subr.bf16.mxu0 %v4467
        %5621 = vmatpush1.bf16.msra.mxu0 %v4466
        %5622 = vmatprep.subr.bf16.mxu0 %v4479
        %5623 = vmatpush1.bf16.msra.mxu0 %v4478
        %5624 = vmatprep.subr.bf16.mxu0 %v4491
        %5625 = vmatpush1.bf16.msra.mxu0 %v4490
        %5626 = vmatprep.subr.bf16.mxu0 %v4503
        %5627 = vmatpush1.bf16.msra.mxu0 %v4502
        %5628 = vmatprep.subr.bf16.mxu0 %v4515
        %5629 = vmatpush1.bf16.msra.mxu0 %v4514
        %5630 = vmatprep.subr.bf16.mxu0 %v4527
        %5631 = vmatpush1.bf16.msra.mxu0 %v4526
        %5632 = vmatprep.subr.bf16.mxu0 %v4539
        %5633 = vmatpush1.bf16.msra.mxu0 %v4538
        %5634 = vmatprep.subr.bf16.mxu0 %v4551
        %5635 = vmatpush1.bf16.msra.mxu0 %v4550
        %5636 = vmatprep.mubr.bf16.mxu0 %v1615
        %5637 = vmatmul.mubr.bf16.gmra.mrb[0].mxu0 %v1614
        %v5638 = vpop.f32.mrb[0].mxu0
        %v5639 = vadd.f32 %v5598, %v5638
        %v5640 = vpop.f32.mrb[0].mxu0
        %v5641 = vadd.f32 %v5600, %v5640
        %v5642 = vpop.f32.mrb[0].mxu0
        %v5643 = vpop.f32.mrb[0].mxu0
        %5644 = vdwg.mxu0
        %5645 = vmatprep.subr.bf16.mxu0 %v4563
        %5646 = vmatpush1.bf16.msra.mxu0 %v4562
        %5647 = vmatprep.subr.bf16.mxu0 %v4575
        %5648 = vmatpush1.bf16.msra.mxu0 %v4574
        %5649 = vmatprep.subr.bf16.mxu0 %v4587
        %5650 = vmatpush1.bf16.msra.mxu0 %v4586
        %5651 = vmatprep.subr.bf16.mxu0 %v4599
        %5652 = vmatpush1.bf16.msra.mxu0 %v4598
        %5653 = vmatprep.subr.bf16.mxu0 %v4611
        %5654 = vmatpush1.bf16.msra.mxu0 %v4610
        %5655 = vmatprep.subr.bf16.mxu0 %v4623
        %5656 = vmatpush1.bf16.msra.mxu0 %v4622
        %5657 = vmatprep.subr.bf16.mxu0 %v4635
        %5658 = vmatpush1.bf16.msra.mxu0 %v4634
        %5659 = vmatprep.subr.bf16.mxu0 %v4647
        %5660 = vmatpush1.bf16.msra.mxu0 %v4646
        %5661 = vmatprep.subr.bf16.mxu0 %v4659
        %5662 = vmatpush1.bf16.msra.mxu0 %v4658
        %5663 = vmatprep.subr.bf16.mxu0 %v4671
        %5664 = vmatpush1.bf16.msra.mxu0 %v4670
        %5665 = vmatprep.subr.bf16.mxu0 %v4683
        %5666 = vmatpush1.bf16.msra.mxu0 %v4682
        %5667 = vmatprep.subr.bf16.mxu0 %v4695
        %5668 = vmatpush1.bf16.msra.mxu0 %v4694
        %5669 = vmatprep.subr.bf16.mxu0 %v4707
        %5670 = vmatpush1.bf16.msra.mxu0 %v4706
        %5671 = vmatprep.subr.bf16.mxu0 %v4719
        %5672 = vmatpush1.bf16.msra.mxu0 %v4718
        %5673 = vmatprep.subr.bf16.mxu0 %v4731
        %5674 = vmatpush1.bf16.msra.mxu0 %v4730
        %5675 = vmatprep.subr.bf16.mxu0 %v4743
        %5676 = vmatpush1.bf16.msra.mxu0 %v4742
        %5677 = vmatprep.mubr.bf16.mxu0 %v1617
        %5678 = vmatmul.mubr.bf16.gmra.mrb[0].mxu0 %v1616
        %v5679 = vpop.f32.mrb[0].mxu0
        %v5680 = vadd.f32 %v5639, %v5679
        %v5681 = vpop.f32.mrb[0].mxu0
        %v5682 = vadd.f32 %v5641, %v5681
        %v5683 = vpop.f32.mrb[0].mxu0
        %v5684 = vpop.f32.mrb[0].mxu0
        %5685 = vdwg.mxu0
        %5686 = vmatprep.subr.bf16.mxu0 %v3989
        %5687 = vmatpush1.bf16.msra.mxu0 %v3988
        %5688 = vmatprep.subr.bf16.mxu0 %v4001
        %5689 = vmatpush1.bf16.msra.mxu0 %v4000
        %5690 = vmatprep.subr.bf16.mxu0 %v4013
        %5691 = vmatpush1.bf16.msra.mxu0 %v4012
        %5692 = vmatprep.subr.bf16.mxu0 %v4025
        %5693 = vmatpush1.bf16.msra.mxu0 %v4024
        %5694 = vmatprep.subr.bf16.mxu0 %v4037
        %5695 = vmatpush1.bf16.msra.mxu0 %v4036
        %5696 = vmatprep.subr.bf16.mxu0 %v4049
        %5697 = vmatpush1.bf16.msra.mxu0 %v4048
        %5698 = vmatprep.subr.bf16.mxu0 %v4061
        %5699 = vmatpush1.bf16.msra.mxu0 %v4060
        %5700 = vmatprep.subr.bf16.mxu0 %v4073
        %5701 = vmatpush1.bf16.msra.mxu0 %v4072
        %5702 = vmatprep.subr.bf16.mxu0 %v4085
        %5703 = vmatpush1.bf16.msra.mxu0 %v4084
        %5704 = vmatprep.subr.bf16.mxu0 %v4097
        %5705 = vmatpush1.bf16.msra.mxu0 %v4096
        %5706 = vmatprep.subr.bf16.mxu0 %v4109
        %5707 = vmatpush1.bf16.msra.mxu0 %v4108
        %5708 = vmatprep.subr.bf16.mxu0 %v4121
        %5709 = vmatpush1.bf16.msra.mxu0 %v4120
        %5710 = vmatprep.subr.bf16.mxu0 %v4133
        %5711 = vmatpush1.bf16.msra.mxu0 %v4132
        %5712 = vmatprep.subr.bf16.mxu0 %v4145
        %5713 = vmatpush1.bf16.msra.mxu0 %v4144
        %5714 = vmatprep.subr.bf16.mxu0 %v4157
        %5715 = vmatpush1.bf16.msra.mxu0 %v4156
        %5716 = vmatprep.subr.bf16.mxu0 %v4169
        %5717 = vmatpush1.bf16.msra.mxu0 %v4168
        %5718 = vmatprep.mubr.bf16.mxu0 %v1611
        %5719 = vmatmul.mubr.bf16.gmra.mrb[0].mxu0 %v1610
        %v5720 = vpop.f32.mrb[0].mxu0
        %v5721 = vadd.f32 %v1633, %v5720
        %v5722 = vpop.f32.mrb[0].mxu0
        %v5723 = vadd.f32 %v1637, %v5722
        %v5724 = vpop.f32.mrb[0].mxu0
        %v5725 = vpop.f32.mrb[0].mxu0
        %5726 = vdwg.mxu0
        %5727 = vmatprep.subr.bf16.mxu0 %v4181
        %5728 = vmatpush1.bf16.msra.mxu0 %v4180
        %5729 = vmatprep.subr.bf16.mxu0 %v4193
        %5730 = vmatpush1.bf16.msra.mxu0 %v4192
        %5731 = vmatprep.subr.bf16.mxu0 %v4205
        %5732 = vmatpush1.bf16.msra.mxu0 %v4204
        %5733 = vmatprep.subr.bf16.mxu0 %v4217
        %5734 = vmatpush1.bf16.msra.mxu0 %v4216
        %5735 = vmatprep.subr.bf16.mxu0 %v4229
        %5736 = vmatpush1.bf16.msra.mxu0 %v4228
        %5737 = vmatprep.subr.bf16.mxu0 %v4241
        %5738 = vmatpush1.bf16.msra.mxu0 %v4240
        %5739 = vmatprep.subr.bf16.mxu0 %v4253
        %5740 = vmatpush1.bf16.msra.mxu0 %v4252
        %5741 = vmatprep.subr.bf16.mxu0 %v4265
        %5742 = vmatpush1.bf16.msra.mxu0 %v4264
        %5743 = vmatprep.subr.bf16.mxu0 %v4277
        %5744 = vmatpush1.bf16.msra.mxu0 %v4276
        %5745 = vmatprep.subr.bf16.mxu0 %v4289
        %5746 = vmatpush1.bf16.msra.mxu0 %v4288
        %5747 = vmatprep.subr.bf16.mxu0 %v4301
        %5748 = vmatpush1.bf16.msra.mxu0 %v4300
        %5749 = vmatprep.subr.bf16.mxu0 %v4313
        %5750 = vmatpush1.bf16.msra.mxu0 %v4312
        %5751 = vmatprep.subr.bf16.mxu0 %v4325
        %5752 = vmatpush1.bf16.msra.mxu0 %v4324
        %5753 = vmatprep.subr.bf16.mxu0 %v4337
        %5754 = vmatpush1.bf16.msra.mxu0 %v4336
        %5755 = vmatprep.subr.bf16.mxu0 %v4349
        %5756 = vmatpush1.bf16.msra.mxu0 %v4348
        %5757 = vmatprep.subr.bf16.mxu0 %v4361
        %5758 = vmatpush1.bf16.msra.mxu0 %v4360
        %5759 = vmatprep.mubr.bf16.mxu0 %v1613
        %5760 = vmatmul.mubr.bf16.gmra.mrb[0].mxu0 %v1612
        %v5761 = vpop.f32.mrb[0].mxu0
        %v5762 = vadd.f32 %v5721, %v5761
        %v5763 = vpop.f32.mrb[0].mxu0
        %v5764 = vadd.f32 %v5723, %v5763
        %v5765 = vpop.f32.mrb[0].mxu0
        %v5766 = vpop.f32.mrb[0].mxu0
        %5767 = vdwg.mxu0
        %5768 = vmatprep.subr.bf16.mxu0 %v4373
        %5769 = vmatpush1.bf16.msra.mxu0 %v4372
        %5770 = vmatprep.subr.bf16.mxu0 %v4385
        %5771 = vmatpush1.bf16.msra.mxu0 %v4384
        %5772 = vmatprep.subr.bf16.mxu0 %v4397
        %5773 = vmatpush1.bf16.msra.mxu0 %v4396
        %5774 = vmatprep.subr.bf16.mxu0 %v4409
        %5775 = vmatpush1.bf16.msra.mxu0 %v4408
        %5776 = vmatprep.subr.bf16.mxu0 %v4421
        %5777 = vmatpush1.bf16.msra.mxu0 %v4420
        %5778 = vmatprep.subr.bf16.mxu0 %v4433
        %5779 = vmatpush1.bf16.msra.mxu0 %v4432
        %5780 = vmatprep.subr.bf16.mxu0 %v4445
        %5781 = vmatpush1.bf16.msra.mxu0 %v4444
        %5782 = vmatprep.subr.bf16.mxu0 %v4457
        %5783 = vmatpush1.bf16.msra.mxu0 %v4456
        %5784 = vmatprep.subr.bf16.mxu0 %v4469
        %5785 = vmatpush1.bf16.msra.mxu0 %v4468
        %5786 = vmatprep.subr.bf16.mxu0 %v4481
        %5787 = vmatpush1.bf16.msra.mxu0 %v4480
        %5788 = vmatprep.subr.bf16.mxu0 %v4493
        %5789 = vmatpush1.bf16.msra.mxu0 %v4492
        %5790 = vmatprep.subr.bf16.mxu0 %v4505
        %5791 = vmatpush1.bf16.msra.mxu0 %v4504
        %5792 = vmatprep.subr.bf16.mxu0 %v4517
        %5793 = vmatpush1.bf16.msra.mxu0 %v4516
        %5794 = vmatprep.subr.bf16.mxu0 %v4529
        %5795 = vmatpush1.bf16.msra.mxu0 %v4528
        %5796 = vmatprep.subr.bf16.mxu0 %v4541
        %5797 = vmatpush1.bf16.msra.mxu0 %v4540
        %5798 = vmatprep.subr.bf16.mxu0 %v4553
        %5799 = vmatpush1.bf16.msra.mxu0 %v4552
        %5800 = vmatprep.mubr.bf16.mxu0 %v1615
        %5801 = vmatmul.mubr.bf16.gmra.mrb[0].mxu0 %v1614
        %v5802 = vpop.f32.mrb[0].mxu0
        %v5803 = vadd.f32 %v5762, %v5802
        %v5804 = vpop.f32.mrb[0].mxu0
        %v5805 = vadd.f32 %v5764, %v5804
        %v5806 = vpop.f32.mrb[0].mxu0
        %v5807 = vpop.f32.mrb[0].mxu0
        %5808 = vdwg.mxu0
        %5809 = vmatprep.subr.bf16.mxu0 %v4565
        %5810 = vmatpush1.bf16.msra.mxu0 %v4564
        %5811 = vmatprep.subr.bf16.mxu0 %v4577
        %5812 = vmatpush1.bf16.msra.mxu0 %v4576
        %5813 = vmatprep.subr.bf16.mxu0 %v4589
        %5814 = vmatpush1.bf16.msra.mxu0 %v4588
        %5815 = vmatprep.subr.bf16.mxu0 %v4601
        %5816 = vmatpush1.bf16.msra.mxu0 %v4600
        %5817 = vmatprep.subr.bf16.mxu0 %v4613
        %5818 = vmatpush1.bf16.msra.mxu0 %v4612
        %5819 = vmatprep.subr.bf16.mxu0 %v4625
        %5820 = vmatpush1.bf16.msra.mxu0 %v4624
        %5821 = vmatprep.subr.bf16.mxu0 %v4637
        %5822 = vmatpush1.bf16.msra.mxu0 %v4636
        %5823 = vmatprep.subr.bf16.mxu0 %v4649
        %5824 = vmatpush1.bf16.msra.mxu0 %v4648
        %5825 = vmatprep.subr.bf16.mxu0 %v4661
        %5826 = vmatpush1.bf16.msra.mxu0 %v4660
        %5827 = vmatprep.subr.bf16.mxu0 %v4673
        %5828 = vmatpush1.bf16.msra.mxu0 %v4672
        %5829 = vmatprep.subr.bf16.mxu0 %v4685
        %5830 = vmatpush1.bf16.msra.mxu0 %v4684
        %5831 = vmatprep.subr.bf16.mxu0 %v4697
        %5832 = vmatpush1.bf16.msra.mxu0 %v4696
        %5833 = vmatprep.subr.bf16.mxu0 %v4709
        %5834 = vmatpush1.bf16.msra.mxu0 %v4708
        %5835 = vmatprep.subr.bf16.mxu0 %v4721
        %5836 = vmatpush1.bf16.msra.mxu0 %v4720
        %5837 = vmatprep.subr.bf16.mxu0 %v4733
        %5838 = vmatpush1.bf16.msra.mxu0 %v4732
        %5839 = vmatprep.subr.bf16.mxu0 %v4745
        %5840 = vmatpush1.bf16.msra.mxu0 %v4744
        %5841 = vmatprep.mubr.bf16.mxu0 %v1617
        %5842 = vmatmul.mubr.bf16.gmra.mrb[0].mxu0 %v1616
        %v5843 = vpop.f32.mrb[0].mxu0
        %v5844 = vadd.f32 %v5803, %v5843
        %v5845 = vpop.f32.mrb[0].mxu0
        %v5846 = vadd.f32 %v5805, %v5845
        %v5847 = vpop.f32.mrb[0].mxu0
        %v5848 = vpop.f32.mrb[0].mxu0
        %5849 = vdwg.mxu0
        %5850 = vmatprep.subr.bf16.mxu0 %v3991
        %5851 = vmatpush1.bf16.msra.mxu0 %v3990
        %5852 = vmatprep.subr.bf16.mxu0 %v4003
        %5853 = vmatpush1.bf16.msra.mxu0 %v4002
        %5854 = vmatprep.subr.bf16.mxu0 %v4015
        %5855 = vmatpush1.bf16.msra.mxu0 %v4014
        %5856 = vmatprep.subr.bf16.mxu0 %v4027
        %5857 = vmatpush1.bf16.msra.mxu0 %v4026
        %5858 = vmatprep.subr.bf16.mxu0 %v4039
        %5859 = vmatpush1.bf16.msra.mxu0 %v4038
        %5860 = vmatprep.subr.bf16.mxu0 %v4051
        %5861 = vmatpush1.bf16.msra.mxu0 %v4050
        %5862 = vmatprep.subr.bf16.mxu0 %v4063
        %5863 = vmatpush1.bf16.msra.mxu0 %v4062
        %5864 = vmatprep.subr.bf16.mxu0 %v4075
        %5865 = vmatpush1.bf16.msra.mxu0 %v4074
        %5866 = vmatprep.subr.bf16.mxu0 %v4087
        %5867 = vmatpush1.bf16.msra.mxu0 %v4086
        %5868 = vmatprep.subr.bf16.mxu0 %v4099
        %5869 = vmatpush1.bf16.msra.mxu0 %v4098
        %5870 = vmatprep.subr.bf16.mxu0 %v4111
        %5871 = vmatpush1.bf16.msra.mxu0 %v4110
        %5872 = vmatprep.subr.bf16.mxu0 %v4123
        %5873 = vmatpush1.bf16.msra.mxu0 %v4122
        %5874 = vmatprep.subr.bf16.mxu0 %v4135
        %5875 = vmatpush1.bf16.msra.mxu0 %v4134
        %5876 = vmatprep.subr.bf16.mxu0 %v4147
        %5877 = vmatpush1.bf16.msra.mxu0 %v4146
        %5878 = vmatprep.subr.bf16.mxu0 %v4159
        %5879 = vmatpush1.bf16.msra.mxu0 %v4158
        %5880 = vmatprep.subr.bf16.mxu0 %v4171
        %5881 = vmatpush1.bf16.msra.mxu0 %v4170
        %5882 = vmatprep.mubr.bf16.mxu0 %v1611
        %5883 = vmatmul.mubr.bf16.gmra.mrb[0].mxu0 %v1610
        %v5884 = vpop.f32.mrb[0].mxu0
        %v5885 = vadd.f32 %v1641, %v5884
        %v5886 = vpop.f32.mrb[0].mxu0
        %v5887 = vadd.f32 %v1645, %v5886
        %v5888 = vpop.f32.mrb[0].mxu0
        %v5889 = vpop.f32.mrb[0].mxu0
        %5890 = vdwg.mxu0
        %5891 = vmatprep.subr.bf16.mxu0 %v4183
        %5892 = vmatpush1.bf16.msra.mxu0 %v4182
        %5893 = vmatprep.subr.bf16.mxu0 %v4195
        %5894 = vmatpush1.bf16.msra.mxu0 %v4194
        %5895 = vmatprep.subr.bf16.mxu0 %v4207
        %5896 = vmatpush1.bf16.msra.mxu0 %v4206
        %5897 = vmatprep.subr.bf16.mxu0 %v4219
        %5898 = vmatpush1.bf16.msra.mxu0 %v4218
        %5899 = vmatprep.subr.bf16.mxu0 %v4231
        %5900 = vmatpush1.bf16.msra.mxu0 %v4230
        %5901 = vmatprep.subr.bf16.mxu0 %v4243
        %5902 = vmatpush1.bf16.msra.mxu0 %v4242
        %5903 = vmatprep.subr.bf16.mxu0 %v4255
        %5904 = vmatpush1.bf16.msra.mxu0 %v4254
        %5905 = vmatprep.subr.bf16.mxu0 %v4267
        %5906 = vmatpush1.bf16.msra.mxu0 %v4266
        %5907 = vmatprep.subr.bf16.mxu0 %v4279
        %5908 = vmatpush1.bf16.msra.mxu0 %v4278
        %5909 = vmatprep.subr.bf16.mxu0 %v4291
        %5910 = vmatpush1.bf16.msra.mxu0 %v4290
        %5911 = vmatprep.subr.bf16.mxu0 %v4303
        %5912 = vmatpush1.bf16.msra.mxu0 %v4302
        %5913 = vmatprep.subr.bf16.mxu0 %v4315
        %5914 = vmatpush1.bf16.msra.mxu0 %v4314
        %5915 = vmatprep.subr.bf16.mxu0 %v4327
        %5916 = vmatpush1.bf16.msra.mxu0 %v4326
        %5917 = vmatprep.subr.bf16.mxu0 %v4339
        %5918 = vmatpush1.bf16.msra.mxu0 %v4338
        %5919 = vmatprep.subr.bf16.mxu0 %v4351
        %5920 = vmatpush1.bf16.msra.mxu0 %v4350
        %5921 = vmatprep.subr.bf16.mxu0 %v4363
        %5922 = vmatpush1.bf16.msra.mxu0 %v4362
        %5923 = vmatprep.mubr.bf16.mxu0 %v1613
        %5924 = vmatmul.mubr.bf16.gmra.mrb[0].mxu0 %v1612
        %v5925 = vpop.f32.mrb[0].mxu0
        %v5926 = vadd.f32 %v5885, %v5925
        %v5927 = vpop.f32.mrb[0].mxu0
        %v5928 = vadd.f32 %v5887, %v5927
        %v5929 = vpop.f32.mrb[0].mxu0
        %v5930 = vpop.f32.mrb[0].mxu0
        %5931 = vdwg.mxu0
        %5932 = vmatprep.subr.bf16.mxu0 %v4375
        %5933 = vmatpush1.bf16.msra.mxu0 %v4374
        %5934 = vmatprep.subr.bf16.mxu0 %v4387
        %5935 = vmatpush1.bf16.msra.mxu0 %v4386
        %5936 = vmatprep.subr.bf16.mxu0 %v4399
        %5937 = vmatpush1.bf16.msra.mxu0 %v4398
        %5938 = vmatprep.subr.bf16.mxu0 %v4411
        %5939 = vmatpush1.bf16.msra.mxu0 %v4410
        %5940 = vmatprep.subr.bf16.mxu0 %v4423
        %5941 = vmatpush1.bf16.msra.mxu0 %v4422
        %5942 = vmatprep.subr.bf16.mxu0 %v4435
        %5943 = vmatpush1.bf16.msra.mxu0 %v4434
        %5944 = vmatprep.subr.bf16.mxu0 %v4447
        %5945 = vmatpush1.bf16.msra.mxu0 %v4446
        %5946 = vmatprep.subr.bf16.mxu0 %v4459
        %5947 = vmatpush1.bf16.msra.mxu0 %v4458
        %5948 = vmatprep.subr.bf16.mxu0 %v4471
        %5949 = vmatpush1.bf16.msra.mxu0 %v4470
        %5950 = vmatprep.subr.bf16.mxu0 %v4483
        %5951 = vmatpush1.bf16.msra.mxu0 %v4482
        %5952 = vmatprep.subr.bf16.mxu0 %v4495
        %5953 = vmatpush1.bf16.msra.mxu0 %v4494
        %5954 = vmatprep.subr.bf16.mxu0 %v4507
        %5955 = vmatpush1.bf16.msra.mxu0 %v4506
        %5956 = vmatprep.subr.bf16.mxu0 %v4519
        %5957 = vmatpush1.bf16.msra.mxu0 %v4518
        %5958 = vmatprep.subr.bf16.mxu0 %v4531
        %5959 = vmatpush1.bf16.msra.mxu0 %v4530
        %5960 = vmatprep.subr.bf16.mxu0 %v4543
        %5961 = vmatpush1.bf16.msra.mxu0 %v4542
        %5962 = vmatprep.subr.bf16.mxu0 %v4555
        %5963 = vmatpush1.bf16.msra.mxu0 %v4554
        %5964 = vmatprep.mubr.bf16.mxu0 %v1615
        %5965 = vmatmul.mubr.bf16.gmra.mrb[0].mxu0 %v1614
        %v5966 = vpop.f32.mrb[0].mxu0
        %v5967 = vadd.f32 %v5926, %v5966
        %v5968 = vpop.f32.mrb[0].mxu0
        %v5969 = vadd.f32 %v5928, %v5968
        %v5970 = vpop.f32.mrb[0].mxu0
        %v5971 = vpop.f32.mrb[0].mxu0
        %5972 = vdwg.mxu0
        %5973 = vmatprep.subr.bf16.mxu0 %v4567
        %5974 = vmatpush1.bf16.msra.mxu0 %v4566
        %5975 = vmatprep.subr.bf16.mxu0 %v4579
        %5976 = vmatpush1.bf16.msra.mxu0 %v4578
        %5977 = vmatprep.subr.bf16.mxu0 %v4591
        %5978 = vmatpush1.bf16.msra.mxu0 %v4590
        %5979 = vmatprep.subr.bf16.mxu0 %v4603
        %5980 = vmatpush1.bf16.msra.mxu0 %v4602
        %5981 = vmatprep.subr.bf16.mxu0 %v4615
        %5982 = vmatpush1.bf16.msra.mxu0 %v4614
        %5983 = vmatprep.subr.bf16.mxu0 %v4627
        %5984 = vmatpush1.bf16.msra.mxu0 %v4626
        %5985 = vmatprep.subr.bf16.mxu0 %v4639
        %5986 = vmatpush1.bf16.msra.mxu0 %v4638
        %5987 = vmatprep.subr.bf16.mxu0 %v4651
        %5988 = vmatpush1.bf16.msra.mxu0 %v4650
        %5989 = vmatprep.subr.bf16.mxu0 %v4663
        %5990 = vmatpush1.bf16.msra.mxu0 %v4662
        %5991 = vmatprep.subr.bf16.mxu0 %v4675
        %5992 = vmatpush1.bf16.msra.mxu0 %v4674
        %5993 = vmatprep.subr.bf16.mxu0 %v4687
        %5994 = vmatpush1.bf16.msra.mxu0 %v4686
        %5995 = vmatprep.subr.bf16.mxu0 %v4699
        %5996 = vmatpush1.bf16.msra.mxu0 %v4698
        %5997 = vmatprep.subr.bf16.mxu0 %v4711
        %5998 = vmatpush1.bf16.msra.mxu0 %v4710
        %5999 = vmatprep.subr.bf16.mxu0 %v4723
        %6000 = vmatpush1.bf16.msra.mxu0 %v4722
        %6001 = vmatprep.subr.bf16.mxu0 %v4735
        %6002 = vmatpush1.bf16.msra.mxu0 %v4734
        %6003 = vmatprep.subr.bf16.mxu0 %v4747
        %6004 = vmatpush1.bf16.msra.mxu0 %v4746
        %6005 = vmatprep.mubr.bf16.mxu0 %v1617
        %6006 = vmatmul.mubr.bf16.gmra.mrb[0].mxu0 %v1616
        %v6007 = vpop.f32.mrb[0].mxu0
        %v6008 = vadd.f32 %v5967, %v6007
        %v6009 = vpop.f32.mrb[0].mxu0
        %v6010 = vadd.f32 %v5969, %v6009
        %v6011 = vpop.f32.mrb[0].mxu0
        %v6012 = vpop.f32.mrb[0].mxu0
        %6013 = vdwg.mxu0
        %6014 = vmatprep.subr.bf16.mxu0 %v3993
        %6015 = vmatpush1.bf16.msra.mxu0 %v3992
        %6016 = vmatprep.subr.bf16.mxu0 %v4005
        %6017 = vmatpush1.bf16.msra.mxu0 %v4004
        %6018 = vmatprep.subr.bf16.mxu0 %v4017
        %6019 = vmatpush1.bf16.msra.mxu0 %v4016
        %6020 = vmatprep.subr.bf16.mxu0 %v4029
        %6021 = vmatpush1.bf16.msra.mxu0 %v4028
        %6022 = vmatprep.subr.bf16.mxu0 %v4041
        %6023 = vmatpush1.bf16.msra.mxu0 %v4040
        %6024 = vmatprep.subr.bf16.mxu0 %v4053
        %6025 = vmatpush1.bf16.msra.mxu0 %v4052
        %6026 = vmatprep.subr.bf16.mxu0 %v4065
        %6027 = vmatpush1.bf16.msra.mxu0 %v4064
        %6028 = vmatprep.subr.bf16.mxu0 %v4077
        %6029 = vmatpush1.bf16.msra.mxu0 %v4076
        %6030 = vmatprep.subr.bf16.mxu0 %v4089
        %6031 = vmatpush1.bf16.msra.mxu0 %v4088
        %6032 = vmatprep.subr.bf16.mxu0 %v4101
        %6033 = vmatpush1.bf16.msra.mxu0 %v4100
        %6034 = vmatprep.subr.bf16.mxu0 %v4113
        %6035 = vmatpush1.bf16.msra.mxu0 %v4112
        %6036 = vmatprep.subr.bf16.mxu0 %v4125
        %6037 = vmatpush1.bf16.msra.mxu0 %v4124
        %6038 = vmatprep.subr.bf16.mxu0 %v4137
        %6039 = vmatpush1.bf16.msra.mxu0 %v4136
        %6040 = vmatprep.subr.bf16.mxu0 %v4149
        %6041 = vmatpush1.bf16.msra.mxu0 %v4148
        %6042 = vmatprep.subr.bf16.mxu0 %v4161
        %6043 = vmatpush1.bf16.msra.mxu0 %v4160
        %6044 = vmatprep.subr.bf16.mxu0 %v4173
        %6045 = vmatpush1.bf16.msra.mxu0 %v4172
        %6046 = vmatprep.mubr.bf16.mxu0 %v1611
        %6047 = vmatmul.mubr.bf16.gmra.mrb[0].mxu0 %v1610
        %v6048 = vpop.f32.mrb[0].mxu0
        %v6049 = vadd.f32 %v1649, %v6048
        %v6050 = vpop.f32.mrb[0].mxu0
        %v6051 = vadd.f32 %v1653, %v6050
        %v6052 = vpop.f32.mrb[0].mxu0
        %v6053 = vpop.f32.mrb[0].mxu0
        %6054 = vdwg.mxu0
        %6055 = vmatprep.subr.bf16.mxu0 %v4185
        %6056 = vmatpush1.bf16.msra.mxu0 %v4184
        %6057 = vmatprep.subr.bf16.mxu0 %v4197
        %6058 = vmatpush1.bf16.msra.mxu0 %v4196
        %6059 = vmatprep.subr.bf16.mxu0 %v4209
        %6060 = vmatpush1.bf16.msra.mxu0 %v4208
        %6061 = vmatprep.subr.bf16.mxu0 %v4221
        %6062 = vmatpush1.bf16.msra.mxu0 %v4220
        %6063 = vmatprep.subr.bf16.mxu0 %v4233
        %6064 = vmatpush1.bf16.msra.mxu0 %v4232
        %6065 = vmatprep.subr.bf16.mxu0 %v4245
        %6066 = vmatpush1.bf16.msra.mxu0 %v4244
        %6067 = vmatprep.subr.bf16.mxu0 %v4257
        %6068 = vmatpush1.bf16.msra.mxu0 %v4256
        %6069 = vmatprep.subr.bf16.mxu0 %v4269
        %6070 = vmatpush1.bf16.msra.mxu0 %v4268
        %6071 = vmatprep.subr.bf16.mxu0 %v4281
        %6072 = vmatpush1.bf16.msra.mxu0 %v4280
        %6073 = vmatprep.subr.bf16.mxu0 %v4293
        %6074 = vmatpush1.bf16.msra.mxu0 %v4292
        %6075 = vmatprep.subr.bf16.mxu0 %v4305
        %6076 = vmatpush1.bf16.msra.mxu0 %v4304
        %6077 = vmatprep.subr.bf16.mxu0 %v4317
        %6078 = vmatpush1.bf16.msra.mxu0 %v4316
        %6079 = vmatprep.subr.bf16.mxu0 %v4329
        %6080 = vmatpush1.bf16.msra.mxu0 %v4328
        %6081 = vmatprep.subr.bf16.mxu0 %v4341
        %6082 = vmatpush1.bf16.msra.mxu0 %v4340
        %6083 = vmatprep.subr.bf16.mxu0 %v4353
        %6084 = vmatpush1.bf16.msra.mxu0 %v4352
        %6085 = vmatprep.subr.bf16.mxu0 %v4365
        %6086 = vmatpush1.bf16.msra.mxu0 %v4364
        %6087 = vmatprep.mubr.bf16.mxu0 %v1613
        %6088 = vmatmul.mubr.bf16.gmra.mrb[0].mxu0 %v1612
        %v6089 = vpop.f32.mrb[0].mxu0
        %v6090 = vadd.f32 %v6049, %v6089
        %v6091 = vpop.f32.mrb[0].mxu0
        %v6092 = vadd.f32 %v6051, %v6091
        %v6093 = vpop.f32.mrb[0].mxu0
        %v6094 = vpop.f32.mrb[0].mxu0
        %6095 = vdwg.mxu0
        %6096 = vmatprep.subr.bf16.mxu0 %v4377
        %6097 = vmatpush1.bf16.msra.mxu0 %v4376
        %6098 = vmatprep.subr.bf16.mxu0 %v4389
        %6099 = vmatpush1.bf16.msra.mxu0 %v4388
        %6100 = vmatprep.subr.bf16.mxu0 %v4401
        %6101 = vmatpush1.bf16.msra.mxu0 %v4400
        %6102 = vmatprep.subr.bf16.mxu0 %v4413
        %6103 = vmatpush1.bf16.msra.mxu0 %v4412
        %6104 = vmatprep.subr.bf16.mxu0 %v4425
        %6105 = vmatpush1.bf16.msra.mxu0 %v4424
        %6106 = vmatprep.subr.bf16.mxu0 %v4437
        %6107 = vmatpush1.bf16.msra.mxu0 %v4436
        %6108 = vmatprep.subr.bf16.mxu0 %v4449
        %6109 = vmatpush1.bf16.msra.mxu0 %v4448
        %6110 = vmatprep.subr.bf16.mxu0 %v4461
        %6111 = vmatpush1.bf16.msra.mxu0 %v4460
        %6112 = vmatprep.subr.bf16.mxu0 %v4473
        %6113 = vmatpush1.bf16.msra.mxu0 %v4472
        %6114 = vmatprep.subr.bf16.mxu0 %v4485
        %6115 = vmatpush1.bf16.msra.mxu0 %v4484
        %6116 = vmatprep.subr.bf16.mxu0 %v4497
        %6117 = vmatpush1.bf16.msra.mxu0 %v4496
        %6118 = vmatprep.subr.bf16.mxu0 %v4509
        %6119 = vmatpush1.bf16.msra.mxu0 %v4508
        %6120 = vmatprep.subr.bf16.mxu0 %v4521
        %6121 = vmatpush1.bf16.msra.mxu0 %v4520
        %6122 = vmatprep.subr.bf16.mxu0 %v4533
        %6123 = vmatpush1.bf16.msra.mxu0 %v4532
        %6124 = vmatprep.subr.bf16.mxu0 %v4545
        %6125 = vmatpush1.bf16.msra.mxu0 %v4544
        %6126 = vmatprep.subr.bf16.mxu0 %v4557
        %6127 = vmatpush1.bf16.msra.mxu0 %v4556
        %6128 = vmatprep.mubr.bf16.mxu0 %v1615
        %6129 = vmatmul.mubr.bf16.gmra.mrb[0].mxu0 %v1614
        %v6130 = vpop.f32.mrb[0].mxu0
        %v6131 = vadd.f32 %v6090, %v6130
        %v6132 = vpop.f32.mrb[0].mxu0
        %v6133 = vadd.f32 %v6092, %v6132
        %v6134 = vpop.f32.mrb[0].mxu0
        %v6135 = vpop.f32.mrb[0].mxu0
        %6136 = vdwg.mxu0
        %6137 = vmatprep.subr.bf16.mxu0 %v4569
        %6138 = vmatpush1.bf16.msra.mxu0 %v4568
        %6139 = vmatprep.subr.bf16.mxu0 %v4581
        %6140 = vmatpush1.bf16.msra.mxu0 %v4580
        %6141 = vmatprep.subr.bf16.mxu0 %v4593
        %6142 = vmatpush1.bf16.msra.mxu0 %v4592
        %6143 = vmatprep.subr.bf16.mxu0 %v4605
        %6144 = vmatpush1.bf16.msra.mxu0 %v4604
        %6145 = vmatprep.subr.bf16.mxu0 %v4617
        %6146 = vmatpush1.bf16.msra.mxu0 %v4616
        %6147 = vmatprep.subr.bf16.mxu0 %v4629
        %6148 = vmatpush1.bf16.msra.mxu0 %v4628
        %6149 = vmatprep.subr.bf16.mxu0 %v4641
        %6150 = vmatpush1.bf16.msra.mxu0 %v4640
        %6151 = vmatprep.subr.bf16.mxu0 %v4653
        %6152 = vmatpush1.bf16.msra.mxu0 %v4652
        %6153 = vmatprep.subr.bf16.mxu0 %v4665
        %6154 = vmatpush1.bf16.msra.mxu0 %v4664
        %6155 = vmatprep.subr.bf16.mxu0 %v4677
        %6156 = vmatpush1.bf16.msra.mxu0 %v4676
        %6157 = vmatprep.subr.bf16.mxu0 %v4689
        %6158 = vmatpush1.bf16.msra.mxu0 %v4688
        %6159 = vmatprep.subr.bf16.mxu0 %v4701
        %6160 = vmatpush1.bf16.msra.mxu0 %v4700
        %6161 = vmatprep.subr.bf16.mxu0 %v4713
        %6162 = vmatpush1.bf16.msra.mxu0 %v4712
        %6163 = vmatprep.subr.bf16.mxu0 %v4725
        %6164 = vmatpush1.bf16.msra.mxu0 %v4724
        %6165 = vmatprep.subr.bf16.mxu0 %v4737
        %6166 = vmatpush1.bf16.msra.mxu0 %v4736
        %6167 = vmatprep.subr.bf16.mxu0 %v4749
        %6168 = vmatpush1.bf16.msra.mxu0 %v4748
        %6169 = vmatprep.mubr.bf16.mxu0 %v1617
        %6170 = vmatmul.mubr.bf16.gmra.mrb[0].mxu0 %v1616
        %v6171 = vpop.f32.mrb[0].mxu0
        %v6172 = vadd.f32 %v6131, %v6171
        %v6173 = vpop.f32.mrb[0].mxu0
        %v6174 = vadd.f32 %v6133, %v6173
        %v6175 = vpop.f32.mrb[0].mxu0
        %v6176 = vpop.f32.mrb[0].mxu0
        %6177 = vdwg.mxu0
        %6178 = vmatprep.subr.bf16.mxu0 %v3995
        %6179 = vmatpush1.bf16.msra.mxu0 %v3994
        %6180 = vmatprep.subr.bf16.mxu0 %v4007
        %6181 = vmatpush1.bf16.msra.mxu0 %v4006
        %6182 = vmatprep.subr.bf16.mxu0 %v4019
        %6183 = vmatpush1.bf16.msra.mxu0 %v4018
        %6184 = vmatprep.subr.bf16.mxu0 %v4031
        %6185 = vmatpush1.bf16.msra.mxu0 %v4030
        %6186 = vmatprep.subr.bf16.mxu0 %v4043
        %6187 = vmatpush1.bf16.msra.mxu0 %v4042
        %6188 = vmatprep.subr.bf16.mxu0 %v4055
        %6189 = vmatpush1.bf16.msra.mxu0 %v4054
        %6190 = vmatprep.subr.bf16.mxu0 %v4067
        %6191 = vmatpush1.bf16.msra.mxu0 %v4066
        %6192 = vmatprep.subr.bf16.mxu0 %v4079
        %6193 = vmatpush1.bf16.msra.mxu0 %v4078
        %6194 = vmatprep.subr.bf16.mxu0 %v4091
        %6195 = vmatpush1.bf16.msra.mxu0 %v4090
        %6196 = vmatprep.subr.bf16.mxu0 %v4103
        %6197 = vmatpush1.bf16.msra.mxu0 %v4102
        %6198 = vmatprep.subr.bf16.mxu0 %v4115
        %6199 = vmatpush1.bf16.msra.mxu0 %v4114
        %6200 = vmatprep.subr.bf16.mxu0 %v4127
        %6201 = vmatpush1.bf16.msra.mxu0 %v4126
        %6202 = vmatprep.subr.bf16.mxu0 %v4139
        %6203 = vmatpush1.bf16.msra.mxu0 %v4138
        %6204 = vmatprep.subr.bf16.mxu0 %v4151
        %6205 = vmatpush1.bf16.msra.mxu0 %v4150
        %6206 = vmatprep.subr.bf16.mxu0 %v4163
        %6207 = vmatpush1.bf16.msra.mxu0 %v4162
        %6208 = vmatprep.subr.bf16.mxu0 %v4175
        %6209 = vmatpush1.bf16.msra.mxu0 %v4174
        %6210 = vmatprep.mubr.bf16.mxu0 %v1611
        %6211 = vmatmul.mubr.bf16.gmra.mrb[0].mxu0 %v1610
        %v6212 = vpop.f32.mrb[0].mxu0
        %v6213 = vadd.f32 %v1657, %v6212
        %v6214 = vpop.f32.mrb[0].mxu0
        %v6215 = vadd.f32 %v1661, %v6214
        %v6216 = vpop.f32.mrb[0].mxu0
        %v6217 = vpop.f32.mrb[0].mxu0
        %6218 = vdwg.mxu0
        %6219 = vmatprep.subr.bf16.mxu0 %v4187
        %6220 = vmatpush1.bf16.msra.mxu0 %v4186
        %6221 = vmatprep.subr.bf16.mxu0 %v4199
        %6222 = vmatpush1.bf16.msra.mxu0 %v4198
        %6223 = vmatprep.subr.bf16.mxu0 %v4211
        %6224 = vmatpush1.bf16.msra.mxu0 %v4210
        %6225 = vmatprep.subr.bf16.mxu0 %v4223
        %6226 = vmatpush1.bf16.msra.mxu0 %v4222
        %6227 = vmatprep.subr.bf16.mxu0 %v4235
        %6228 = vmatpush1.bf16.msra.mxu0 %v4234
        %6229 = vmatprep.subr.bf16.mxu0 %v4247
        %6230 = vmatpush1.bf16.msra.mxu0 %v4246
        %6231 = vmatprep.subr.bf16.mxu0 %v4259
        %6232 = vmatpush1.bf16.msra.mxu0 %v4258
        %6233 = vmatprep.subr.bf16.mxu0 %v4271
        %6234 = vmatpush1.bf16.msra.mxu0 %v4270
        %6235 = vmatprep.subr.bf16.mxu0 %v4283
        %6236 = vmatpush1.bf16.msra.mxu0 %v4282
        %6237 = vmatprep.subr.bf16.mxu0 %v4295
        %6238 = vmatpush1.bf16.msra.mxu0 %v4294
        %6239 = vmatprep.subr.bf16.mxu0 %v4307
        %6240 = vmatpush1.bf16.msra.mxu0 %v4306
        %6241 = vmatprep.subr.bf16.mxu0 %v4319
        %6242 = vmatpush1.bf16.msra.mxu0 %v4318
        %6243 = vmatprep.subr.bf16.mxu0 %v4331
        %6244 = vmatpush1.bf16.msra.mxu0 %v4330
        %6245 = vmatprep.subr.bf16.mxu0 %v4343
        %6246 = vmatpush1.bf16.msra.mxu0 %v4342
        %6247 = vmatprep.subr.bf16.mxu0 %v4355
        %6248 = vmatpush1.bf16.msra.mxu0 %v4354
        %6249 = vmatprep.subr.bf16.mxu0 %v4367
        %6250 = vmatpush1.bf16.msra.mxu0 %v4366
        %6251 = vmatprep.mubr.bf16.mxu0 %v1613
        %6252 = vmatmul.mubr.bf16.gmra.mrb[0].mxu0 %v1612
        %v6253 = vpop.f32.mrb[0].mxu0
        %v6254 = vadd.f32 %v6213, %v6253
        %v6255 = vpop.f32.mrb[0].mxu0
        %v6256 = vadd.f32 %v6215, %v6255
        %v6257 = vpop.f32.mrb[0].mxu0
        %v6258 = vpop.f32.mrb[0].mxu0
        %6259 = vdwg.mxu0
        %6260 = vmatprep.subr.bf16.mxu0 %v4379
        %6261 = vmatpush1.bf16.msra.mxu0 %v4378
        %6262 = vmatprep.subr.bf16.mxu0 %v4391
        %6263 = vmatpush1.bf16.msra.mxu0 %v4390
        %6264 = vmatprep.subr.bf16.mxu0 %v4403
        %6265 = vmatpush1.bf16.msra.mxu0 %v4402
        %6266 = vmatprep.subr.bf16.mxu0 %v4415
        %6267 = vmatpush1.bf16.msra.mxu0 %v4414
        %6268 = vmatprep.subr.bf16.mxu0 %v4427
        %6269 = vmatpush1.bf16.msra.mxu0 %v4426
        %6270 = vmatprep.subr.bf16.mxu0 %v4439
        %6271 = vmatpush1.bf16.msra.mxu0 %v4438
        %6272 = vmatprep.subr.bf16.mxu0 %v4451
        %6273 = vmatpush1.bf16.msra.mxu0 %v4450
        %6274 = vmatprep.subr.bf16.mxu0 %v4463
        %6275 = vmatpush1.bf16.msra.mxu0 %v4462
        %6276 = vmatprep.subr.bf16.mxu0 %v4475
        %6277 = vmatpush1.bf16.msra.mxu0 %v4474
        %6278 = vmatprep.subr.bf16.mxu0 %v4487
        %6279 = vmatpush1.bf16.msra.mxu0 %v4486
        %6280 = vmatprep.subr.bf16.mxu0 %v4499
        %6281 = vmatpush1.bf16.msra.mxu0 %v4498
        %6282 = vmatprep.subr.bf16.mxu0 %v4511
        %6283 = vmatpush1.bf16.msra.mxu0 %v4510
        %6284 = vmatprep.subr.bf16.mxu0 %v4523
        %6285 = vmatpush1.bf16.msra.mxu0 %v4522
        %6286 = vmatprep.subr.bf16.mxu0 %v4535
        %6287 = vmatpush1.bf16.msra.mxu0 %v4534
        %6288 = vmatprep.subr.bf16.mxu0 %v4547
        %6289 = vmatpush1.bf16.msra.mxu0 %v4546
        %6290 = vmatprep.subr.bf16.mxu0 %v4559
        %6291 = vmatpush1.bf16.msra.mxu0 %v4558
        %6292 = vmatprep.mubr.bf16.mxu0 %v1615
        %6293 = vmatmul.mubr.bf16.gmra.mrb[0].mxu0 %v1614
        %v6294 = vpop.f32.mrb[0].mxu0
        %v6295 = vadd.f32 %v6254, %v6294
        %v6296 = vpop.f32.mrb[0].mxu0
        %v6297 = vadd.f32 %v6256, %v6296
        %v6298 = vpop.f32.mrb[0].mxu0
        %v6299 = vpop.f32.mrb[0].mxu0
        %6300 = vdwg.mxu0
        %6301 = vmatprep.subr.bf16.mxu0 %v4571
        %6302 = vmatpush1.bf16.msra.mxu0 %v4570
        %6303 = vmatprep.subr.bf16.mxu0 %v4583
        %6304 = vmatpush1.bf16.msra.mxu0 %v4582
        %6305 = vmatprep.subr.bf16.mxu0 %v4595
        %6306 = vmatpush1.bf16.msra.mxu0 %v4594
        %6307 = vmatprep.subr.bf16.mxu0 %v4607
        %6308 = vmatpush1.bf16.msra.mxu0 %v4606
        %6309 = vmatprep.subr.bf16.mxu0 %v4619
        %6310 = vmatpush1.bf16.msra.mxu0 %v4618
        %6311 = vmatprep.subr.bf16.mxu0 %v4631
        %6312 = vmatpush1.bf16.msra.mxu0 %v4630
        %6313 = vmatprep.subr.bf16.mxu0 %v4643
        %6314 = vmatpush1.bf16.msra.mxu0 %v4642
        %6315 = vmatprep.subr.bf16.mxu0 %v4655
        %6316 = vmatpush1.bf16.msra.mxu0 %v4654
        %6317 = vmatprep.subr.bf16.mxu0 %v4667
        %6318 = vmatpush1.bf16.msra.mxu0 %v4666
        %6319 = vmatprep.subr.bf16.mxu0 %v4679
        %6320 = vmatpush1.bf16.msra.mxu0 %v4678
        %6321 = vmatprep.subr.bf16.mxu0 %v4691
        %6322 = vmatpush1.bf16.msra.mxu0 %v4690
        %6323 = vmatprep.subr.bf16.mxu0 %v4703
        %6324 = vmatpush1.bf16.msra.mxu0 %v4702
        %6325 = vmatprep.subr.bf16.mxu0 %v4715
        %6326 = vmatpush1.bf16.msra.mxu0 %v4714
        %6327 = vmatprep.subr.bf16.mxu0 %v4727
        %6328 = vmatpush1.bf16.msra.mxu0 %v4726
        %6329 = vmatprep.subr.bf16.mxu0 %v4739
        %6330 = vmatpush1.bf16.msra.mxu0 %v4738
        %6331 = vmatprep.subr.bf16.mxu0 %v4751
        %6332 = vmatpush1.bf16.msra.mxu0 %v4750
        %6333 = vmatprep.mubr.bf16.mxu0 %v1617
        %6334 = vmatmul.mubr.bf16.gmra.mrb[0].mxu0 %v1616
        %v6335 = vpop.f32.mrb[0].mxu0
        %v6336 = vadd.f32 %v6295, %v6335
        %v6337 = vpop.f32.mrb[0].mxu0
        %v6338 = vadd.f32 %v6297, %v6337
        %v6339 = vpop.f32.mrb[0].mxu0
        %v6340 = vpop.f32.mrb[0].mxu0
        %6341 = vdwg.mxu0
        %6342 = vmatprep.subr.bf16.mxu0 %v3997
        %6343 = vmatpush1.bf16.msra.mxu0 %v3996
        %6344 = vmatprep.subr.bf16.mxu0 %v4009
        %6345 = vmatpush1.bf16.msra.mxu0 %v4008
        %6346 = vmatprep.subr.bf16.mxu0 %v4021
        %6347 = vmatpush1.bf16.msra.mxu0 %v4020
        %6348 = vmatprep.subr.bf16.mxu0 %v4033
        %6349 = vmatpush1.bf16.msra.mxu0 %v4032
        %6350 = vmatprep.subr.bf16.mxu0 %v4045
        %6351 = vmatpush1.bf16.msra.mxu0 %v4044
        %6352 = vmatprep.subr.bf16.mxu0 %v4057
        %6353 = vmatpush1.bf16.msra.mxu0 %v4056
        %6354 = vmatprep.subr.bf16.mxu0 %v4069
        %6355 = vmatpush1.bf16.msra.mxu0 %v4068
        %6356 = vmatprep.subr.bf16.mxu0 %v4081
        %6357 = vmatpush1.bf16.msra.mxu0 %v4080
        %6358 = vmatprep.subr.bf16.mxu0 %v4093
        %6359 = vmatpush1.bf16.msra.mxu0 %v4092
        %6360 = vmatprep.subr.bf16.mxu0 %v4105
        %6361 = vmatpush1.bf16.msra.mxu0 %v4104
        %6362 = vmatprep.subr.bf16.mxu0 %v4117
        %6363 = vmatpush1.bf16.msra.mxu0 %v4116
        %6364 = vmatprep.subr.bf16.mxu0 %v4129
        %6365 = vmatpush1.bf16.msra.mxu0 %v4128
        %6366 = vmatprep.subr.bf16.mxu0 %v4141
        %6367 = vmatpush1.bf16.msra.mxu0 %v4140
        %6368 = vmatprep.subr.bf16.mxu0 %v4153
        %6369 = vmatpush1.bf16.msra.mxu0 %v4152
        %6370 = vmatprep.subr.bf16.mxu0 %v4165
        %6371 = vmatpush1.bf16.msra.mxu0 %v4164
        %6372 = vmatprep.subr.bf16.mxu0 %v4177
        %6373 = vmatpush1.bf16.msra.mxu0 %v4176
        %6374 = vmatprep.mubr.bf16.mxu0 %v1611
        %6375 = vmatmul.mubr.bf16.gmra.mrb[0].mxu0 %v1610
        %v6376 = vpop.f32.mrb[0].mxu0
        %v6377 = vadd.f32 %v1665, %v6376
        %v6378 = vpop.f32.mrb[0].mxu0
        %v6379 = vadd.f32 %v1669, %v6378
        %v6380 = vpop.f32.mrb[0].mxu0
        %v6381 = vpop.f32.mrb[0].mxu0
        %6382 = vdwg.mxu0
        %6383 = vmatprep.subr.bf16.mxu0 %v4189
        %6384 = vmatpush1.bf16.msra.mxu0 %v4188
        %6385 = vmatprep.subr.bf16.mxu0 %v4201
        %6386 = vmatpush1.bf16.msra.mxu0 %v4200
        %6387 = vmatprep.subr.bf16.mxu0 %v4213
        %6388 = vmatpush1.bf16.msra.mxu0 %v4212
        %6389 = vmatprep.subr.bf16.mxu0 %v4225
        %6390 = vmatpush1.bf16.msra.mxu0 %v4224
        %6391 = vmatprep.subr.bf16.mxu0 %v4237
        %6392 = vmatpush1.bf16.msra.mxu0 %v4236
        %6393 = vmatprep.subr.bf16.mxu0 %v4249
        %6394 = vmatpush1.bf16.msra.mxu0 %v4248
        %6395 = vmatprep.subr.bf16.mxu0 %v4261
        %6396 = vmatpush1.bf16.msra.mxu0 %v4260
        %6397 = vmatprep.subr.bf16.mxu0 %v4273
        %6398 = vmatpush1.bf16.msra.mxu0 %v4272
        %6399 = vmatprep.subr.bf16.mxu0 %v4285
        %6400 = vmatpush1.bf16.msra.mxu0 %v4284
        %6401 = vmatprep.subr.bf16.mxu0 %v4297
        %6402 = vmatpush1.bf16.msra.mxu0 %v4296
        %6403 = vmatprep.subr.bf16.mxu0 %v4309
        %6404 = vmatpush1.bf16.msra.mxu0 %v4308
        %6405 = vmatprep.subr.bf16.mxu0 %v4321
        %6406 = vmatpush1.bf16.msra.mxu0 %v4320
        %6407 = vmatprep.subr.bf16.mxu0 %v4333
        %6408 = vmatpush1.bf16.msra.mxu0 %v4332
        %6409 = vmatprep.subr.bf16.mxu0 %v4345
        %6410 = vmatpush1.bf16.msra.mxu0 %v4344
        %6411 = vmatprep.subr.bf16.mxu0 %v4357
        %6412 = vmatpush1.bf16.msra.mxu0 %v4356
        %6413 = vmatprep.subr.bf16.mxu0 %v4369
        %6414 = vmatpush1.bf16.msra.mxu0 %v4368
        %6415 = vmatprep.mubr.bf16.mxu0 %v1613
        %6416 = vmatmul.mubr.bf16.gmra.mrb[0].mxu0 %v1612
        %v6417 = vpop.f32.mrb[0].mxu0
        %v6418 = vadd.f32 %v6377, %v6417
        %v6419 = vpop.f32.mrb[0].mxu0
        %v6420 = vadd.f32 %v6379, %v6419
        %v6421 = vpop.f32.mrb[0].mxu0
        %v6422 = vpop.f32.mrb[0].mxu0
        %6423 = vdwg.mxu0
        %6424 = vmatprep.subr.bf16.mxu0 %v4381
        %6425 = vmatpush1.bf16.msra.mxu0 %v4380
        %6426 = vmatprep.subr.bf16.mxu0 %v4393
        %6427 = vmatpush1.bf16.msra.mxu0 %v4392
        %6428 = vmatprep.subr.bf16.mxu0 %v4405
        %6429 = vmatpush1.bf16.msra.mxu0 %v4404
        %6430 = vmatprep.subr.bf16.mxu0 %v4417
        %6431 = vmatpush1.bf16.msra.mxu0 %v4416
        %6432 = vmatprep.subr.bf16.mxu0 %v4429
        %6433 = vmatpush1.bf16.msra.mxu0 %v4428
        %6434 = vmatprep.subr.bf16.mxu0 %v4441
        %6435 = vmatpush1.bf16.msra.mxu0 %v4440
        %6436 = vmatprep.subr.bf16.mxu0 %v4453
        %6437 = vmatpush1.bf16.msra.mxu0 %v4452
        %6438 = vmatprep.subr.bf16.mxu0 %v4465
        %6439 = vmatpush1.bf16.msra.mxu0 %v4464
        %6440 = vmatprep.subr.bf16.mxu0 %v4477
        %6441 = vmatpush1.bf16.msra.mxu0 %v4476
        %6442 = vmatprep.subr.bf16.mxu0 %v4489
        %6443 = vmatpush1.bf16.msra.mxu0 %v4488
        %6444 = vmatprep.subr.bf16.mxu0 %v4501
        %6445 = vmatpush1.bf16.msra.mxu0 %v4500
        %6446 = vmatprep.subr.bf16.mxu0 %v4513
        %6447 = vmatpush1.bf16.msra.mxu0 %v4512
        %6448 = vmatprep.subr.bf16.mxu0 %v4525
        %6449 = vmatpush1.bf16.msra.mxu0 %v4524
        %6450 = vmatprep.subr.bf16.mxu0 %v4537
        %6451 = vmatpush1.bf16.msra.mxu0 %v4536
        %6452 = vmatprep.subr.bf16.mxu0 %v4549
        %6453 = vmatpush1.bf16.msra.mxu0 %v4548
        %6454 = vmatprep.subr.bf16.mxu0 %v4561
        %6455 = vmatpush1.bf16.msra.mxu0 %v4560
        %6456 = vmatprep.mubr.bf16.mxu0 %v1615
        %6457 = vmatmul.mubr.bf16.gmra.mrb[0].mxu0 %v1614
        %v6458 = vpop.f32.mrb[0].mxu0
        %v6459 = vadd.f32 %v6418, %v6458
        %v6460 = vpop.f32.mrb[0].mxu0
        %v6461 = vadd.f32 %v6420, %v6460
        %v6462 = vpop.f32.mrb[0].mxu0
        %v6463 = vpop.f32.mrb[0].mxu0
        %6464 = vdwg.mxu0
        %6465 = vmatprep.subr.bf16.mxu0 %v4573
        %6466 = vmatpush1.bf16.msra.mxu0 %v4572
        %6467 = vmatprep.subr.bf16.mxu0 %v4585
        %6468 = vmatpush1.bf16.msra.mxu0 %v4584
        %6469 = vmatprep.subr.bf16.mxu0 %v4597
        %6470 = vmatpush1.bf16.msra.mxu0 %v4596
        %6471 = vmatprep.subr.bf16.mxu0 %v4609
        %6472 = vmatpush1.bf16.msra.mxu0 %v4608
        %6473 = vmatprep.subr.bf16.mxu0 %v4621
        %6474 = vmatpush1.bf16.msra.mxu0 %v4620
        %6475 = vmatprep.subr.bf16.mxu0 %v4633
        %6476 = vmatpush1.bf16.msra.mxu0 %v4632
        %6477 = vmatprep.subr.bf16.mxu0 %v4645
        %6478 = vmatpush1.bf16.msra.mxu0 %v4644
        %6479 = vmatprep.subr.bf16.mxu0 %v4657
        %6480 = vmatpush1.bf16.msra.mxu0 %v4656
        %6481 = vmatprep.subr.bf16.mxu0 %v4669
        %6482 = vmatpush1.bf16.msra.mxu0 %v4668
        %6483 = vmatprep.subr.bf16.mxu0 %v4681
        %6484 = vmatpush1.bf16.msra.mxu0 %v4680
        %6485 = vmatprep.subr.bf16.mxu0 %v4693
        %6486 = vmatpush1.bf16.msra.mxu0 %v4692
        %6487 = vmatprep.subr.bf16.mxu0 %v4705
        %6488 = vmatpush1.bf16.msra.mxu0 %v4704
        %6489 = vmatprep.subr.bf16.mxu0 %v4717
        %6490 = vmatpush1.bf16.msra.mxu0 %v4716
        %6491 = vmatprep.subr.bf16.mxu0 %v4729
        %6492 = vmatpush1.bf16.msra.mxu0 %v4728
        %6493 = vmatprep.subr.bf16.mxu0 %v4741
        %6494 = vmatpush1.bf16.msra.mxu0 %v4740
        %6495 = vmatprep.subr.bf16.mxu0 %v4753
        %6496 = vmatpush1.bf16.msra.mxu0 %v4752
        %6497 = vmatprep.mubr.bf16.mxu0 %v1617
        %6498 = vmatmul.mubr.bf16.gmra.mrb[0].mxu0 %v1616
        %v6499 = vpop.f32.mrb[0].mxu0
        %v6500 = vadd.f32 %v6459, %v6499
        %v6501 = vpop.f32.mrb[0].mxu0
        %v6502 = vadd.f32 %v6461, %v6501
        %v6503 = vpop.f32.mrb[0].mxu0
        %v6504 = vpop.f32.mrb[0].mxu0
        %6505 = vdwg.mxu0
        %v6506 = vxor.u32 %v5680, 2147483648
        %v6507 = vxor.u32 %v5682, 2147483648
        %v6508 = vxor.u32 %v5844, 2147483648
        %v6509 = vxor.u32 %v5846, 2147483648
        %v6510 = vxor.u32 %v6008, 2147483648
        %v6511 = vxor.u32 %v6010, 2147483648
        %v6512 = vxor.u32 %v6172, 2147483648
        %v6513 = vxor.u32 %v6174, 2147483648
        %v6514 = vxor.u32 %v6336, 2147483648
        %v6515 = vxor.u32 %v6338, 2147483648
        %v6516 = vxor.u32 %v6500, 2147483648
        %v6517 = vxor.u32 %v6502, 2147483648
        %v6518 = vmul.f32 %v6506, 1.442695
        %v6519 = vpow.pop %v6518
        %v6520 = vmul.f32 %v6507, 1.442695
        %v6521 = vpow.pop %v6520
        %v6522 = vmul.f32 %v6508, 1.442695
        %v6523 = vpow.pop %v6522
        %v6524 = vmul.f32 %v6509, 1.442695
        %v6525 = vpow.pop %v6524
        %v6526 = vmul.f32 %v6510, 1.442695
        %v6527 = vpow.pop %v6526
        %v6528 = vmul.f32 %v6511, 1.442695
        %v6529 = vpow.pop %v6528
        %v6530 = vmul.f32 %v6512, 1.442695
        %v6531 = vpow.pop %v6530
        %v6532 = vmul.f32 %v6513, 1.442695
        %v6533 = vpow.pop %v6532
        %v6534 = vmul.f32 %v6514, 1.442695
        %v6535 = vpow.pop %v6534
        %v6536 = vmul.f32 %v6515, 1.442695
        %v6537 = vpow.pop %v6536
        %v6538 = vmul.f32 %v6516, 1.442695
        %v6539 = vpow.pop %v6538
        %v6540 = vmul.f32 %v6517, 1.442695
        %v6541 = vpow.pop %v6540
        %v6542 = vadd.f32 %v6519, 1.0
        %v6543 = vadd.f32 %v6521, 1.0
        %v6544 = vadd.f32 %v6523, 1.0
        %v6545 = vadd.f32 %v6525, 1.0
        %v6546 = vadd.f32 %v6527, 1.0
        %v6547 = vadd.f32 %v6529, 1.0
        %v6548 = vadd.f32 %v6531, 1.0
        %v6549 = vadd.f32 %v6533, 1.0
        %v6550 = vadd.f32 %v6535, 1.0
        %v6551 = vadd.f32 %v6537, 1.0
        %v6552 = vadd.f32 %v6539, 1.0
        %v6553 = vadd.f32 %v6541, 1.0
        %v6554 = vrcp.pop %v6542
        %v6555 = vmul.f32 1.0, %v6554
        %v6556 = vrcp.pop %v6543
        %v6557 = vmul.f32 1.0, %v6556
        %v6558 = vrcp.pop %v6544
        %v6559 = vmul.f32 1.0, %v6558
        %v6560 = vrcp.pop %v6545
        %v6561 = vmul.f32 1.0, %v6560
        %v6562 = vrcp.pop %v6546
        %v6563 = vmul.f32 1.0, %v6562
        %v6564 = vrcp.pop %v6547
        %v6565 = vmul.f32 1.0, %v6564
        %v6566 = vrcp.pop %v6548
        %v6567 = vmul.f32 1.0, %v6566
        %v6568 = vrcp.pop %v6549
        %v6569 = vmul.f32 1.0, %v6568
        %v6570 = vrcp.pop %v6550
        %v6571 = vmul.f32 1.0, %v6570
        %v6572 = vrcp.pop %v6551
        %v6573 = vmul.f32 1.0, %v6572
        %v6574 = vrcp.pop %v6552
        %v6575 = vmul.f32 1.0, %v6574
        %v6576 = vrcp.pop %v6553
        %v6577 = vmul.f32 1.0, %v6576
        %v6578 = vld [vmem:[%s405] sm:$0xff]
        %v6579 = vld [vmem:[%s405 + $0x8] sm:$0xf]
        %v6580 = vpack.c.bf16 %v6555, %v6555
        %v6581 = vpack.c.bf16 %v6557, %v6557
        %v6582 = vpack.c.bf16 %v6559, %v6559
        %v6583 = vpack.c.bf16 %v6561, %v6561
        %v6584 = vpack.c.bf16 %v6563, %v6563
        %v6585 = vpack.c.bf16 %v6565, %v6565
        %v6586 = vpack.c.bf16 %v6567, %v6567
        %v6587 = vpack.c.bf16 %v6569, %v6569
        %v6588 = vpack.c.bf16 %v6571, %v6571
        %v6589 = vpack.c.bf16 %v6573, %v6573
        %v6590 = vpack.c.bf16 %v6575, %v6575
        %v6591 = vpack.c.bf16 %v6577, %v6577
        %v6594 = vcombine.high %v6578, %v6578
        %v6596 = vunpack.c.l.s4 1966171168
        %v6597 = vunpack.c.0.s8 %v6596
        %v6598 = vlaneseq
        %v6599 = vshrl.u32 %v6598, 7
        %v6600 = vsub.s32 %v6597, %v6599
        %v6601 = vrot.slane %v6578, %v6600
        %v6603 = vunpack.c.l.s4 1966171168
        %v6604 = vunpack.c.0.s8 %v6603
        %v6605 = vlaneseq
        %v6606 = vshrl.u32 %v6605, 7
        %v6607 = vsub.s32 %v6604, %v6606
        %v6608 = vrot.slane %v6594, %v6607
        %v6609 = vcombine.high %v6601, %v6601
        %v6610 = vcombine.high %v6608, %v6608
        %v6612 = vunpack.c.l.s4 1966171168
        %v6613 = vunpack.c.0.s8 %v6612
        %v6614 = vlaneseq
        %v6615 = vshrl.u32 %v6614, 7
        %v6616 = vsub.s32 %v6613, %v6615
        %v6617 = vrot.slane %v6601, %v6616
        %v6619 = vunpack.c.l.s4 1966171168
        %v6620 = vunpack.c.0.s8 %v6619
        %v6621 = vlaneseq
        %v6622 = vshrl.u32 %v6621, 7
        %v6623 = vsub.s32 %v6620, %v6622
        %v6624 = vrot.slane %v6608, %v6623
        %v6626 = vunpack.c.l.s4 1966171168
        %v6627 = vunpack.c.0.s8 %v6626
        %v6628 = vlaneseq
        %v6629 = vshrl.u32 %v6628, 7
        %v6630 = vsub.s32 %v6627, %v6629
        %v6631 = vrot.slane %v6609, %v6630
        %v6633 = vunpack.c.l.s4 1966171168
        %v6634 = vunpack.c.0.s8 %v6633
        %v6635 = vlaneseq
        %v6636 = vshrl.u32 %v6635, 7
        %v6637 = vsub.s32 %v6634, %v6636
        %v6638 = vrot.slane %v6610, %v6637
        %v6639 = vcombine.high %v6617, %v6617
        %v6640 = vcombine.high %v6624, %v6624
        %v6641 = vcombine.high %v6631, %v6631
        %v6642 = vcombine.high %v6638, %v6638
        %v6644 = vunpack.c.l.s4 1966171168
        %v6645 = vunpack.c.0.s8 %v6644
        %v6646 = vlaneseq
        %v6647 = vshrl.u32 %v6646, 7
        %v6648 = vsub.s32 %v6645, %v6647
        %v6649 = vrot.slane %v6579, %v6648
        %v6650 = vcombine.high %v6649, %v6649
        %v6652 = vunpack.c.l.s4 1966171168
        %v6653 = vunpack.c.0.s8 %v6652
        %v6654 = vlaneseq
        %v6655 = vshrl.u32 %v6654, 7
        %v6656 = vsub.s32 %v6653, %v6655
        %v6657 = vrot.slane %v6649, %v6656
        %v6659 = vunpack.c.l.s4 1966171168
        %v6660 = vunpack.c.0.s8 %v6659
        %v6661 = vlaneseq
        %v6662 = vshrl.u32 %v6661, 7
        %v6663 = vsub.s32 %v6660, %v6662
        %v6664 = vrot.slane %v6650, %v6663
        %v6665 = vcombine.high %v6657, %v6657
        %v6666 = vcombine.high %v6664, %v6664
        %6679 = vmatprep.subr.bf16.mxu0 %v6631
        %6680 = vmatpush1.bf16.xpose.msra.mxu0 %v6617
        %6681 = vmatprep.subr.bf16.mxu0 0
        %6682 = vmatpush1.bf16.xpose.msra.mxu0 0
        %6683 = vmatprep.subr.bf16.mxu0 0
        %6684 = vmatpush1.bf16.xpose.msra.mxu0 0
        %6685 = vmatprep.subr.bf16.mxu0 0
        %6686 = vmatpush1.bf16.xpose.msra.mxu0 0
        %6687 = vmatprep.subr.bf16.mxu0 0
        %6688 = vmatpush1.bf16.xpose.msra.mxu0 0
        %6689 = vmatprep.subr.bf16.mxu0 0
        %6690 = vmatpush1.bf16.xpose.msra.mxu0 0
        %6691 = vmatprep.subr.bf16.mxu0 0
        %6692 = vmatpush1.bf16.xpose.msra.mxu0 0
        %6693 = vmatprep.subr.bf16.mxu0 0
        %6694 = vmatpush1.bf16.xpose.msra.mxu0 0
        %6695 = vmatprep.subr.bf16.mxu0 0
        %6696 = vmatpush1.bf16.xpose.msra.mxu0 0
        %6697 = vmatprep.subr.bf16.mxu0 0
        %6698 = vmatpush1.bf16.xpose.msra.mxu0 0
        %6699 = vmatprep.subr.bf16.mxu0 0
        %6700 = vmatpush1.bf16.xpose.msra.mxu0 0
        %6701 = vmatprep.subr.bf16.mxu0 0
        %6702 = vmatpush1.bf16.xpose.msra.mxu0 0
        %6703 = vmatprep.subr.bf16.mxu0 0
        %6704 = vmatpush1.bf16.xpose.msra.mxu0 0
        %6705 = vmatprep.subr.bf16.mxu0 0
        %6706 = vmatpush1.bf16.xpose.msra.mxu0 0
        %6707 = vmatprep.subr.bf16.mxu0 0
        %6708 = vmatpush1.bf16.xpose.msra.mxu0 0
        %6709 = vmatprep.subr.bf16.mxu0 0
        %6710 = vmatpush1.bf16.xpose.msra.mxu0 0
        %6711 = vmatprep.mubr.bf16.mxu0 %v6581
        %6712 = vmatmul.mubr.bf16.gmra.mrb[0].mxu0 %v6580
        %v6713 = vpop.f32.mrb[0].mxu0
        %v6714 = vadd.f32 0.0, %v6713
        %v6715 = vpop.f32.mrb[0].mxu0
        %v6716 = vpop.f32.mrb[0].mxu0
        %v6717 = vpop.f32.mrb[0].mxu0
        %6718 = vdwg.mxu0
        %6719 = vmatprep.subr.bf16.mxu0 %v6641
        %6720 = vmatpush1.bf16.xpose.msra.mxu0 %v6639
        %6721 = vmatprep.subr.bf16.mxu0 0
        %6722 = vmatpush1.bf16.xpose.msra.mxu0 0
        %6723 = vmatprep.subr.bf16.mxu0 0
        %6724 = vmatpush1.bf16.xpose.msra.mxu0 0
        %6725 = vmatprep.subr.bf16.mxu0 0
        %6726 = vmatpush1.bf16.xpose.msra.mxu0 0
        %6727 = vmatprep.subr.bf16.mxu0 0
        %6728 = vmatpush1.bf16.xpose.msra.mxu0 0
        %6729 = vmatprep.subr.bf16.mxu0 0
        %6730 = vmatpush1.bf16.xpose.msra.mxu0 0
        %6731 = vmatprep.subr.bf16.mxu0 0
        %6732 = vmatpush1.bf16.xpose.msra.mxu0 0
        %6733 = vmatprep.subr.bf16.mxu0 0
        %6734 = vmatpush1.bf16.xpose.msra.mxu0 0
        %6735 = vmatprep.subr.bf16.mxu0 0
        %6736 = vmatpush1.bf16.xpose.msra.mxu0 0
        %6737 = vmatprep.subr.bf16.mxu0 0
        %6738 = vmatpush1.bf16.xpose.msra.mxu0 0
        %6739 = vmatprep.subr.bf16.mxu0 0
        %6740 = vmatpush1.bf16.xpose.msra.mxu0 0
        %6741 = vmatprep.subr.bf16.mxu0 0
        %6742 = vmatpush1.bf16.xpose.msra.mxu0 0
        %6743 = vmatprep.subr.bf16.mxu0 0
        %6744 = vmatpush1.bf16.xpose.msra.mxu0 0
        %6745 = vmatprep.subr.bf16.mxu0 0
        %6746 = vmatpush1.bf16.xpose.msra.mxu0 0
        %6747 = vmatprep.subr.bf16.mxu0 0
        %6748 = vmatpush1.bf16.xpose.msra.mxu0 0
        %6749 = vmatprep.subr.bf16.mxu0 0
        %6750 = vmatpush1.bf16.xpose.msra.mxu0 0
        %6751 = vmatprep.mubr.bf16.mxu0 %v6583
        %6752 = vmatmul.mubr.bf16.gmra.mrb[0].mxu0 %v6582
        %v6753 = vpop.f32.mrb[0].mxu0
        %v6754 = vadd.f32 %v6714, %v6753
        %v6755 = vpop.f32.mrb[0].mxu0
        %v6756 = vpop.f32.mrb[0].mxu0
        %v6757 = vpop.f32.mrb[0].mxu0
        %6758 = vdwg.mxu0
        %6759 = vmatprep.subr.bf16.mxu0 %v6638
        %6760 = vmatpush1.bf16.xpose.msra.mxu0 %v6624
        %6761 = vmatprep.subr.bf16.mxu0 0
        %6762 = vmatpush1.bf16.xpose.msra.mxu0 0
        %6763 = vmatprep.subr.bf16.mxu0 0
        %6764 = vmatpush1.bf16.xpose.msra.mxu0 0
        %6765 = vmatprep.subr.bf16.mxu0 0
        %6766 = vmatpush1.bf16.xpose.msra.mxu0 0
        %6767 = vmatprep.subr.bf16.mxu0 0
        %6768 = vmatpush1.bf16.xpose.msra.mxu0 0
        %6769 = vmatprep.subr.bf16.mxu0 0
        %6770 = vmatpush1.bf16.xpose.msra.mxu0 0
        %6771 = vmatprep.subr.bf16.mxu0 0
        %6772 = vmatpush1.bf16.xpose.msra.mxu0 0
        %6773 = vmatprep.subr.bf16.mxu0 0
        %6774 = vmatpush1.bf16.xpose.msra.mxu0 0
        %6775 = vmatprep.subr.bf16.mxu0 0
        %6776 = vmatpush1.bf16.xpose.msra.mxu0 0
        %6777 = vmatprep.subr.bf16.mxu0 0
        %6778 = vmatpush1.bf16.xpose.msra.mxu0 0
        %6779 = vmatprep.subr.bf16.mxu0 0
        %6780 = vmatpush1.bf16.xpose.msra.mxu0 0
        %6781 = vmatprep.subr.bf16.mxu0 0
        %6782 = vmatpush1.bf16.xpose.msra.mxu0 0
        %6783 = vmatprep.subr.bf16.mxu0 0
        %6784 = vmatpush1.bf16.xpose.msra.mxu0 0
        %6785 = vmatprep.subr.bf16.mxu0 0
        %6786 = vmatpush1.bf16.xpose.msra.mxu0 0
        %6787 = vmatprep.subr.bf16.mxu0 0
        %6788 = vmatpush1.bf16.xpose.msra.mxu0 0
        %6789 = vmatprep.subr.bf16.mxu0 0
        %6790 = vmatpush1.bf16.xpose.msra.mxu0 0
        %6791 = vmatprep.mubr.bf16.mxu0 %v6585
        %6792 = vmatmul.mubr.bf16.gmra.mrb[0].mxu0 %v6584
        %v6793 = vpop.f32.mrb[0].mxu0
        %v6794 = vadd.f32 %v6754, %v6793
        %v6795 = vpop.f32.mrb[0].mxu0
        %v6796 = vpop.f32.mrb[0].mxu0
        %v6797 = vpop.f32.mrb[0].mxu0
        %6798 = vdwg.mxu0
        %6799 = vmatprep.subr.bf16.mxu0 %v6642
        %6800 = vmatpush1.bf16.xpose.msra.mxu0 %v6640
        %6801 = vmatprep.subr.bf16.mxu0 0
        %6802 = vmatpush1.bf16.xpose.msra.mxu0 0
        %6803 = vmatprep.subr.bf16.mxu0 0
        %6804 = vmatpush1.bf16.xpose.msra.mxu0 0
        %6805 = vmatprep.subr.bf16.mxu0 0
        %6806 = vmatpush1.bf16.xpose.msra.mxu0 0
        %6807 = vmatprep.subr.bf16.mxu0 0
        %6808 = vmatpush1.bf16.xpose.msra.mxu0 0
        %6809 = vmatprep.subr.bf16.mxu0 0
        %6810 = vmatpush1.bf16.xpose.msra.mxu0 0
        %6811 = vmatprep.subr.bf16.mxu0 0
        %6812 = vmatpush1.bf16.xpose.msra.mxu0 0
        %6813 = vmatprep.subr.bf16.mxu0 0
        %6814 = vmatpush1.bf16.xpose.msra.mxu0 0
        %6815 = vmatprep.subr.bf16.mxu0 0
        %6816 = vmatpush1.bf16.xpose.msra.mxu0 0
        %6817 = vmatprep.subr.bf16.mxu0 0
        %6818 = vmatpush1.bf16.xpose.msra.mxu0 0
        %6819 = vmatprep.subr.bf16.mxu0 0
        %6820 = vmatpush1.bf16.xpose.msra.mxu0 0
        %6821 = vmatprep.subr.bf16.mxu0 0
        %6822 = vmatpush1.bf16.xpose.msra.mxu0 0
        %6823 = vmatprep.subr.bf16.mxu0 0
        %6824 = vmatpush1.bf16.xpose.msra.mxu0 0
        %6825 = vmatprep.subr.bf16.mxu0 0
        %6826 = vmatpush1.bf16.xpose.msra.mxu0 0
        %6827 = vmatprep.subr.bf16.mxu0 0
        %6828 = vmatpush1.bf16.xpose.msra.mxu0 0
        %6829 = vmatprep.subr.bf16.mxu0 0
        %6830 = vmatpush1.bf16.xpose.msra.mxu0 0
        %6831 = vmatprep.mubr.bf16.mxu0 %v6587
        %6832 = vmatmul.mubr.bf16.gmra.mrb[0].mxu0 %v6586
        %v6833 = vpop.f32.mrb[0].mxu0
        %v6834 = vadd.f32 %v6794, %v6833
        %v6835 = vpop.f32.mrb[0].mxu0
        %v6836 = vpop.f32.mrb[0].mxu0
        %v6837 = vpop.f32.mrb[0].mxu0
        %6838 = vdwg.mxu0
        %6839 = vmatprep.subr.bf16.mxu0 %v6664
        %6840 = vmatpush1.bf16.xpose.msra.mxu0 %v6657
        %6841 = vmatprep.subr.bf16.mxu0 0
        %6842 = vmatpush1.bf16.xpose.msra.mxu0 0
        %6843 = vmatprep.subr.bf16.mxu0 0
        %6844 = vmatpush1.bf16.xpose.msra.mxu0 0
        %6845 = vmatprep.subr.bf16.mxu0 0
        %6846 = vmatpush1.bf16.xpose.msra.mxu0 0
        %6847 = vmatprep.subr.bf16.mxu0 0
        %6848 = vmatpush1.bf16.xpose.msra.mxu0 0
        %6849 = vmatprep.subr.bf16.mxu0 0
        %6850 = vmatpush1.bf16.xpose.msra.mxu0 0
        %6851 = vmatprep.subr.bf16.mxu0 0
        %6852 = vmatpush1.bf16.xpose.msra.mxu0 0
        %6853 = vmatprep.subr.bf16.mxu0 0
        %6854 = vmatpush1.bf16.xpose.msra.mxu0 0
        %6855 = vmatprep.subr.bf16.mxu0 0
        %6856 = vmatpush1.bf16.xpose.msra.mxu0 0
        %6857 = vmatprep.subr.bf16.mxu0 0
        %6858 = vmatpush1.bf16.xpose.msra.mxu0 0
        %6859 = vmatprep.subr.bf16.mxu0 0
        %6860 = vmatpush1.bf16.xpose.msra.mxu0 0
        %6861 = vmatprep.subr.bf16.mxu0 0
        %6862 = vmatpush1.bf16.xpose.msra.mxu0 0
        %6863 = vmatprep.subr.bf16.mxu0 0
        %6864 = vmatpush1.bf16.xpose.msra.mxu0 0
        %6865 = vmatprep.subr.bf16.mxu0 0
        %6866 = vmatpush1.bf16.xpose.msra.mxu0 0
        %6867 = vmatprep.subr.bf16.mxu0 0
        %6868 = vmatpush1.bf16.xpose.msra.mxu0 0
        %6869 = vmatprep.subr.bf16.mxu0 0
        %6870 = vmatpush1.bf16.xpose.msra.mxu0 0
        %6871 = vmatprep.mubr.bf16.mxu0 %v6589
        %6872 = vmatmul.mubr.bf16.gmra.mrb[0].mxu0 %v6588
        %v6873 = vpop.f32.mrb[0].mxu0
        %v6874 = vadd.f32 %v6834, %v6873
        %v6875 = vpop.f32.mrb[0].mxu0
        %v6876 = vpop.f32.mrb[0].mxu0
        %v6877 = vpop.f32.mrb[0].mxu0
        %6878 = vdwg.mxu0
        %6879 = vmatprep.subr.bf16.mxu0 %v6666
        %6880 = vmatpush1.bf16.xpose.msra.mxu0 %v6665
        %6881 = vmatprep.subr.bf16.mxu0 0
        %6882 = vmatpush1.bf16.xpose.msra.mxu0 0
        %6883 = vmatprep.subr.bf16.mxu0 0
        %6884 = vmatpush1.bf16.xpose.msra.mxu0 0
        %6885 = vmatprep.subr.bf16.mxu0 0
        %6886 = vmatpush1.bf16.xpose.msra.mxu0 0
        %6887 = vmatprep.subr.bf16.mxu0 0
        %6888 = vmatpush1.bf16.xpose.msra.mxu0 0
        %6889 = vmatprep.subr.bf16.mxu0 0
        %6890 = vmatpush1.bf16.xpose.msra.mxu0 0
        %6891 = vmatprep.subr.bf16.mxu0 0
        %6892 = vmatpush1.bf16.xpose.msra.mxu0 0
        %6893 = vmatprep.subr.bf16.mxu0 0
        %6894 = vmatpush1.bf16.xpose.msra.mxu0 0
        %6895 = vmatprep.subr.bf16.mxu0 0
        %6896 = vmatpush1.bf16.xpose.msra.mxu0 0
        %6897 = vmatprep.subr.bf16.mxu0 0
        %6898 = vmatpush1.bf16.xpose.msra.mxu0 0
        %6899 = vmatprep.subr.bf16.mxu0 0
        %6900 = vmatpush1.bf16.xpose.msra.mxu0 0
        %6901 = vmatprep.subr.bf16.mxu0 0
        %6902 = vmatpush1.bf16.xpose.msra.mxu0 0
        %6903 = vmatprep.subr.bf16.mxu0 0
        %6904 = vmatpush1.bf16.xpose.msra.mxu0 0
        %6905 = vmatprep.subr.bf16.mxu0 0
        %6906 = vmatpush1.bf16.xpose.msra.mxu0 0
        %6907 = vmatprep.subr.bf16.mxu0 0
        %6908 = vmatpush1.bf16.xpose.msra.mxu0 0
        %6909 = vmatprep.subr.bf16.mxu0 0
        %6910 = vmatpush1.bf16.xpose.msra.mxu0 0
        %6911 = vmatprep.mubr.bf16.mxu0 %v6591
        %6912 = vmatmul.mubr.bf16.gmra.mrb[0].mxu0 %v6590
        %v6913 = vpop.f32.mrb[0].mxu0
        %v6914 = vadd.f32 %v6874, %v6913
        %v6915 = vpop.f32.mrb[0].mxu0
        %v6916 = vpop.f32.mrb[0].mxu0
        %v6917 = vpop.f32.mrb[0].mxu0
        %6918 = vdwg.mxu0
        %vm6919 = vcmask 15360
        %6920 = vst.msk [vmem:[%s467] sm:$0xff] %vm6919, %v6914
        %p6921 = scmp.lt.s32.totalorder %s31, 2
        %s6922 = scalar_select %p6921, %s31, 2
        %p6923 = scmp.lt.s32.totalorder %s32, 1
        %s6924 = scalar_select %p6923, %s32, 1
        %s6925 = smul.addr %s6922, 2
        %s6926 = sadd.s32 %s6924, %s6925
        %s6927 = smul.addr %s6926, 8
        %s6928 = scalar_lea.vmem %s6, %s6927
        // Predicated region
        $region69: #{ensemble_forward_stacked.1} parent=43 // pred_check
          %p6929 = pneg %p216
        $region70: #{ensemble_forward_stacked.1} parent=43 // pred_check_branch
          %6931 = sbr.rel (%p6929) target = $region72
        $region71: #{ensemble_forward_stacked.1} parent=43 // pred_region
          _
        $region72: #{ensemble_forward_stacked.1} parent=43 // pred_fallthru
          _
      $region44: #{ensemble_forward_stacked.1} parent=5 // pred_fallthru
        _
      %p6932 = scmp.le.s32.totalorder 2, %s22
      // Predicated region
      $region73: #{ensemble_forward_stacked.1} parent=5 // pred_check
        %p6933 = pneg %p6932
      $region74: #{ensemble_forward_stacked.1} parent=5 // pred_check_branch
        %6935 = sbr.rel (%p6933) target = $region76
      $region75: #{ensemble_forward_stacked.1} parent=5 // pred_region
        %s6936 = ssub.s32 %s22, 2
        // Predicated region
        $region77: #{ensemble_forward_stacked.1} parent=75 // pred_check
          %p6937 = pneg %p222
        $region78: #{ensemble_forward_stacked.1} parent=75 // pred_check_branch
          %6939 = sbr.rel (%p6937) target = $region80
        $region79: #{ensemble_forward_stacked.1} parent=75 // pred_region
          %p6940 = scmp.lt.s32.totalorder %s33, 2
          %s6941 = scalar_select %p6940, %s33, 2
          %p6942 = scmp.lt.s32.totalorder %s34, 1
          %s6943 = scalar_select %p6942, %s34, 1
          %s6944 = smul.addr %s6941, 2
          %s6945 = sadd.s32 %s6943, %s6944
          %s6946 = smul.addr %s6945, 8
          %s6947 = scalar_lea.vmem %s6, %s6946
        $region80: #{ensemble_forward_stacked.1} parent=75 // pred_fallthru
          _
      $region76: #{ensemble_forward_stacked.1} parent=5 // pred_fallthru
        _
    $region6: #{ensemble_forward_stacked.1} parent=1 // loop_footer
      %s26 = sadd.s32 1, %s22
    $region7: #{ensemble_forward_stacked.1} parent=1 // loop_footer_branch
      %21 = sbr.rel target = $region3
    $region8: #{ensemble_forward_stacked.1} parent=1 // loop_exit
      _
    %6948 = vsyncpa [#allocation3], 1
    %s6949 = scalar_lea.sflag [#allocation3], 1
    %6950 = vsyncpa %s6949, 1
    %6951 = vsyncpa [#allocation5], 1
    %s6952 = scalar_lea.sflag [#allocation5], 1
    %6953 = vsyncpa %s6952, 1
    %6954 = vsyncpa [#allocation8], 1
    %s6955 = scalar_lea.sflag [#allocation8], 1
    %6956 = vsyncpa %s6955, 1
    %6957 = vsyncpa [#allocation11], 1
    %s6958 = scalar_lea.sflag [#allocation11], 1
    %6959 = vsyncpa %s6958, 1

</llo_original>
